<compile_context>
chip_gen: v7x
topology: tpu7x:2x2x1
jax: 0.10.0
libtpu: 0.0.40
codegen_flags: <defaults>
</compile_context>

<pallas_src>
import functools

import numpy as np
import jax
import jax.numpy as jnp
from jax.experimental import pallas as pl
from jax.experimental.pallas import tpu as pltpu


_VMEM_LIMIT = 64 * 1024 * 1024   # <= physical VMEM on v5e / v6e / v7x


# ----------------------------- in-kernel helpers -----------------------------

def _layer_norm(x, g, b, eps=1e-5):
    # x: (L, C) f32 math, g/b: (1, C) f32
    x = x.astype(jnp.float32)
    mu = jnp.mean(x, axis=-1, keepdims=True)
    var = jnp.mean((x - mu) ** 2, axis=-1, keepdims=True)
    return (x - mu) * jax.lax.rsqrt(var + eps) * g + b


def _quick_gelu(x):
    return x * jax.nn.sigmoid(1.702 * x)


def _mm(a, w):
    # bf16 MXU matmul with f32 accumulation.
    return jnp.dot(a.astype(jnp.bfloat16), w.astype(jnp.bfloat16),
                   preferred_element_type=jnp.float32)


def _softmax_last(x):
    m = jnp.max(x, axis=-1, keepdims=True)
    e = jnp.exp(x - m)
    return e * pl.reciprocal(jnp.sum(e, axis=-1, keepdims=True), approx=True)


def _mlp_residual(x, ln2g, ln2b, w_fc, b_fc, w_pr, b_pr):
    xn2 = _layer_norm(x, ln2g, ln2b)
    hidden = _quick_gelu(_mm(xn2, w_fc) + b_fc)
    return x + _mm(hidden, w_pr) + b_pr


# ----------------------------- Pallas kernels --------------------------------

def _self_attn_block_kernel(xq_ref, xfull_ref,
                            ln1g, ln1b, w_q, b_q, w_kv, b_kv, w_out, b_out,
                            ln2g, ln2b, w_fc, b_fc, w_pr, b_pr,
                            o_ref, kv_scratch, *, num_heads):
    """CLIP ResidualAttentionBlock (self-attention, no mask).

    grid = (batch, query-tile).  K/V of the full sequence are projected once per
    batch element (query-tile 0) into a bf16 VMEM scratch and reused for every
    query tile; all per-tile work is (TQ, ...)."""
    qi = pl.program_id(1)
    L = xfull_ref.shape[1]
    TQ = xq_ref.shape[1]
    C = xq_ref.shape[2]
    hd = C // num_heads
    scale = float(hd) ** -0.5

    @pl.when(qi == 0)
    def _():
        xn_full = _layer_norm(xfull_ref[0], ln1g[...], ln1b[...])
        kv = _mm(xn_full, w_kv[...]) + b_kv[...]            # (L, 2C) f32
        kv_scratch[0] = kv[:, :C].astype(jnp.bfloat16)      # K
        kv_scratch[1] = kv[:, C:].astype(jnp.bfloat16)      # V

    xq = xq_ref[0]                                          # (TQ, C)
    xqn = _layer_norm(xq, ln1g[...], ln1b[...])
    q = (_mm(xqn, w_q[...]) + b_q[...]) * scale             # (TQ, C) f32

    qh = q.reshape(TQ, num_heads, hd).astype(jnp.bfloat16)
    kh = kv_scratch[0].reshape(L, num_heads, hd)
    vh = kv_scratch[1].reshape(L, num_heads, hd)

    s = jnp.einsum('qhd,khd->hqk', qh, kh,
                   preferred_element_type=jnp.float32)      # (H, TQ, L)
    p = _softmax_last(s).astype(jnp.bfloat16)
    attn = jnp.einsum('hqk,khd->qhd', p, vh,
                      preferred_element_type=jnp.float32).reshape(TQ, C)
    attn = _mm(attn, w_out[...]) + b_out[...]

    x1 = xq + attn
    y = _mlp_residual(x1, ln2g[...], ln2b[...],
                      w_fc[...], b_fc[...], w_pr[...], b_pr[...])
    o_ref[0] = y.astype(o_ref.dtype)


def _cross_attn_block_kernel(sos_ref, mem_ref, bias_ref,
                             ln1g, ln1b, w_q, b_q, w_kv, b_kv, w_out, b_out,
                             ln2g, ln2b, w_fc, b_fc, w_pr, b_pr, o_ref,
                             *, num_heads):
    """SAN cross_attn_layer: cross attention with a per-query self bias."""
    sos = sos_ref[0]                  # (K, C)
    mem = mem_ref[0]                  # (Lm, C)
    bias = bias_ref[0]                # (H, K, Lm) f32
    K, C = sos.shape
    Lm = mem.shape[0]
    hd = C // num_heads
    scale = float(hd) ** -0.5

    qx = _layer_norm(sos, ln1g[...], ln1b[...])
    kx = _layer_norm(mem, ln1g[...], ln1b[...])

    q = (_mm(qx, w_q[...]) + b_q[...]) * scale              # (K, C)  f32
    kv = _mm(kx, w_kv[...]) + b_kv[...]                     # (Lm, 2C) f32
    kv_self = _mm(qx, w_kv[...]) + b_kv[...]                # (K, 2C)  f32 (self K/V from queries)

    qh = q.reshape(K, num_heads, hd)
    kh = kv[:, :C].reshape(Lm, num_heads, hd).astype(jnp.bfloat16)
    vh = kv[:, C:].reshape(Lm, num_heads, hd).astype(jnp.bfloat16)
    qkh = kv_self[:, :C].reshape(K, num_heads, hd)
    qvh = kv_self[:, C:].reshape(K, num_heads, hd)

    s = jnp.einsum('qhd,khd->hqk', qh.astype(jnp.bfloat16), kh,
                   preferred_element_type=jnp.float32) + bias          # (H, K, Lm)
    # self logit of each query token (no bias), kept separate -> no (K, Lm+1) concat
    self_logit = jnp.sum(qh * qkh, axis=-1)                            # (K, H) f32
    self_w = jnp.transpose(self_logit)[..., None]                      # (H, K, 1)

    m = jnp.maximum(jnp.max(s, axis=-1, keepdims=True), self_w)
    e = jnp.exp(s - m)                                                 # (H, K, Lm)
    es = jnp.exp(self_w - m)                                           # (H, K, 1)
    inv = pl.reciprocal(jnp.sum(e, axis=-1, keepdims=True) + es, approx=True)
    p_mem = (e * inv).astype(jnp.bfloat16)
    p_self = es * inv                                                  # (H, K, 1)

    attn = jnp.einsum('hqk,khd->qhd', p_mem, vh,
                      preferred_element_type=jnp.float32)              # (K, H, hd)
    attn = attn + jnp.transpose(p_self[..., 0])[..., None] * qvh
    attn = attn.reshape(K, C)
    attn = _mm(attn, w_out[...]) + b_out[...]

    x1 = sos + attn
    y = _mlp_residual(x1, ln2g[...], ln2b[...],
                      w_fc[...], b_fc[...], w_pr[...], b_pr[...])
    o_ref[0] = y.astype(o_ref.dtype)


def _head_kernel(x_ref, lng, lnb, proj_ref, o_ref, *, normalize):
    """ln_post + projection (+ optional L2 normalize)."""
    x = x_ref[0]                                                 # (K, C)
    xn = _layer_norm(x, lng[...], lnb[...])
    y = _mm(xn, proj_ref[...])
    if normalize:
        ssq = jnp.sum(y * y, axis=-1, keepdims=True)
        y = y * jax.lax.rsqrt(jnp.maximum(ssq, 1e-24))
    o_ref[0] = y.astype(o_ref.dtype)


# ----------------------------- pallas_call wrappers ---------------------------

def _weight_list(p):
    return [p["ln1_g"], p["ln1_b"], p["w_q"], p["b_q"], p["w_kv"], p["b_kv"],
            p["w_out"], p["b_out"], p["ln2_g"], p["ln2_b"],
            p["w_fc"], p["b_fc"], p["w_proj"], p["b_proj"]]


def _weight_specs(ws):
    # all weights are 2-D, block == full array, constant index map (resident across grid)
    # NOTE: could additionally use pipeline_mode=pl.Buffered(1) to avoid double-buffering
    # the constant weight blocks on VMEM-tight chips (v7x).
    for w in ws:
        assert w.ndim == 2
    return [pl.BlockSpec(w.shape, lambda *_: (0, 0)) for w in ws]


def _choose_q_tile(L, max_tile=256):
    # Block last-two dims must be multiples of 8 or the full extent.
    if L <= max_tile:
        return L
    return max_tile


def self_attn_block(x, p, num_heads):
    N, L, C = x.shape
    ws = _weight_list(p)
    tq = _choose_q_tile(L)
    qt = (L + tq - 1) // tq
    return pl.pallas_call(
        functools.partial(_self_attn_block_kernel, num_heads=num_heads),
        out_shape=jax.ShapeDtypeStruct((N, L, C), x.dtype),
        grid=(N, qt),
        in_specs=[pl.BlockSpec((1, tq, C), lambda b, q: (b, q, 0)),   # query tile
                  pl.BlockSpec((1, L, C), lambda b, q: (b, 0, 0))]    # full seq (resident per b)
                 + _weight_specs(ws),
        out_specs=pl.BlockSpec((1, tq, C), lambda b, q: (b, q, 0)),
        scratch_shapes=[pltpu.VMEM((2, L, C), jnp.bfloat16)],         # projected K/V
        compiler_params=pltpu.CompilerParams(
            dimension_semantics=("parallel", "arbitrary"),
            vmem_limit_bytes=_VMEM_LIMIT),
    )(x, x, *ws)


def cross_attn_block(sos, mem, bias, p, num_heads):
    N, K, C = sos.shape
    _, Lm, _ = mem.shape
    ws = _weight_list(p)
    return pl.pallas_call(
        functools.partial(_cross_attn_block_kernel, num_heads=num_heads),
        out_shape=jax.ShapeDtypeStruct((N, K, C), sos.dtype),
        grid=(N,),
        in_specs=[pl.BlockSpec((1, K, C), lambda b: (b, 0, 0)),
                  pl.BlockSpec((1, Lm, C), lambda b: (b, 0, 0)),
                  pl.BlockSpec((1, num_heads, K, Lm), lambda b: (b, 0, 0, 0))]
                 + _weight_specs(ws),
        out_specs=pl.BlockSpec((1, K, C), lambda b: (b, 0, 0)),
        compiler_params=pltpu.CompilerParams(
            dimension_semantics=("parallel",),
            vmem_limit_bytes=_VMEM_LIMIT),
    )(sos, mem, bias, *ws)


def head_forward(x, ln_g, ln_b, proj, normalize):
    N, K, C = x.shape
    D = proj.shape[1]
    return pl.pallas_call(
        functools.partial(_head_kernel, normalize=normalize),
        out_shape=jax.ShapeDtypeStruct((N, K, D), x.dtype),
        grid=(N,),
        in_specs=[pl.BlockSpec((1, K, C), lambda b: (b, 0, 0)),
                  pl.BlockSpec(ln_g.shape, lambda b: (0, 0)),
                  pl.BlockSpec(ln_b.shape, lambda b: (0, 0)),
                  pl.BlockSpec(proj.shape, lambda b: (0, 0))],
        out_specs=pl.BlockSpec((1, K, D), lambda b: (b, 0, 0)),
        compiler_params=pltpu.CompilerParams(
            dimension_semantics=("parallel",),
            vmem_limit_bytes=_VMEM_LIMIT),
    )(x, ln_g, ln_b, proj)


# ----------------------------- glue (plain JAX) -------------------------------

def _bilinear_matrix(in_size, out_size):
    """PyTorch F.interpolate(mode='bilinear', align_corners=False, antialias=False)
    expressed as an (out, in) interpolation matrix."""
    m = np.zeros((out_size, in_size), np.float32)
    scale = in_size / out_size
    for i in range(out_size):
        src = max((i + 0.5) * scale - 0.5, 0.0)
        i0 = min(int(np.floor(src)), in_size - 1)
        i1 = min(i0 + 1, in_size - 1)
        w1 = src - i0
        m[i, i0] += 1.0 - w1
        m[i, i1] += w1
    return jnp.asarray(m)


def build_attn_biases(attn_biases, target_hw, true_num_head, num_blocks):
    th, tw = target_hw
    formatted = []
    for ab in attn_biases:
        n, nh_b, ns, hb, wb = ab.shape
        assert nh_b == 1 or nh_b == true_num_head
        wh = _bilinear_matrix(hb, th)                           # (th, hb)
        ww = _bilinear_matrix(wb, tw)                           # (tw, wb)
        abr = ab.reshape(n, nh_b * ns, hb, wb)
        abr = jnp.einsum("Hh,nchw->ncHw", wh, abr)
        abr = jnp.einsum("Ww,ncHw->ncHW", ww, abr)
        abr = abr.reshape(n, nh_b, ns, th, tw)
        if nh_b == 1:
            abr = jnp.broadcast_to(abr, (n, true_num_head, ns, th, tw))
        # kernels consume (N, num_heads, num_sos, H*W)
        formatted.append(abr.reshape(n, true_num_head, ns, th * tw).astype(jnp.float32))
    if len(formatted) == 1:
        formatted = [formatted[0] for _ in range(num_blocks)]
    return formatted


def rec_with_attnbias_forward(features, attn_bias_list, params, cfg, normalize=False):
    # TODO(synk): only sos_token_format == 'cls_token' and cross_attn=True are implemented
    # (learnable/pos_embedding tokens and the masked self-attn path are not).
    cls_token = features["cls_token"]                 # (1, N, C)  (seq-first, like PyTorch)
    pix_feat = features["pix"]                        # (N, C, H, W)
    n, c, h, w = pix_feat.shape

    pix_seq = pix_feat.reshape(n, c, h * w).transpose(2, 0, 1)   # (HW, N, C)
    x = jnp.concatenate([cls_token, pix_seq], axis=0)            # (1+HW, N, C)
    sos = jnp.tile(cls_token, (cfg["num_sos"], 1, 1))            # (K, N, C)

    biases = build_attn_biases(attn_bias_list, (h, w),
                               cfg["num_heads"], cfg["num_blocks"])

    # batch-first layout for the kernels
    x_b = x.transpose(1, 0, 2)        # (N, 1+HW, C)
    sos_b = sos.transpose(1, 0, 2)    # (N, K, C)

    blocks = params["blocks"]
    for i, blk in enumerate(blocks):
        sos_b = cross_attn_block(sos_b, x_b[:, 1:, :], biases[i], blk, cfg["num_heads"])
        if i < len(blocks) - 1:
            x_b = self_attn_block(x_b, blk, cfg["num_heads"])

    # sos_b is already (N, K, C) == sos_token.permute(1, 0, 2)
    return head_forward(sos_b, params["ln_post_g"], params["ln_post_b"],
                        params["proj"], normalize)


# ----------------------------- parameter init ---------------------------------

def init_params(key, C, num_blocks, out_dim):
    def dense(k, din, dout, std=0.02, dtype=jnp.bfloat16):
        return (jax.random.normal(k, (din, dout), jnp.float32) * std).astype(dtype)

    blocks = []
    for i in range(num_blocks):
        k = jax.random.fold_in(key, i)
        ks = jax.random.split(k, 10)
        blocks.append(dict(
            ln1_g=jnp.ones((1, C), jnp.float32),
            ln1_b=jnp.zeros((1, C), jnp.float32),
            # in-projection pre-split into query / key-value halves (bf16 matmul weights)
            w_q=dense(ks[0], C, C),
            b_q=dense(ks[1], 1, C, dtype=jnp.float32),
            w_kv=dense(ks[2], C, 2 * C),
            b_kv=dense(ks[3], 1, 2 * C, dtype=jnp.float32),
            w_out=dense(ks[4], C, C),
            b_out=dense(ks[5], 1, C, dtype=jnp.float32),
            ln2_g=jnp.ones((1, C), jnp.float32),
            ln2_b=jnp.zeros((1, C), jnp.float32),
            w_fc=dense(ks[6], C, 4 * C),
            b_fc=dense(ks[7], 1, 4 * C, dtype=jnp.float32),
            w_proj=dense(ks[8], 4 * C, C),
            b_proj=dense(ks[9], 1, C, dtype=jnp.float32),
        ))
    kh = jax.random.fold_in(key, 1000)
    return dict(
        blocks=blocks,
        ln_post_g=jnp.ones((1, C), jnp.float32),
        ln_post_b=jnp.zeros((1, C), jnp.float32),
        proj=dense(kh, C, out_dim),
    )


# ----------------------------- demo -------------------------------------------

if __name__ == "__main__":
    N, C, NH, H, W = 2, 32, 4, 4, 4          # batch, embed dim, heads, feature H/W
    NUM_SOS, NUM_BLOCKS, OUT_DIM = 2, 2, 16
    HB = WB = 8                               # attention-bias input resolution

    key = jax.random.PRNGKey(0)
    k_cls, k_pix, k_bias, k_par = jax.random.split(key, 4)

    cls_token = jax.random.normal(k_cls, (1, N, C), jnp.float32)
    pix_feat = jax.random.normal(k_pix, (N, C, H, W), jnp.float32)
    attn_bias = jax.random.normal(k_bias, (N, 1, NUM_SOS, HB, WB), jnp.float32)

    params = init_params(k_par, C, NUM_BLOCKS, OUT_DIM)
    cfg = dict(num_heads=NH, num_sos=NUM_SOS, num_blocks=NUM_BLOCKS)

    out = rec_with_attnbias_forward(
        {"cls_token": cls_token, "pix": pix_feat},
        [attn_bias], params, cfg, normalize=False)
    out = jax.block_until_ready(out)

    assert out.shape == (N, NUM_SOS, OUT_DIM), out.shape
    assert bool(jnp.all(jnp.isfinite(out)))
    print("KERNEL_OK")
</pallas_src>

<mosaic_0001>
module attributes {stable_mosaic.version = 11 : i64} {
  func.func @_cross_attn_block_kernel(%arg0: i32, %arg1: memref<1x2x32xf32, #tpu.memory_space<vmem>>, %arg2: memref<1x16x32xf32, #tpu.memory_space<vmem>>, %arg3: memref<1x4x2x16xf32, #tpu.memory_space<vmem>>, %arg4: memref<1x32xf32, #tpu.memory_space<vmem>>, %arg5: memref<1x32xf32, #tpu.memory_space<vmem>>, %arg6: memref<32x32xbf16, #tpu.memory_space<vmem>>, %arg7: memref<1x32xf32, #tpu.memory_space<vmem>>, %arg8: memref<32x64xbf16, #tpu.memory_space<vmem>>, %arg9: memref<1x64xf32, #tpu.memory_space<vmem>>, %arg10: memref<32x32xbf16, #tpu.memory_space<vmem>>, %arg11: memref<1x32xf32, #tpu.memory_space<vmem>>, %arg12: memref<1x32xf32, #tpu.memory_space<vmem>>, %arg13: memref<1x32xf32, #tpu.memory_space<vmem>>, %arg14: memref<32x128xbf16, #tpu.memory_space<vmem>>, %arg15: memref<1x128xf32, #tpu.memory_space<vmem>>, %arg16: memref<128x32xbf16, #tpu.memory_space<vmem>>, %arg17: memref<1x32xf32, #tpu.memory_space<vmem>>, %arg18: memref<1x2x32xf32, #tpu.memory_space<vmem>>) attributes {dimension_semantics = [#tpu.dimension_semantics<parallel>], iteration_bounds = array<i64: 2>, scalar_prefetch = 0 : i64, scratch_operands = 0 : i64, tpu.core_type = #tpu.core_type<tc>, window_params = [{transform_indices = @transform_0, window_bounds = array<i64: 1, 2, 32>}, {transform_indices = @transform_1, window_bounds = array<i64: 1, 16, 32>}, {transform_indices = @transform_2, window_bounds = array<i64: 1, 4, 2, 16>}, {pipeline_mode = #tpu.pipeline_mode<synchronous>, transform_indices = @transform_3, window_bounds = array<i64: 1, 32>}, {pipeline_mode = #tpu.pipeline_mode<synchronous>, transform_indices = @transform_4, window_bounds = array<i64: 1, 32>}, {pipeline_mode = #tpu.pipeline_mode<synchronous>, transform_indices = @transform_5, window_bounds = array<i64: 32, 32>}, {pipeline_mode = #tpu.pipeline_mode<synchronous>, transform_indices = @transform_6, window_bounds = array<i64: 1, 32>}, {pipeline_mode = #tpu.pipeline_mode<synchronous>, transform_indices = @transform_7, window_bounds = array<i64: 32, 64>}, {pipeline_mode = #tpu.pipeline_mode<synchronous>, transform_indices = @transform_8, window_bounds = array<i64: 1, 64>}, {pipeline_mode = #tpu.pipeline_mode<synchronous>, transform_indices = @transform_9, window_bounds = array<i64: 32, 32>}, {pipeline_mode = #tpu.pipeline_mode<synchronous>, transform_indices = @transform_10, window_bounds = array<i64: 1, 32>}, {pipeline_mode = #tpu.pipeline_mode<synchronous>, transform_indices = @transform_11, window_bounds = array<i64: 1, 32>}, {pipeline_mode = #tpu.pipeline_mode<synchronous>, transform_indices = @transform_12, window_bounds = array<i64: 1, 32>}, {pipeline_mode = #tpu.pipeline_mode<synchronous>, transform_indices = @transform_13, window_bounds = array<i64: 32, 128>}, {pipeline_mode = #tpu.pipeline_mode<synchronous>, transform_indices = @transform_14, window_bounds = array<i64: 1, 128>}, {pipeline_mode = #tpu.pipeline_mode<synchronous>, transform_indices = @transform_15, window_bounds = array<i64: 128, 32>}, {pipeline_mode = #tpu.pipeline_mode<synchronous>, transform_indices = @transform_16, window_bounds = array<i64: 1, 32>}, {transform_indices = @transform_17, window_bounds = array<i64: 1, 2, 32>}]} {
    %c0 = arith.constant 0 : index
    %c0_0 = arith.constant 0 : index
    %c0_1 = arith.constant 0 : index
    %0 = vector.load %arg1[%c0, %c0_0, %c0_1] : memref<1x2x32xf32, #tpu.memory_space<vmem>>, vector<1x2x32xf32>
    %1 = vector.shape_cast %0 : vector<1x2x32xf32> to vector<2x32xf32>
    %c0_2 = arith.constant 0 : index
    %c0_3 = arith.constant 0 : index
    %c0_4 = arith.constant 0 : index
    %2 = vector.load %arg2[%c0_2, %c0_3, %c0_4] : memref<1x16x32xf32, #tpu.memory_space<vmem>>, vector<1x16x32xf32>
    %3 = vector.shape_cast %2 : vector<1x16x32xf32> to vector<16x32xf32>
    %c0_5 = arith.constant 0 : index
    %c0_6 = arith.constant 0 : index
    %c0_7 = arith.constant 0 : index
    %c0_8 = arith.constant 0 : index
    %4 = vector.load %arg3[%c0_5, %c0_6, %c0_7, %c0_8] : memref<1x4x2x16xf32, #tpu.memory_space<vmem>>, vector<1x4x2x16xf32>
    %5 = vector.shape_cast %4 : vector<1x4x2x16xf32> to vector<4x2x16xf32>
    %c0_9 = arith.constant 0 : index
    %c0_10 = arith.constant 0 : index
    %6 = vector.load %arg4[%c0_9, %c0_10] : memref<1x32xf32, #tpu.memory_space<vmem>>, vector<1x32xf32>
    %c0_11 = arith.constant 0 : index
    %c0_12 = arith.constant 0 : index
    %7 = vector.load %arg5[%c0_11, %c0_12] : memref<1x32xf32, #tpu.memory_space<vmem>>, vector<1x32xf32>
    %cst = arith.constant dense<0.000000e+00> : vector<2xf32>
    %8 = vector.multi_reduction <add>, %1, %cst [1] : vector<2x32xf32> to vector<2xf32>
    %9 = vector.shape_cast %8 : vector<2xf32> to vector<2x1xf32>
    %cst_13 = arith.constant 3.200000e+01 : f32
    %10 = vector.broadcast %cst_13 : f32 to vector<2x1xf32>
    %11 = arith.divf %9, %10 : vector<2x1xf32>
    %12 = vector.broadcast %11 : vector<2x1xf32> to vector<2x32xf32>
    %13 = arith.subf %1, %12 : vector<2x32xf32>
    %14 = arith.mulf %13, %13 : vector<2x32xf32>
    %cst_14 = arith.constant dense<0.000000e+00> : vector<2xf32>
    %15 = vector.multi_reduction <add>, %14, %cst_14 [1] : vector<2x32xf32> to vector<2xf32>
    %16 = vector.shape_cast %15 : vector<2xf32> to vector<2x1xf32>
    %cst_15 = arith.constant 3.200000e+01 : f32
    %17 = vector.broadcast %cst_15 : f32 to vector<2x1xf32>
    %18 = arith.divf %16, %17 : vector<2x1xf32>
    %19 = vector.broadcast %11 : vector<2x1xf32> to vector<2x32xf32>
    %20 = arith.subf %1, %19 : vector<2x32xf32>
    %cst_16 = arith.constant 9.99999974E-6 : f32
    %21 = vector.broadcast %cst_16 : f32 to vector<2x1xf32>
    %22 = arith.addf %18, %21 : vector<2x1xf32>
    %23 = math.rsqrt %22 : vector<2x1xf32>
    %24 = vector.broadcast %23 : vector<2x1xf32> to vector<2x32xf32>
    %25 = arith.mulf %20, %24 : vector<2x32xf32>
    %26 = vector.broadcast %6 : vector<1x32xf32> to vector<2x32xf32>
    %27 = arith.mulf %25, %26 : vector<2x32xf32>
    %28 = vector.broadcast %7 : vector<1x32xf32> to vector<2x32xf32>
    %29 = arith.addf %27, %28 : vector<2x32xf32>
    %c0_17 = arith.constant 0 : index
    %c0_18 = arith.constant 0 : index
    %30 = vector.load %arg4[%c0_17, %c0_18] : memref<1x32xf32, #tpu.memory_space<vmem>>, vector<1x32xf32>
    %c0_19 = arith.constant 0 : index
    %c0_20 = arith.constant 0 : index
    %31 = vector.load %arg5[%c0_19, %c0_20] : memref<1x32xf32, #tpu.memory_space<vmem>>, vector<1x32xf32>
    %cst_21 = arith.constant dense<0.000000e+00> : vector<16xf32>
    %32 = vector.multi_reduction <add>, %3, %cst_21 [1] : vector<16x32xf32> to vector<16xf32>
    %33 = vector.shape_cast %32 : vector<16xf32> to vector<16x1xf32>
    %cst_22 = arith.constant 3.200000e+01 : f32
    %34 = vector.broadcast %cst_22 : f32 to vector<16x1xf32>
    %35 = arith.divf %33, %34 : vector<16x1xf32>
    %36 = vector.broadcast %35 : vector<16x1xf32> to vector<16x32xf32>
    %37 = arith.subf %3, %36 : vector<16x32xf32>
    %38 = arith.mulf %37, %37 : vector<16x32xf32>
    %cst_23 = arith.constant dense<0.000000e+00> : vector<16xf32>
    %39 = vector.multi_reduction <add>, %38, %cst_23 [1] : vector<16x32xf32> to vector<16xf32>
    %40 = vector.shape_cast %39 : vector<16xf32> to vector<16x1xf32>
    %cst_24 = arith.constant 3.200000e+01 : f32
    %41 = vector.broadcast %cst_24 : f32 to vector<16x1xf32>
    %42 = arith.divf %40, %41 : vector<16x1xf32>
    %43 = vector.broadcast %35 : vector<16x1xf32> to vector<16x32xf32>
    %44 = arith.subf %3, %43 : vector<16x32xf32>
    %cst_25 = arith.constant 9.99999974E-6 : f32
    %45 = vector.broadcast %cst_25 : f32 to vector<16x1xf32>
    %46 = arith.addf %42, %45 : vector<16x1xf32>
    %47 = math.rsqrt %46 : vector<16x1xf32>
    %48 = vector.broadcast %47 : vector<16x1xf32> to vector<16x32xf32>
    %49 = arith.mulf %44, %48 : vector<16x32xf32>
    %50 = vector.broadcast %30 : vector<1x32xf32> to vector<16x32xf32>
    %51 = arith.mulf %49, %50 : vector<16x32xf32>
    %52 = vector.broadcast %31 : vector<1x32xf32> to vector<16x32xf32>
    %53 = arith.addf %51, %52 : vector<16x32xf32>
    %c0_26 = arith.constant 0 : index
    %c0_27 = arith.constant 0 : index
    %54 = vector.load %arg6[%c0_26, %c0_27] : memref<32x32xbf16, #tpu.memory_space<vmem>>, vector<32x32xbf16>
    %55 = arith.truncf %29 : vector<2x32xf32> to vector<2x32xbf16>
    %cst_28 = arith.constant dense<0.000000e+00> : vector<2x32xf32>
    %56 = tpu.matmul %55, %54, %cst_28 {dimension_numbers = #tpu.dot_dimension_numbers<[1], [0], [0], [1], [0, 0, 1, 1], [], []>} : vector<2x32xbf16>, vector<32x32xbf16>, vector<2x32xf32> -> vector<2x32xf32>
    %c0_29 = arith.constant 0 : index
    %c0_30 = arith.constant 0 : index
    %57 = vector.load %arg7[%c0_29, %c0_30] : memref<1x32xf32, #tpu.memory_space<vmem>>, vector<1x32xf32>
    %58 = vector.broadcast %57 : vector<1x32xf32> to vector<2x32xf32>
    %59 = arith.addf %56, %58 : vector<2x32xf32>
    %cst_31 = arith.constant 0.353553385 : f32
    %60 = vector.broadcast %cst_31 : f32 to vector<2x32xf32>
    %61 = arith.mulf %59, %60 : vector<2x32xf32>
    %c0_32 = arith.constant 0 : index
    %c0_33 = arith.constant 0 : index
    %62 = vector.load %arg8[%c0_32, %c0_33] : memref<32x64xbf16, #tpu.memory_space<vmem>>, vector<32x64xbf16>
    %63 = arith.truncf %53 : vector<16x32xf32> to vector<16x32xbf16>
    %cst_34 = arith.constant dense<0.000000e+00> : vector<16x64xf32>
    %64 = tpu.matmul %63, %62, %cst_34 {dimension_numbers = #tpu.dot_dimension_numbers<[1], [0], [0], [1], [0, 0, 1, 1], [], []>} : vector<16x32xbf16>, vector<32x64xbf16>, vector<16x64xf32> -> vector<16x64xf32>
    %c0_35 = arith.constant 0 : index
    %c0_36 = arith.constant 0 : index
    %65 = vector.load %arg9[%c0_35, %c0_36] : memref<1x64xf32, #tpu.memory_space<vmem>>, vector<1x64xf32>
    %66 = vector.broadcast %65 : vector<1x64xf32> to vector<16x64xf32>
    %67 = arith.addf %64, %66 : vector<16x64xf32>
    %c0_37 = arith.constant 0 : index
    %c0_38 = arith.constant 0 : index
    %68 = vector.load %arg8[%c0_37, %c0_38] : memref<32x64xbf16, #tpu.memory_space<vmem>>, vector<32x64xbf16>
    %69 = arith.truncf %29 : vector<2x32xf32> to vector<2x32xbf16>
    %cst_39 = arith.constant dense<0.000000e+00> : vector<2x64xf32>
    %70 = tpu.matmul %69, %68, %cst_39 {dimension_numbers = #tpu.dot_dimension_numbers<[1], [0], [0], [1], [0, 0, 1, 1], [], []>} : vector<2x32xbf16>, vector<32x64xbf16>, vector<2x64xf32> -> vector<2x64xf32>
    %c0_40 = arith.constant 0 : index
    %c0_41 = arith.constant 0 : index
    %71 = vector.load %arg9[%c0_40, %c0_41] : memref<1x64xf32, #tpu.memory_space<vmem>>, vector<1x64xf32>
    %72 = vector.broadcast %71 : vector<1x64xf32> to vector<2x64xf32>
    %73 = arith.addf %70, %72 : vector<2x64xf32>
    %74 = vector.shape_cast %61 : vector<2x32xf32> to vector<2x4x8xf32>
    %75 = vector.extract_strided_slice %67 {offsets = [0, 0], sizes = [16, 32], strides = [1, 1]} : vector<16x64xf32> to vector<16x32xf32>
    %76 = vector.shape_cast %75 : vector<16x32xf32> to vector<16x4x8xf32>
    %77 = arith.truncf %76 : vector<16x4x8xf32> to vector<16x4x8xbf16>
    %78 = vector.extract_strided_slice %67 {offsets = [0, 32], sizes = [16, 32], strides = [1, 1]} : vector<16x64xf32> to vector<16x32xf32>
    %79 = vector.shape_cast %78 : vector<16x32xf32> to vector<16x4x8xf32>
    %80 = arith.truncf %79 : vector<16x4x8xf32> to vector<16x4x8xbf16>
    %81 = vector.extract_strided_slice %73 {offsets = [0, 0], sizes = [2, 32], strides = [1, 1]} : vector<2x64xf32> to vector<2x32xf32>
    %82 = vector.shape_cast %81 : vector<2x32xf32> to vector<2x4x8xf32>
    %83 = vector.extract_strided_slice %73 {offsets = [0, 32], sizes = [2, 32], strides = [1, 1]} : vector<2x64xf32> to vector<2x32xf32>
    %84 = vector.shape_cast %83 : vector<2x32xf32> to vector<2x4x8xf32>
    %85 = arith.truncf %74 : vector<2x4x8xf32> to vector<2x4x8xbf16>
    "tpu.trace_start"() <{level = 10 : i32, message = "qhd,khd->hqk"}> : () -> ()
    %cst_42 = arith.constant dense<0.000000e+00> : vector<4x2x16xf32>
    %86 = tpu.matmul %85, %77, %cst_42 {dimension_numbers = #tpu.dot_dimension_numbers<[2], [2], [0], [0], [0, 1, 0, 0, 1, 0], [1], [1]>} : vector<2x4x8xbf16>, vector<16x4x8xbf16>, vector<4x2x16xf32> -> vector<4x2x16xf32>
    "tpu.trace_stop"() : () -> ()
    %87 = arith.addf %86, %5 : vector<4x2x16xf32>
    %88 = arith.mulf %74, %82 : vector<2x4x8xf32>
    %cst_43 = arith.constant dense<0.000000e+00> : vector<2x4xf32>
    %89 = vector.multi_reduction <add>, %88, %cst_43 [2] : vector<2x4x8xf32> to vector<2x4xf32>
    %90 = tpu.transpose %89, [1, 0] : vector<2x4xf32> -> vector<4x2xf32>
    %91 = vector.shape_cast %90 : vector<4x2xf32> to vector<4x2x1xf32>
    %cst_44 = arith.constant dense<0xFF800000> : vector<4x2xf32>
    %92 = vector.multi_reduction <maximumf>, %87, %cst_44 [2] : vector<4x2x16xf32> to vector<4x2xf32>
    %93 = vector.shape_cast %92 : vector<4x2xf32> to vector<4x2x1xf32>
    %94 = arith.maximumf %93, %91 : vector<4x2x1xf32>
    %95 = vector.broadcast %94 : vector<4x2x1xf32> to vector<4x2x16xf32>
    %96 = arith.subf %87, %95 : vector<4x2x16xf32>
    %97 = math.exp %96 : vector<4x2x16xf32>
    %98 = arith.subf %91, %94 : vector<4x2x1xf32>
    %99 = math.exp %98 : vector<4x2x1xf32>
    %cst_45 = arith.constant dense<0.000000e+00> : vector<4x2xf32>
    %100 = vector.multi_reduction <add>, %97, %cst_45 [2] : vector<4x2x16xf32> to vector<4x2xf32>
    %101 = vector.shape_cast %100 : vector<4x2xf32> to vector<4x2x1xf32>
    %102 = arith.addf %101, %99 : vector<4x2x1xf32>
    %103 = tpu.reciprocal %102 {approx = true} : vector<4x2x1xf32> -> vector<4x2x1xf32>
    %104 = vector.broadcast %103 : vector<4x2x1xf32> to vector<4x2x16xf32>
    %105 = arith.mulf %97, %104 : vector<4x2x16xf32>
    %106 = arith.truncf %105 : vector<4x2x16xf32> to vector<4x2x16xbf16>
    %107 = arith.mulf %99, %103 : vector<4x2x1xf32>
    "tpu.trace_start"() <{level = 10 : i32, message = "hqk,khd->qhd"}> : () -> ()
    %cst_46 = arith.constant dense<0.000000e+00> : vector<4x8x2xf32>
    %108 = tpu.matmul %80, %106, %cst_46 {dimension_numbers = #tpu.dot_dimension_numbers<[0], [2], [2], [1], [0, 1, 0, 2, 1, 1], [1], [0]>} : vector<16x4x8xbf16>, vector<4x2x16xbf16>, vector<4x8x2xf32> -> vector<4x8x2xf32>
    %109 = tpu.transpose %108, [2, 0, 1] : vector<4x8x2xf32> -> vector<2x4x8xf32>
    "tpu.trace_stop"() : () -> ()
    %110 = vector.shape_cast %107 : vector<4x2x1xf32> to vector<4x2xf32>
    %111 = tpu.transpose %110, [1, 0] : vector<4x2xf32> -> vector<2x4xf32>
    %112 = vector.shape_cast %111 : vector<2x4xf32> to vector<2x4x1xf32>
    %113 = vector.broadcast %112 : vector<2x4x1xf32> to vector<2x4x8xf32>
    %114 = arith.mulf %113, %84 : vector<2x4x8xf32>
    %115 = arith.addf %109, %114 : vector<2x4x8xf32>
    %116 = vector.shape_cast %115 : vector<2x4x8xf32> to vector<2x32xf32>
    %c0_47 = arith.constant 0 : index
    %c0_48 = arith.constant 0 : index
    %117 = vector.load %arg10[%c0_47, %c0_48] : memref<32x32xbf16, #tpu.memory_space<vmem>>, vector<32x32xbf16>
    %118 = arith.truncf %116 : vector<2x32xf32> to vector<2x32xbf16>
    %cst_49 = arith.constant dense<0.000000e+00> : vector<2x32xf32>
    %119 = tpu.matmul %118, %117, %cst_49 {dimension_numbers = #tpu.dot_dimension_numbers<[1], [0], [0], [1], [0, 0, 1, 1], [], []>} : vector<2x32xbf16>, vector<32x32xbf16>, vector<2x32xf32> -> vector<2x32xf32>
    %c0_50 = arith.constant 0 : index
    %c0_51 = arith.constant 0 : index
    %120 = vector.load %arg11[%c0_50, %c0_51] : memref<1x32xf32, #tpu.memory_space<vmem>>, vector<1x32xf32>
    %121 = vector.broadcast %120 : vector<1x32xf32> to vector<2x32xf32>
    %122 = arith.addf %119, %121 : vector<2x32xf32>
    %123 = arith.addf %1, %122 : vector<2x32xf32>
    %c0_52 = arith.constant 0 : index
    %c0_53 = arith.constant 0 : index
    %124 = vector.load %arg12[%c0_52, %c0_53] : memref<1x32xf32, #tpu.memory_space<vmem>>, vector<1x32xf32>
    %c0_54 = arith.constant 0 : index
    %c0_55 = arith.constant 0 : index
    %125 = vector.load %arg13[%c0_54, %c0_55] : memref<1x32xf32, #tpu.memory_space<vmem>>, vector<1x32xf32>
    %c0_56 = arith.constant 0 : index
    %c0_57 = arith.constant 0 : index
    %126 = vector.load %arg14[%c0_56, %c0_57] : memref<32x128xbf16, #tpu.memory_space<vmem>>, vector<32x128xbf16>
    %c0_58 = arith.constant 0 : index
    %c0_59 = arith.constant 0 : index
    %127 = vector.load %arg15[%c0_58, %c0_59] : memref<1x128xf32, #tpu.memory_space<vmem>>, vector<1x128xf32>
    %c0_60 = arith.constant 0 : index
    %c0_61 = arith.constant 0 : index
    %128 = vector.load %arg16[%c0_60, %c0_61] : memref<128x32xbf16, #tpu.memory_space<vmem>>, vector<128x32xbf16>
    %c0_62 = arith.constant 0 : index
    %c0_63 = arith.constant 0 : index
    %129 = vector.load %arg17[%c0_62, %c0_63] : memref<1x32xf32, #tpu.memory_space<vmem>>, vector<1x32xf32>
    %cst_64 = arith.constant dense<0.000000e+00> : vector<2xf32>
    %130 = vector.multi_reduction <add>, %123, %cst_64 [1] : vector<2x32xf32> to vector<2xf32>
    %131 = vector.shape_cast %130 : vector<2xf32> to vector<2x1xf32>
    %cst_65 = arith.constant 3.200000e+01 : f32
    %132 = vector.broadcast %cst_65 : f32 to vector<2x1xf32>
    %133 = arith.divf %131, %132 : vector<2x1xf32>
    %134 = vector.broadcast %133 : vector<2x1xf32> to vector<2x32xf32>
    %135 = arith.subf %123, %134 : vector<2x32xf32>
    %136 = arith.mulf %135, %135 : vector<2x32xf32>
    %cst_66 = arith.constant dense<0.000000e+00> : vector<2xf32>
    %137 = vector.multi_reduction <add>, %136, %cst_66 [1] : vector<2x32xf32> to vector<2xf32>
    %138 = vector.shape_cast %137 : vector<2xf32> to vector<2x1xf32>
    %cst_67 = arith.constant 3.200000e+01 : f32
    %139 = vector.broadcast %cst_67 : f32 to vector<2x1xf32>
    %140 = arith.divf %138, %139 : vector<2x1xf32>
    %141 = vector.broadcast %133 : vector<2x1xf32> to vector<2x32xf32>
    %142 = arith.subf %123, %141 : vector<2x32xf32>
    %cst_68 = arith.constant 9.99999974E-6 : f32
    %143 = vector.broadcast %cst_68 : f32 to vector<2x1xf32>
    %144 = arith.addf %140, %143 : vector<2x1xf32>
    %145 = math.rsqrt %144 : vector<2x1xf32>
    %146 = vector.broadcast %145 : vector<2x1xf32> to vector<2x32xf32>
    %147 = arith.mulf %142, %146 : vector<2x32xf32>
    %148 = vector.broadcast %124 : vector<1x32xf32> to vector<2x32xf32>
    %149 = arith.mulf %147, %148 : vector<2x32xf32>
    %150 = vector.broadcast %125 : vector<1x32xf32> to vector<2x32xf32>
    %151 = arith.addf %149, %150 : vector<2x32xf32>
    %152 = arith.truncf %151 : vector<2x32xf32> to vector<2x32xbf16>
    %cst_69 = arith.constant dense<0.000000e+00> : vector<2x128xf32>
    %153 = tpu.matmul %152, %126, %cst_69 {dimension_numbers = #tpu.dot_dimension_numbers<[1], [0], [0], [1], [0, 0, 1, 1], [], []>} : vector<2x32xbf16>, vector<32x128xbf16>, vector<2x128xf32> -> vector<2x128xf32>
    %154 = vector.broadcast %127 : vector<1x128xf32> to vector<2x128xf32>
    %155 = arith.addf %153, %154 : vector<2x128xf32>
    %cst_70 = arith.constant 1.702000e+00 : f32
    %156 = vector.broadcast %cst_70 : f32 to vector<2x128xf32>
    %157 = arith.mulf %156, %155 : vector<2x128xf32>
    %158 = arith.negf %157 : vector<2x128xf32>
    %159 = math.exp %158 : vector<2x128xf32>
    %cst_71 = arith.constant 1.000000e+00 : f32
    %160 = vector.broadcast %cst_71 : f32 to vector<2x128xf32>
    %161 = arith.addf %160, %159 : vector<2x128xf32>
    %162 = arith.divf %160, %161 : vector<2x128xf32>
    %163 = arith.mulf %155, %162 : vector<2x128xf32>
    %164 = arith.truncf %163 : vector<2x128xf32> to vector<2x128xbf16>
    %cst_72 = arith.constant dense<0.000000e+00> : vector<2x32xf32>
    %165 = tpu.matmul %164, %128, %cst_72 {dimension_numbers = #tpu.dot_dimension_numbers<[1], [0], [0], [1], [0, 0, 1, 1], [], []>} : vector<2x128xbf16>, vector<128x32xbf16>, vector<2x32xf32> -> vector<2x32xf32>
    %166 = arith.addf %123, %165 : vector<2x32xf32>
    %167 = vector.broadcast %129 : vector<1x32xf32> to vector<2x32xf32>
    %168 = arith.addf %166, %167 : vector<2x32xf32>
    %c0_73 = arith.constant 0 : index
    %c0_74 = arith.constant 0 : index
    %c0_75 = arith.constant 0 : index
    %169 = vector.load %arg18[%c0_73, %c0_74, %c0_75] : memref<1x2x32xf32, #tpu.memory_space<vmem>>, vector<1x2x32xf32>
    %170 = vector.shape_cast %169 : vector<1x2x32xf32> to vector<2x32xf32>
    %171 = vector.shape_cast %168 : vector<2x32xf32> to vector<1x2x32xf32>
    tpu.vector_store %arg18[%c0_73, %c0_74, %c0_75], %171 {strides = array<i32>} : memref<1x2x32xf32, #tpu.memory_space<vmem>>, vector<1x2x32xf32>,
    return
  }
  func.func @transform_0(%arg0: i32) -> (i32, i32, i32) {
    %c0_i32 = arith.constant 0 : i32
    %c0_i32_0 = arith.constant 0 : i32
    %c0_i32_1 = arith.constant 0 : i32
    return %arg0, %c0_i32, %c0_i32_0 : i32, i32, i32
  }
  func.func @transform_1(%arg0: i32) -> (i32, i32, i32) {
    %c0_i32 = arith.constant 0 : i32
    %c0_i32_0 = arith.constant 0 : i32
    %c0_i32_1 = arith.constant 0 : i32
    return %arg0, %c0_i32, %c0_i32_0 : i32, i32, i32
  }
  func.func @transform_2(%arg0: i32) -> (i32, i32, i32, i32) {
    %c0_i32 = arith.constant 0 : i32
    %c0_i32_0 = arith.constant 0 : i32
    %c0_i32_1 = arith.constant 0 : i32
    %c0_i32_2 = arith.constant 0 : i32
    return %arg0, %c0_i32, %c0_i32_0, %c0_i32_1 : i32, i32, i32, i32
  }
  func.func @transform_3(%arg0: i32) -> (i32, i32) {
    %c0_i32 = arith.constant 0 : i32
    %c0_i32_0 = arith.constant 0 : i32
    %c0_i32_1 = arith.constant 0 : i32
    return %c0_i32, %c0_i32_0 : i32, i32
  }
  func.func @transform_4(%arg0: i32) -> (i32, i32) {
    %c0_i32 = arith.constant 0 : i32
    %c0_i32_0 = arith.constant 0 : i32
    %c0_i32_1 = arith.constant 0 : i32
    return %c0_i32, %c0_i32_0 : i32, i32
  }
  func.func @transform_5(%arg0: i32) -> (i32, i32) {
    %c0_i32 = arith.constant 0 : i32
    %c0_i32_0 = arith.constant 0 : i32
    %c0_i32_1 = arith.constant 0 : i32
    return %c0_i32, %c0_i32_0 : i32, i32
  }
  func.func @transform_6(%arg0: i32) -> (i32, i32) {
    %c0_i32 = arith.constant 0 : i32
    %c0_i32_0 = arith.constant 0 : i32
    %c0_i32_1 = arith.constant 0 : i32
    return %c0_i32, %c0_i32_0 : i32, i32
  }
  func.func @transform_7(%arg0: i32) -> (i32, i32) {
    %c0_i32 = arith.constant 0 : i32
    %c0_i32_0 = arith.constant 0 : i32
    %c0_i32_1 = arith.constant 0 : i32
    return %c0_i32, %c0_i32_0 : i32, i32
  }
  func.func @transform_8(%arg0: i32) -> (i32, i32) {
    %c0_i32 = arith.constant 0 : i32
    %c0_i32_0 = arith.constant 0 : i32
    %c0_i32_1 = arith.constant 0 : i32
    return %c0_i32, %c0_i32_0 : i32, i32
  }
  func.func @transform_9(%arg0: i32) -> (i32, i32) {
    %c0_i32 = arith.constant 0 : i32
    %c0_i32_0 = arith.constant 0 : i32
    %c0_i32_1 = arith.constant 0 : i32
    return %c0_i32, %c0_i32_0 : i32, i32
  }
  func.func @transform_10(%arg0: i32) -> (i32, i32) {
    %c0_i32 = arith.constant 0 : i32
    %c0_i32_0 = arith.constant 0 : i32
    %c0_i32_1 = arith.constant 0 : i32
    return %c0_i32, %c0_i32_0 : i32, i32
  }
  func.func @transform_11(%arg0: i32) -> (i32, i32) {
    %c0_i32 = arith.constant 0 : i32
    %c0_i32_0 = arith.constant 0 : i32
    %c0_i32_1 = arith.constant 0 : i32
    return %c0_i32, %c0_i32_0 : i32, i32
  }
  func.func @transform_12(%arg0: i32) -> (i32, i32) {
    %c0_i32 = arith.constant 0 : i32
    %c0_i32_0 = arith.constant 0 : i32
    %c0_i32_1 = arith.constant 0 : i32
    return %c0_i32, %c0_i32_0 : i32, i32
  }
  func.func @transform_13(%arg0: i32) -> (i32, i32) {
    %c0_i32 = arith.constant 0 : i32
    %c0_i32_0 = arith.constant 0 : i32
    %c0_i32_1 = arith.constant 0 : i32
    return %c0_i32, %c0_i32_0 : i32, i32
  }
  func.func @transform_14(%arg0: i32) -> (i32, i32) {
    %c0_i32 = arith.constant 0 : i32
    %c0_i32_0 = arith.constant 0 : i32
    %c0_i32_1 = arith.constant 0 : i32
    return %c0_i32, %c0_i32_0 : i32, i32
  }
  func.func @transform_15(%arg0: i32) -> (i32, i32) {
    %c0_i32 = arith.constant 0 : i32
    %c0_i32_0 = arith.constant 0 : i32
    %c0_i32_1 = arith.constant 0 : i32
    return %c0_i32, %c0_i32_0 : i32, i32
  }
  func.func @transform_16(%arg0: i32) -> (i32, i32) {
    %c0_i32 = arith.constant 0 : i32
    %c0_i32_0 = arith.constant 0 : i32
    %c0_i32_1 = arith.constant 0 : i32
    return %c0_i32, %c0_i32_0 : i32, i32
  }
  func.func @transform_17(%arg0: i32) -> (i32, i32, i32) {
    %c0_i32 = arith.constant 0 : i32
    %c0_i32_0 = arith.constant 0 : i32
    %c0_i32_1 = arith.constant 0 : i32
    return %arg0, %c0_i32, %c0_i32_0 : i32, i32, i32
  }
}

</mosaic_0001>

<llo_original>
// kernel: tpu_custom_call.1
$region0: #{tpu_custom_call.1}
  #allocation0 [shape = 'u32[]', space=smem, size = 0x4, offset = 0x4, fixed_abs, tag = 'smem constant byte address 0x4 - core index']
  #allocation1 [shape = 'u32[144,128]{1,0:T(1,128)}', space=vmem, size = 0x12000, scoped, tag = 'internal scratch']
  %s0 = inlined_call_operand.hbm [shape: f32[2,2,32], index: 0, kind: input, shape index: {}]
  %s1 = inlined_call_operand.hbm [shape: f32[2,16,32], index: 1, kind: input, shape index: {}]
  %s2 = inlined_call_operand.hbm [shape: f32[2,4,2,16], index: 2, kind: input, shape index: {}]
  %s3 = inlined_call_operand.hbm [shape: f32[1,32], index: 3, kind: input, shape index: {}]
  %s4 = inlined_call_operand.hbm [shape: f32[1,32], index: 4, kind: input, shape index: {}]
  %s5 = inlined_call_operand.hbm [shape: bf16[32,32], index: 5, kind: input, shape index: {}]
  %s6 = inlined_call_operand.hbm [shape: f32[1,32], index: 6, kind: input, shape index: {}]
  %s7 = inlined_call_operand.hbm [shape: bf16[32,64], index: 7, kind: input, shape index: {}]
  %s8 = inlined_call_operand.hbm [shape: f32[1,64], index: 8, kind: input, shape index: {}]
  %s9 = inlined_call_operand.hbm [shape: bf16[32,32], index: 9, kind: input, shape index: {}]
  %s10 = inlined_call_operand.hbm [shape: f32[1,32], index: 10, kind: input, shape index: {}]
  %s11 = inlined_call_operand.hbm [shape: f32[1,32], index: 11, kind: input, shape index: {}]
  %s12 = inlined_call_operand.hbm [shape: f32[1,32], index: 12, kind: input, shape index: {}]
  %s13 = inlined_call_operand.hbm [shape: bf16[32,128], index: 13, kind: input, shape index: {}]
  %s14 = inlined_call_operand.hbm [shape: f32[1,128], index: 14, kind: input, shape index: {}]
  %s15 = inlined_call_operand.hbm [shape: bf16[128,32], index: 15, kind: input, shape index: {}]
  %s16 = inlined_call_operand.hbm [shape: f32[1,32], index: 16, kind: input, shape index: {}]
  %s17 = inlined_call_operand.hbm [shape: f32[2,2,32], index: 17, kind: output, shape index: {}]
  %s18 = sld [smem:[#allocation0]]
  $region169: #{tpu_custom_call.1} parent=0
    _
  %s20 = ssub.s32 1, %s18
  %s21 = scalar_select 0, %s20, %s18
  $region1: #{tpu_custom_call.1} parent=0
    #allocation2 [shape = 'u8[2048]{0}', space=vmem, size = 0x800, scoped, tag = 'input window, operand 0']
    #allocation3 [shape = 's32[2]{0}', space=sflag, size = 0x8, scoped, tag = 'scoped memory for tpu_custom_call.1']
    #allocation4 [shape = 's32[2]{0}', space=sflag, size = 0x8, scoped, tag = 'scoped memory for tpu_custom_call.1']
    #allocation5 [shape = 'u8[16384]{0}', space=vmem, size = 0x4000, scoped, tag = 'input window, operand 1']
    #allocation6 [shape = 's32[2]{0}', space=sflag, size = 0x8, scoped, tag = 'scoped memory for tpu_custom_call.1']
    #allocation7 [shape = 'u8[8192]{0}', space=vmem, size = 0x2000, scoped, tag = 'input window, operand 2']
    #allocation8 [shape = 'u8[512]{0}', space=vmem, size = 0x400, scoped, tag = 'input window, operand 3, single buffered']
    #allocation9 [shape = 's32[1]{0}', space=sflag, size = 0x4, scoped, tag = 'scoped memory for tpu_custom_call.1']
    #allocation10 [shape = 'u8[512]{0}', space=vmem, size = 0x400, scoped, tag = 'input window, operand 4, single buffered']
    #allocation11 [shape = 'u8[8192]{0}', space=vmem, size = 0x2000, scoped, tag = 'input window, operand 5, single buffered']
    #allocation12 [shape = 's32[1]{0}', space=sflag, size = 0x4, scoped, tag = 'scoped memory for tpu_custom_call.1']
    #allocation13 [shape = 'u8[512]{0}', space=vmem, size = 0x400, scoped, tag = 'input window, operand 6, single buffered']
    #allocation14 [shape = 'u8[8192]{0}', space=vmem, size = 0x2000, scoped, tag = 'input window, operand 7, single buffered']
    #allocation15 [shape = 's32[1]{0}', space=sflag, size = 0x4, scoped, tag = 'scoped memory for tpu_custom_call.1']
    #allocation16 [shape = 'u8[512]{0}', space=vmem, size = 0x400, scoped, tag = 'input window, operand 8, single buffered']
    #allocation17 [shape = 'u8[8192]{0}', space=vmem, size = 0x2000, scoped, tag = 'input window, operand 9, single buffered']
    #allocation18 [shape = 's32[1]{0}', space=sflag, size = 0x4, scoped, tag = 'scoped memory for tpu_custom_call.1']
    #allocation19 [shape = 'u8[512]{0}', space=vmem, size = 0x400, scoped, tag = 'input window, operand 10, single buffered']
    #allocation20 [shape = 'u8[512]{0}', space=vmem, size = 0x400, scoped, tag = 'input window, operand 11, single buffered']
    #allocation21 [shape = 's32[1]{0}', space=sflag, size = 0x4, scoped, tag = 'scoped memory for tpu_custom_call.1']
    #allocation22 [shape = 'u8[512]{0}', space=vmem, size = 0x400, scoped, tag = 'input window, operand 12, single buffered']
    #allocation23 [shape = 'u8[8192]{0}', space=vmem, size = 0x2000, scoped, tag = 'input window, operand 13, single buffered']
    #allocation24 [shape = 's32[1]{0}', space=sflag, size = 0x4, scoped, tag = 'scoped memory for tpu_custom_call.1']
    #allocation25 [shape = 'u8[512]{0}', space=vmem, size = 0x400, scoped, tag = 'input window, operand 14, single buffered']
    #allocation26 [shape = 'u8[32768]{0}', space=vmem, size = 0x8000, scoped, tag = 'input window, operand 15, single buffered']
    #allocation27 [shape = 's32[1]{0}', space=sflag, size = 0x4, scoped, tag = 'scoped memory for tpu_custom_call.1']
    #allocation28 [shape = 'u8[512]{0}', space=vmem, size = 0x400, scoped, tag = 'input window, operand 16, single buffered']
    #allocation29 [shape = 'u8[2048]{0}', space=vmem, size = 0x800, scoped, tag = 'output window, operand 0']
    %22 = vsyncpa [#allocation3], 0
    %s23 = scalar_lea.sflag [#allocation3], 1
    %24 = vsyncpa %s23, 0
    %25 = vsyncpa [#allocation6], 0
    %s26 = scalar_lea.sflag [#allocation6], 1
    %27 = vsyncpa %s26, 0
    %28 = vsyncpa [#allocation9], 0
    %29 = vsyncpa [#allocation12], 0
    %30 = vsyncpa [#allocation15], 0
    %31 = vsyncpa [#allocation18], 0
    %32 = vsyncpa [#allocation21], 0
    %33 = vsyncpa [#allocation24], 0
    %34 = vsyncpa [#allocation27], 0
    %35 = vsyncpa [#allocation4], 0
    %s36 = scalar_lea.sflag [#allocation4], 1
    %37 = vsyncpa %s36, 0
    loop: start=0, step=1, limit=4
    $region2: #{tpu_custom_call.1} parent=1 // loop_pre_header
      _
    $region3: #{tpu_custom_call.1} parent=1 // loop_header
      %s39 = sphi 0, %s43
      %p40 = scmp.ge.s32.totalorder %s39, 4
      %s49 = sphi 0, %s51
      %s52 = sphi 0, %s49
      %s53 = sphi 0, %s52
      %s69 = sphi 0, %s53
      %s75 = sphi 0, %s77
      %s78 = sphi 0, %s75
      %s79 = sphi 0, %s78
      %s95 = sphi 0, %s79
      %s101 = sphi 0, %s103
      %s104 = sphi 0, %s101
      %s105 = sphi 0, %s104
      %s121 = sphi 0, %s105
      %s125 = sphi 0, %s125
      %s127 = sphi 0, %s125
      %s128 = sphi 0, %s127
      %s142 = sphi 0, %s128
      %s146 = sphi 0, %s146
      %s148 = sphi 0, %s146
      %s149 = sphi 0, %s148
      %s163 = sphi 0, %s149
      %s167 = sphi 0, %s167
      %s169 = sphi 0, %s167
      %s170 = sphi 0, %s169
      %s184 = sphi 0, %s170
      %s188 = sphi 0, %s188
      %s190 = sphi 0, %s188
      %s191 = sphi 0, %s190
      %s205 = sphi 0, %s191
      %s209 = sphi 0, %s209
      %s211 = sphi 0, %s209
      %s212 = sphi 0, %s211
      %s226 = sphi 0, %s212
      %s230 = sphi 0, %s230
      %s232 = sphi 0, %s230
      %s233 = sphi 0, %s232
      %s247 = sphi 0, %s233
      %s251 = sphi 0, %s251
      %s253 = sphi 0, %s251
      %s254 = sphi 0, %s253
      %s268 = sphi 0, %s254
      %s272 = sphi 0, %s272
      %s274 = sphi 0, %s272
      %s275 = sphi 0, %s274
      %s289 = sphi 0, %s275
      %s293 = sphi 0, %s293
      %s295 = sphi 0, %s293
      %s296 = sphi 0, %s295
      %s310 = sphi 0, %s296
      %s314 = sphi 0, %s314
      %s316 = sphi 0, %s314
      %s317 = sphi 0, %s316
      %s331 = sphi 0, %s317
      %s335 = sphi 0, %s335
      %s337 = sphi 0, %s335
      %s338 = sphi 0, %s337
      %s352 = sphi 0, %s338
      %s356 = sphi 0, %s356
      %s358 = sphi 0, %s356
      %s359 = sphi 0, %s358
      %s373 = sphi 0, %s359
      %s377 = sphi 0, %s377
      %s379 = sphi 0, %s377
      %s380 = sphi 0, %s379
      %s394 = sphi 0, %s380
      %s398 = sphi 0, %s398
      %s400 = sphi 0, %s398
      %s401 = sphi 0, %s400
      %s415 = sphi 0, %s401
      %s421 = sphi 0, %s423
      %s424 = sphi 0, %s421
      %s425 = sphi 0, %s424
      %s441 = sphi 0, %s425
    $region4: #{tpu_custom_call.1} parent=1 // loop_header_branch
      %42 = sbr.rel (%p40) target = $region8
    $region5: #{tpu_custom_call.1} parent=1 // loop_body
      %s44 = ssub.s32 %s39, 1
      %s45 = ssub.s32 %s39, 2
      %s46 = sadd.s32 %s39, 1
      %s47 = ssub.s32 %s39, %s46
      %p48 = scmp.eq.s32.totalorder %s47, 0
      %s50 = sadd.s32 %s49, 1
      %s51 = scalar_select %p48, %s49, %s50
      %p54 = pneg %p48
      %p55 = scmp.eq.s32.totalorder %s39, 1
      %p56 = por %p54, %p55
      %p57 = scmp.ne.s32.totalorder %s49, %s52
      %p58 = scmp.eq.s32.totalorder %s39, 0
      %p59 = por %p57, %p58
      %p60 = scmp.ne.s32.totalorder %s49, %s52
      %p61 = scmp.eq.s32.totalorder %s44, 1
      %p62 = por %p60, %p61
      %p63 = scmp.ne.s32.totalorder %s52, %s53
      %p64 = scmp.eq.s32.totalorder %s44, 0
      %p65 = por %p63, %p64
      %p66 = scmp.ne.s32.totalorder %s52, %s53
      %p67 = scmp.eq.s32.totalorder %s45, 1
      %p68 = por %p66, %p67
      %p70 = scmp.ne.s32.totalorder %s53, %s69
      %p71 = scmp.eq.s32.totalorder %s45, 0
      %p72 = por %p70, %p71
      %s73 = ssub.s32 %s39, %s46
      %p74 = scmp.eq.s32.totalorder %s73, 0
      %s76 = sadd.s32 %s75, 1
      %s77 = scalar_select %p74, %s75, %s76
      %p80 = pneg %p74
      %p81 = scmp.eq.s32.totalorder %s39, 1
      %p82 = por %p80, %p81
      %p83 = scmp.ne.s32.totalorder %s75, %s78
      %p84 = scmp.eq.s32.totalorder %s39, 0
      %p85 = por %p83, %p84
      %p86 = scmp.ne.s32.totalorder %s75, %s78
      %p87 = scmp.eq.s32.totalorder %s44, 1
      %p88 = por %p86, %p87
      %p89 = scmp.ne.s32.totalorder %s78, %s79
      %p90 = scmp.eq.s32.totalorder %s44, 0
      %p91 = por %p89, %p90
      %p92 = scmp.ne.s32.totalorder %s78, %s79
      %p93 = scmp.eq.s32.totalorder %s45, 1
      %p94 = por %p92, %p93
      %p96 = scmp.ne.s32.totalorder %s79, %s95
      %p97 = scmp.eq.s32.totalorder %s45, 0
      %p98 = por %p96, %p97
      %s99 = ssub.s32 %s39, %s46
      %p100 = scmp.eq.s32.totalorder %s99, 0
      %s102 = sadd.s32 %s101, 1
      %s103 = scalar_select %p100, %s101, %s102
      %p106 = pneg %p100
      %p107 = scmp.eq.s32.totalorder %s39, 1
      %p108 = por %p106, %p107
      %p109 = scmp.ne.s32.totalorder %s101, %s104
      %p110 = scmp.eq.s32.totalorder %s39, 0
      %p111 = por %p109, %p110
      %p112 = scmp.ne.s32.totalorder %s101, %s104
      %p113 = scmp.eq.s32.totalorder %s44, 1
      %p114 = por %p112, %p113
      %p115 = scmp.ne.s32.totalorder %s104, %s105
      %p116 = scmp.eq.s32.totalorder %s44, 0
      %p117 = por %p115, %p116
      %p118 = scmp.ne.s32.totalorder %s104, %s105
      %p119 = scmp.eq.s32.totalorder %s45, 1
      %p120 = por %p118, %p119
      %p122 = scmp.ne.s32.totalorder %s105, %s121
      %p123 = scmp.eq.s32.totalorder %s45, 0
      %p124 = por %p122, %p123
      %s126 = sadd.s32 %s125, 1
      %p129 = scmp.eq.s32.totalorder %s39, 1
      %p130 = scmp.ne.s32.totalorder %s125, %s127
      %p131 = scmp.eq.s32.totalorder %s39, 0
      %p132 = por %p130, %p131
      %p133 = scmp.ne.s32.totalorder %s125, %s127
      %p134 = scmp.eq.s32.totalorder %s44, 1
      %p135 = por %p133, %p134
      %p136 = scmp.ne.s32.totalorder %s127, %s128
      %p137 = scmp.eq.s32.totalorder %s44, 0
      %p138 = por %p136, %p137
      %p139 = scmp.ne.s32.totalorder %s127, %s128
      %p140 = scmp.eq.s32.totalorder %s45, 1
      %p141 = por %p139, %p140
      %p143 = scmp.ne.s32.totalorder %s128, %s142
      %p144 = scmp.eq.s32.totalorder %s45, 0
      %p145 = por %p143, %p144
      %s147 = sadd.s32 %s146, 1
      %p150 = scmp.eq.s32.totalorder %s39, 1
      %p151 = scmp.ne.s32.totalorder %s146, %s148
      %p152 = scmp.eq.s32.totalorder %s39, 0
      %p153 = por %p151, %p152
      %p154 = scmp.ne.s32.totalorder %s146, %s148
      %p155 = scmp.eq.s32.totalorder %s44, 1
      %p156 = por %p154, %p155
      %p157 = scmp.ne.s32.totalorder %s148, %s149
      %p158 = scmp.eq.s32.totalorder %s44, 0
      %p159 = por %p157, %p158
      %p160 = scmp.ne.s32.totalorder %s148, %s149
      %p161 = scmp.eq.s32.totalorder %s45, 1
      %p162 = por %p160, %p161
      %p164 = scmp.ne.s32.totalorder %s149, %s163
      %p165 = scmp.eq.s32.totalorder %s45, 0
      %p166 = por %p164, %p165
      %s168 = sadd.s32 %s167, 1
      %p171 = scmp.eq.s32.totalorder %s39, 1
      %p172 = scmp.ne.s32.totalorder %s167, %s169
      %p173 = scmp.eq.s32.totalorder %s39, 0
      %p174 = por %p172, %p173
      %p175 = scmp.ne.s32.totalorder %s167, %s169
      %p176 = scmp.eq.s32.totalorder %s44, 1
      %p177 = por %p175, %p176
      %p178 = scmp.ne.s32.totalorder %s169, %s170
      %p179 = scmp.eq.s32.totalorder %s44, 0
      %p180 = por %p178, %p179
      %p181 = scmp.ne.s32.totalorder %s169, %s170
      %p182 = scmp.eq.s32.totalorder %s45, 1
      %p183 = por %p181, %p182
      %p185 = scmp.ne.s32.totalorder %s170, %s184
      %p186 = scmp.eq.s32.totalorder %s45, 0
      %p187 = por %p185, %p186
      %s189 = sadd.s32 %s188, 1
      %p192 = scmp.eq.s32.totalorder %s39, 1
      %p193 = scmp.ne.s32.totalorder %s188, %s190
      %p194 = scmp.eq.s32.totalorder %s39, 0
      %p195 = por %p193, %p194
      %p196 = scmp.ne.s32.totalorder %s188, %s190
      %p197 = scmp.eq.s32.totalorder %s44, 1
      %p198 = por %p196, %p197
      %p199 = scmp.ne.s32.totalorder %s190, %s191
      %p200 = scmp.eq.s32.totalorder %s44, 0
      %p201 = por %p199, %p200
      %p202 = scmp.ne.s32.totalorder %s190, %s191
      %p203 = scmp.eq.s32.totalorder %s45, 1
      %p204 = por %p202, %p203
      %p206 = scmp.ne.s32.totalorder %s191, %s205
      %p207 = scmp.eq.s32.totalorder %s45, 0
      %p208 = por %p206, %p207
      %s210 = sadd.s32 %s209, 1
      %p213 = scmp.eq.s32.totalorder %s39, 1
      %p214 = scmp.ne.s32.totalorder %s209, %s211
      %p215 = scmp.eq.s32.totalorder %s39, 0
      %p216 = por %p214, %p215
      %p217 = scmp.ne.s32.totalorder %s209, %s211
      %p218 = scmp.eq.s32.totalorder %s44, 1
      %p219 = por %p217, %p218
      %p220 = scmp.ne.s32.totalorder %s211, %s212
      %p221 = scmp.eq.s32.totalorder %s44, 0
      %p222 = por %p220, %p221
      %p223 = scmp.ne.s32.totalorder %s211, %s212
      %p224 = scmp.eq.s32.totalorder %s45, 1
      %p225 = por %p223, %p224
      %p227 = scmp.ne.s32.totalorder %s212, %s226
      %p228 = scmp.eq.s32.totalorder %s45, 0
      %p229 = por %p227, %p228
      %s231 = sadd.s32 %s230, 1
      %p234 = scmp.eq.s32.totalorder %s39, 1
      %p235 = scmp.ne.s32.totalorder %s230, %s232
      %p236 = scmp.eq.s32.totalorder %s39, 0
      %p237 = por %p235, %p236
      %p238 = scmp.ne.s32.totalorder %s230, %s232
      %p239 = scmp.eq.s32.totalorder %s44, 1
      %p240 = por %p238, %p239
      %p241 = scmp.ne.s32.totalorder %s232, %s233
      %p242 = scmp.eq.s32.totalorder %s44, 0
      %p243 = por %p241, %p242
      %p244 = scmp.ne.s32.totalorder %s232, %s233
      %p245 = scmp.eq.s32.totalorder %s45, 1
      %p246 = por %p244, %p245
      %p248 = scmp.ne.s32.totalorder %s233, %s247
      %p249 = scmp.eq.s32.totalorder %s45, 0
      %p250 = por %p248, %p249
      %s252 = sadd.s32 %s251, 1
      %p255 = scmp.eq.s32.totalorder %s39, 1
      %p256 = scmp.ne.s32.totalorder %s251, %s253
      %p257 = scmp.eq.s32.totalorder %s39, 0
      %p258 = por %p256, %p257
      %p259 = scmp.ne.s32.totalorder %s251, %s253
      %p260 = scmp.eq.s32.totalorder %s44, 1
      %p261 = por %p259, %p260
      %p262 = scmp.ne.s32.totalorder %s253, %s254
      %p263 = scmp.eq.s32.totalorder %s44, 0
      %p264 = por %p262, %p263
      %p265 = scmp.ne.s32.totalorder %s253, %s254
      %p266 = scmp.eq.s32.totalorder %s45, 1
      %p267 = por %p265, %p266
      %p269 = scmp.ne.s32.totalorder %s254, %s268
      %p270 = scmp.eq.s32.totalorder %s45, 0
      %p271 = por %p269, %p270
      %s273 = sadd.s32 %s272, 1
      %p276 = scmp.eq.s32.totalorder %s39, 1
      %p277 = scmp.ne.s32.totalorder %s272, %s274
      %p278 = scmp.eq.s32.totalorder %s39, 0
      %p279 = por %p277, %p278
      %p280 = scmp.ne.s32.totalorder %s272, %s274
      %p281 = scmp.eq.s32.totalorder %s44, 1
      %p282 = por %p280, %p281
      %p283 = scmp.ne.s32.totalorder %s274, %s275
      %p284 = scmp.eq.s32.totalorder %s44, 0
      %p285 = por %p283, %p284
      %p286 = scmp.ne.s32.totalorder %s274, %s275
      %p287 = scmp.eq.s32.totalorder %s45, 1
      %p288 = por %p286, %p287
      %p290 = scmp.ne.s32.totalorder %s275, %s289
      %p291 = scmp.eq.s32.totalorder %s45, 0
      %p292 = por %p290, %p291
      %s294 = sadd.s32 %s293, 1
      %p297 = scmp.eq.s32.totalorder %s39, 1
      %p298 = scmp.ne.s32.totalorder %s293, %s295
      %p299 = scmp.eq.s32.totalorder %s39, 0
      %p300 = por %p298, %p299
      %p301 = scmp.ne.s32.totalorder %s293, %s295
      %p302 = scmp.eq.s32.totalorder %s44, 1
      %p303 = por %p301, %p302
      %p304 = scmp.ne.s32.totalorder %s295, %s296
      %p305 = scmp.eq.s32.totalorder %s44, 0
      %p306 = por %p304, %p305
      %p307 = scmp.ne.s32.totalorder %s295, %s296
      %p308 = scmp.eq.s32.totalorder %s45, 1
      %p309 = por %p307, %p308
      %p311 = scmp.ne.s32.totalorder %s296, %s310
      %p312 = scmp.eq.s32.totalorder %s45, 0
      %p313 = por %p311, %p312
      %s315 = sadd.s32 %s314, 1
      %p318 = scmp.eq.s32.totalorder %s39, 1
      %p319 = scmp.ne.s32.totalorder %s314, %s316
      %p320 = scmp.eq.s32.totalorder %s39, 0
      %p321 = por %p319, %p320
      %p322 = scmp.ne.s32.totalorder %s314, %s316
      %p323 = scmp.eq.s32.totalorder %s44, 1
      %p324 = por %p322, %p323
      %p325 = scmp.ne.s32.totalorder %s316, %s317
      %p326 = scmp.eq.s32.totalorder %s44, 0
      %p327 = por %p325, %p326
      %p328 = scmp.ne.s32.totalorder %s316, %s317
      %p329 = scmp.eq.s32.totalorder %s45, 1
      %p330 = por %p328, %p329
      %p332 = scmp.ne.s32.totalorder %s317, %s331
      %p333 = scmp.eq.s32.totalorder %s45, 0
      %p334 = por %p332, %p333
      %s336 = sadd.s32 %s335, 1
      %p339 = scmp.eq.s32.totalorder %s39, 1
      %p340 = scmp.ne.s32.totalorder %s335, %s337
      %p341 = scmp.eq.s32.totalorder %s39, 0
      %p342 = por %p340, %p341
      %p343 = scmp.ne.s32.totalorder %s335, %s337
      %p344 = scmp.eq.s32.totalorder %s44, 1
      %p345 = por %p343, %p344
      %p346 = scmp.ne.s32.totalorder %s337, %s338
      %p347 = scmp.eq.s32.totalorder %s44, 0
      %p348 = por %p346, %p347
      %p349 = scmp.ne.s32.totalorder %s337, %s338
      %p350 = scmp.eq.s32.totalorder %s45, 1
      %p351 = por %p349, %p350
      %p353 = scmp.ne.s32.totalorder %s338, %s352
      %p354 = scmp.eq.s32.totalorder %s45, 0
      %p355 = por %p353, %p354
      %s357 = sadd.s32 %s356, 1
      %p360 = scmp.eq.s32.totalorder %s39, 1
      %p361 = scmp.ne.s32.totalorder %s356, %s358
      %p362 = scmp.eq.s32.totalorder %s39, 0
      %p363 = por %p361, %p362
      %p364 = scmp.ne.s32.totalorder %s356, %s358
      %p365 = scmp.eq.s32.totalorder %s44, 1
      %p366 = por %p364, %p365
      %p367 = scmp.ne.s32.totalorder %s358, %s359
      %p368 = scmp.eq.s32.totalorder %s44, 0
      %p369 = por %p367, %p368
      %p370 = scmp.ne.s32.totalorder %s358, %s359
      %p371 = scmp.eq.s32.totalorder %s45, 1
      %p372 = por %p370, %p371
      %p374 = scmp.ne.s32.totalorder %s359, %s373
      %p375 = scmp.eq.s32.totalorder %s45, 0
      %p376 = por %p374, %p375
      %s378 = sadd.s32 %s377, 1
      %p381 = scmp.eq.s32.totalorder %s39, 1
      %p382 = scmp.ne.s32.totalorder %s377, %s379
      %p383 = scmp.eq.s32.totalorder %s39, 0
      %p384 = por %p382, %p383
      %p385 = scmp.ne.s32.totalorder %s377, %s379
      %p386 = scmp.eq.s32.totalorder %s44, 1
      %p387 = por %p385, %p386
      %p388 = scmp.ne.s32.totalorder %s379, %s380
      %p389 = scmp.eq.s32.totalorder %s44, 0
      %p390 = por %p388, %p389
      %p391 = scmp.ne.s32.totalorder %s379, %s380
      %p392 = scmp.eq.s32.totalorder %s45, 1
      %p393 = por %p391, %p392
      %p395 = scmp.ne.s32.totalorder %s380, %s394
      %p396 = scmp.eq.s32.totalorder %s45, 0
      %p397 = por %p395, %p396
      %s399 = sadd.s32 %s398, 1
      %p402 = scmp.eq.s32.totalorder %s39, 1
      %p403 = scmp.ne.s32.totalorder %s398, %s400
      %p404 = scmp.eq.s32.totalorder %s39, 0
      %p405 = por %p403, %p404
      %p406 = scmp.ne.s32.totalorder %s398, %s400
      %p407 = scmp.eq.s32.totalorder %s44, 1
      %p408 = por %p406, %p407
      %p409 = scmp.ne.s32.totalorder %s400, %s401
      %p410 = scmp.eq.s32.totalorder %s44, 0
      %p411 = por %p409, %p410
      %p412 = scmp.ne.s32.totalorder %s400, %s401
      %p413 = scmp.eq.s32.totalorder %s45, 1
      %p414 = por %p412, %p413
      %p416 = scmp.ne.s32.totalorder %s401, %s415
      %p417 = scmp.eq.s32.totalorder %s45, 0
      %p418 = por %p416, %p417
      %s419 = ssub.s32 %s39, %s46
      %p420 = scmp.eq.s32.totalorder %s419, 0
      %s422 = sadd.s32 %s421, 1
      %s423 = scalar_select %p420, %s421, %s422
      %p426 = pneg %p420
      %p427 = scmp.eq.s32.totalorder %s39, 1
      %p428 = por %p426, %p427
      %p429 = scmp.ne.s32.totalorder %s421, %s424
      %p430 = scmp.eq.s32.totalorder %s39, 0
      %p431 = por %p429, %p430
      %p432 = scmp.ne.s32.totalorder %s421, %s424
      %p433 = scmp.eq.s32.totalorder %s44, 1
      %p434 = por %p432, %p433
      %p435 = scmp.ne.s32.totalorder %s424, %s425
      %p436 = scmp.eq.s32.totalorder %s44, 0
      %p437 = por %p435, %p436
      %p438 = scmp.ne.s32.totalorder %s424, %s425
      %p439 = scmp.eq.s32.totalorder %s45, 1
      %p440 = por %p438, %p439
      %p442 = scmp.ne.s32.totalorder %s425, %s441
      %p443 = scmp.eq.s32.totalorder %s45, 0
      %p444 = por %p442, %p443
      %p445 = scmp.le.s32.totalorder 1, %s39
      %p446 = scmp.lt.s32.totalorder %s39, 3
      %p447 = pnand %p445, %p446
      %p448 = pneg %p447
      // Predicated region
      $region9: #{tpu_custom_call.1} parent=5 // pred_check
        _
      $region10: #{tpu_custom_call.1} parent=5 // pred_check_branch
        %450 = sbr.rel (%p447) target = $region12
      $region11: #{tpu_custom_call.1} parent=5 // pred_region
        %s451 = ssub.s32 %s39, 1
        // Predicated region
        $region13: #{tpu_custom_call.1} parent=11 // pred_check
          %p452 = pneg %p138
        $region14: #{tpu_custom_call.1} parent=11 // pred_check_branch
          %454 = sbr.rel (%p452) target = $region16
        $region15: #{tpu_custom_call.1} parent=11 // pred_region
          %s456 = ssub.s32 16, 16
          %457 = vsyncadd [#allocation9], %s456
          %s459 = sshll.u32 [#allocation8], 4
          %s460 = int_to_ptr.vmem [resolvable:$true] %s459
          %462 = dma.hbm_to_vmem [thread:$0]  %s3, 16, %s460, [#allocation9]
        $region16: #{tpu_custom_call.1} parent=11 // pred_fallthru
          _
        // Predicated region
        $region17: #{tpu_custom_call.1} parent=11 // pred_check
          %p463 = pneg %p159
        $region18: #{tpu_custom_call.1} parent=11 // pred_check_branch
          %465 = sbr.rel (%p463) target = $region20
        $region19: #{tpu_custom_call.1} parent=11 // pred_region
          %s467 = ssub.s32 16, 16
          %468 = vsyncadd [#allocation9], %s467
          %s470 = sshll.u32 [#allocation10], 4
          %s471 = int_to_ptr.vmem [resolvable:$true] %s470
          %473 = dma.hbm_to_vmem [thread:$0]  %s4, 16, %s471, [#allocation9]
        $region20: #{tpu_custom_call.1} parent=11 // pred_fallthru
          _
        // Predicated region
        $region21: #{tpu_custom_call.1} parent=11 // pred_check
          %p474 = pneg %p180
        $region22: #{tpu_custom_call.1} parent=11 // pred_check_branch
          %476 = sbr.rel (%p474) target = $region24
        $region23: #{tpu_custom_call.1} parent=11 // pred_region
          %s478 = ssub.s32 256, 256
          %479 = vsyncadd [#allocation12], %s478
          %s480 = sshll.u32 [#allocation11], 4
          %s481 = int_to_ptr.vmem [resolvable:$true] %s480
          %486 = dma.hbm_to_vmem [thread:$0]  %s5, 256, %s481, [#allocation12], 64, 64, 4
        $region24: #{tpu_custom_call.1} parent=11 // pred_fallthru
          _
        // Predicated region
        $region25: #{tpu_custom_call.1} parent=11 // pred_check
          %p487 = pneg %p201
        $region26: #{tpu_custom_call.1} parent=11 // pred_check_branch
          %489 = sbr.rel (%p487) target = $region28
        $region27: #{tpu_custom_call.1} parent=11 // pred_region
          %s491 = ssub.s32 16, 16
          %492 = vsyncadd [#allocation12], %s491
          %s494 = sshll.u32 [#allocation13], 4
          %s495 = int_to_ptr.vmem [resolvable:$true] %s494
          %497 = dma.hbm_to_vmem [thread:$0]  %s6, 16, %s495, [#allocation12]
        $region28: #{tpu_custom_call.1} parent=11 // pred_fallthru
          _
        // Predicated region
        $region29: #{tpu_custom_call.1} parent=11 // pred_check
          %p498 = pneg %p222
        $region30: #{tpu_custom_call.1} parent=11 // pred_check_branch
          %500 = sbr.rel (%p498) target = $region32
        $region31: #{tpu_custom_call.1} parent=11 // pred_region
          %s502 = ssub.s32 256, 256
          %503 = vsyncadd [#allocation15], %s502
          %s504 = sshll.u32 [#allocation14], 4
          %s505 = int_to_ptr.vmem [resolvable:$true] %s504
          %510 = dma.hbm_to_vmem [thread:$0]  %s7, 256, %s505, [#allocation15], 64, 64, 4
        $region32: #{tpu_custom_call.1} parent=11 // pred_fallthru
          _
        // Predicated region
        $region33: #{tpu_custom_call.1} parent=11 // pred_check
          %p511 = pneg %p243
        $region34: #{tpu_custom_call.1} parent=11 // pred_check_branch
          %513 = sbr.rel (%p511) target = $region36
        $region35: #{tpu_custom_call.1} parent=11 // pred_region
          %s515 = ssub.s32 16, 16
          %516 = vsyncadd [#allocation15], %s515
          %s518 = sshll.u32 [#allocation16], 4
          %s519 = int_to_ptr.vmem [resolvable:$true] %s518
          %521 = dma.hbm_to_vmem [thread:$0]  %s8, 16, %s519, [#allocation15]
        $region36: #{tpu_custom_call.1} parent=11 // pred_fallthru
          _
        // Predicated region
        $region37: #{tpu_custom_call.1} parent=11 // pred_check
          %p522 = pneg %p264
        $region38: #{tpu_custom_call.1} parent=11 // pred_check_branch
          %524 = sbr.rel (%p522) target = $region40
        $region39: #{tpu_custom_call.1} parent=11 // pred_region
          %s526 = ssub.s32 256, 256
          %527 = vsyncadd [#allocation18], %s526
          %s528 = sshll.u32 [#allocation17], 4
          %s529 = int_to_ptr.vmem [resolvable:$true] %s528
          %534 = dma.hbm_to_vmem [thread:$0]  %s9, 256, %s529, [#allocation18], 64, 64, 4
        $region40: #{tpu_custom_call.1} parent=11 // pred_fallthru
          _
        // Predicated region
        $region41: #{tpu_custom_call.1} parent=11 // pred_check
          %p535 = pneg %p285
        $region42: #{tpu_custom_call.1} parent=11 // pred_check_branch
          %537 = sbr.rel (%p535) target = $region44
        $region43: #{tpu_custom_call.1} parent=11 // pred_region
          %s539 = ssub.s32 16, 16
          %540 = vsyncadd [#allocation18], %s539
          %s542 = sshll.u32 [#allocation19], 4
          %s543 = int_to_ptr.vmem [resolvable:$true] %s542
          %545 = dma.hbm_to_vmem [thread:$0]  %s10, 16, %s543, [#allocation18]
        $region44: #{tpu_custom_call.1} parent=11 // pred_fallthru
          _
        // Predicated region
        $region45: #{tpu_custom_call.1} parent=11 // pred_check
          %p546 = pneg %p306
        $region46: #{tpu_custom_call.1} parent=11 // pred_check_branch
          %548 = sbr.rel (%p546) target = $region48
        $region47: #{tpu_custom_call.1} parent=11 // pred_region
          %s550 = ssub.s32 16, 16
          %551 = vsyncadd [#allocation21], %s550
          %s553 = sshll.u32 [#allocation20], 4
          %s554 = int_to_ptr.vmem [resolvable:$true] %s553
          %556 = dma.hbm_to_vmem [thread:$0]  %s11, 16, %s554, [#allocation21]
        $region48: #{tpu_custom_call.1} parent=11 // pred_fallthru
          _
        // Predicated region
        $region49: #{tpu_custom_call.1} parent=11 // pred_check
          %p557 = pneg %p327
        $region50: #{tpu_custom_call.1} parent=11 // pred_check_branch
          %559 = sbr.rel (%p557) target = $region52
        $region51: #{tpu_custom_call.1} parent=11 // pred_region
          %s561 = ssub.s32 16, 16
          %562 = vsyncadd [#allocation21], %s561
          %s564 = sshll.u32 [#allocation22], 4
          %s565 = int_to_ptr.vmem [resolvable:$true] %s564
          %567 = dma.hbm_to_vmem [thread:$0]  %s12, 16, %s565, [#allocation21]
        $region52: #{tpu_custom_call.1} parent=11 // pred_fallthru
          _
        // Predicated region
        $region53: #{tpu_custom_call.1} parent=11 // pred_check
          %p568 = pneg %p348
        $region54: #{tpu_custom_call.1} parent=11 // pred_check_branch
          %570 = sbr.rel (%p568) target = $region56
        $region55: #{tpu_custom_call.1} parent=11 // pred_region
          %s572 = ssub.s32 256, 256
          %573 = vsyncadd [#allocation24], %s572
          %s574 = sshll.u32 [#allocation23], 4
          %s575 = int_to_ptr.vmem [resolvable:$true] %s574
          %580 = dma.hbm_to_vmem [thread:$0]  %s13, 256, %s575, [#allocation24], 64, 64, 4
        $region56: #{tpu_custom_call.1} parent=11 // pred_fallthru
          _
        // Predicated region
        $region57: #{tpu_custom_call.1} parent=11 // pred_check
          %p581 = pneg %p369
        $region58: #{tpu_custom_call.1} parent=11 // pred_check_branch
          %583 = sbr.rel (%p581) target = $region60
        $region59: #{tpu_custom_call.1} parent=11 // pred_region
          %s585 = ssub.s32 16, 16
          %586 = vsyncadd [#allocation24], %s585
          %s588 = sshll.u32 [#allocation25], 4
          %s589 = int_to_ptr.vmem [resolvable:$true] %s588
          %591 = dma.hbm_to_vmem [thread:$0]  %s14, 16, %s589, [#allocation24]
        $region60: #{tpu_custom_call.1} parent=11 // pred_fallthru
          _
        // Predicated region
        $region61: #{tpu_custom_call.1} parent=11 // pred_check
          %p592 = pneg %p390
        $region62: #{tpu_custom_call.1} parent=11 // pred_check_branch
          %594 = sbr.rel (%p592) target = $region64
        $region63: #{tpu_custom_call.1} parent=11 // pred_region
          %s596 = ssub.s32 1024, 1024
          %597 = vsyncadd [#allocation27], %s596
          %s598 = sshll.u32 [#allocation26], 4
          %s599 = int_to_ptr.vmem [resolvable:$true] %s598
          %604 = dma.hbm_to_vmem [thread:$0]  %s15, 1024, %s599, [#allocation27], 64, 64, 4
        $region64: #{tpu_custom_call.1} parent=11 // pred_fallthru
          _
        // Predicated region
        $region65: #{tpu_custom_call.1} parent=11 // pred_check
          %p605 = pneg %p411
        $region66: #{tpu_custom_call.1} parent=11 // pred_check_branch
          %607 = sbr.rel (%p605) target = $region68
        $region67: #{tpu_custom_call.1} parent=11 // pred_region
          %s609 = ssub.s32 16, 16
          %610 = vsyncadd [#allocation27], %s609
          %s612 = sshll.u32 [#allocation28], 4
          %s613 = int_to_ptr.vmem [resolvable:$true] %s612
          %615 = dma.hbm_to_vmem [thread:$0]  %s16, 16, %s613, [#allocation27]
        $region68: #{tpu_custom_call.1} parent=11 // pred_fallthru
          _
      $region12: #{tpu_custom_call.1} parent=5 // pred_fallthru
        _
      %p616 = scmp.lt.s32.totalorder %s39, 2
      // Predicated region
      $region69: #{tpu_custom_call.1} parent=5 // pred_check
        %p617 = pneg %p616
      $region70: #{tpu_custom_call.1} parent=5 // pred_check_branch
        %619 = sbr.rel (%p617) target = $region72
      $region71: #{tpu_custom_call.1} parent=5 // pred_region
        // Predicated region
        $region73: #{tpu_custom_call.1} parent=71 // pred_check
          %p620 = pneg %p59
        $region74: #{tpu_custom_call.1} parent=71 // pred_check_branch
          %622 = sbr.rel (%p620) target = $region76
        $region75: #{tpu_custom_call.1} parent=71 // pred_region
          %s623 = sand.u32 %s49, 1
          %s624 = scalar_lea.sflag [#allocation3], %s623
          %s625 = sand.u32 %s49, 1
          %s626 = smul.addr %s625, 2
          %s627 = scalar_lea.vmem [#allocation2], %s626
          %s629 = ssub.s32 32, 32
          %630 = vsyncadd %s624, %s629
          %s631 = smul.addr %s39, 32
          %s632 = scalar_lea.hbm %s0, %s631
          %s634 = sshll.u32 %s627, 4
          %s635 = int_to_ptr.vmem [resolvable:$true] %s634
          %637 = dma.hbm_to_vmem [thread:$0]  %s632, 32, %s635, %s624
        $region76: #{tpu_custom_call.1} parent=71 // pred_fallthru
          _
        // Predicated region
        $region77: #{tpu_custom_call.1} parent=71 // pred_check
          %p638 = pneg %p85
        $region78: #{tpu_custom_call.1} parent=71 // pred_check_branch
          %640 = sbr.rel (%p638) target = $region80
        $region79: #{tpu_custom_call.1} parent=71 // pred_region
          %s641 = sand.u32 %s39, 1
          %s642 = scalar_lea.sflag [#allocation6], %s641
          %s643 = sand.u32 %s75, 1
          %s644 = smul.addr %s643, 16
          %s645 = scalar_lea.vmem [#allocation5], %s644
          %s647 = ssub.s32 256, 256
          %648 = vsyncadd %s642, %s647
          %s649 = smul.addr %s39, 2
          %s650 = smul.addr %s649, 128
          %s651 = scalar_lea.hbm %s1, %s650
          %s652 = sshll.u32 %s645, 4
          %s653 = int_to_ptr.vmem [resolvable:$true] %s652
          %658 = dma.hbm_to_vmem [thread:$0]  %s651, 256, %s653, %s642, 128, 128, 8
        $region80: #{tpu_custom_call.1} parent=71 // pred_fallthru
          _
        // Predicated region
        $region81: #{tpu_custom_call.1} parent=71 // pred_check
          %p659 = pneg %p111
        $region82: #{tpu_custom_call.1} parent=71 // pred_check_branch
          %661 = sbr.rel (%p659) target = $region84
        $region83: #{tpu_custom_call.1} parent=71 // pred_region
          %s662 = sand.u32 %s39, 1
          %s663 = scalar_lea.sflag [#allocation6], %s662
          %s664 = sand.u32 %s101, 1
          %s665 = smul.addr %s664, 8
          %s666 = scalar_lea.vmem [#allocation7], %s665
          %s668 = ssub.s32 128, 128
          %669 = vsyncadd %s663, %s668
          %s670 = smul.addr %s39, 4
          %s671 = smul.addr %s670, 32
          %s672 = scalar_lea.hbm %s2, %s671
          %s673 = sshll.u32 %s666, 4
          %s674 = int_to_ptr.vmem [resolvable:$true] %s673
          %679 = dma.hbm_to_vmem [thread:$0]  %s672, 128, %s674, %s663, 32, 32, 2
        $region84: #{tpu_custom_call.1} parent=71 // pred_fallthru
          _
      $region72: #{tpu_custom_call.1} parent=5 // pred_fallthru
        _
      %p680 = scmp.le.s32.totalorder 1, %s39
      %p681 = scmp.lt.s32.totalorder %s39, 3
      %p682 = pnand %p680, %p681
      %p683 = pneg %p682
      // Predicated region
      $region85: #{tpu_custom_call.1} parent=5 // pred_check
        _
      $region86: #{tpu_custom_call.1} parent=5 // pred_check_branch
        %685 = sbr.rel (%p682) target = $region88
      $region87: #{tpu_custom_call.1} parent=5 // pred_region
        %s686 = ssub.s32 %s39, 1
        %s687 = sand.u32 %s52, 1
        %s688 = scalar_lea.sflag [#allocation3], %s687
        %s689 = sand.u32 %s52, 1
        %s690 = smul.addr %s689, 2
        %s691 = scalar_lea.vmem [#allocation2], %s690
        // Predicated region
        $region89: #{tpu_custom_call.1} parent=87 // pred_check
          %p692 = pneg %p65
        $region90: #{tpu_custom_call.1} parent=87 // pred_check_branch
          %694 = sbr.rel (%p692) target = $region92
        $region91: #{tpu_custom_call.1} parent=87 // pred_region
          %695 = dma.done %s688, 32
        $region92: #{tpu_custom_call.1} parent=87 // pred_fallthru
          _
        %s696 = sand.u32 %s44, 1
        %s697 = scalar_lea.sflag [#allocation6], %s696
        %s698 = sand.u32 %s78, 1
        %s699 = smul.addr %s698, 16
        %s700 = scalar_lea.vmem [#allocation5], %s699
        // Predicated region
        $region93: #{tpu_custom_call.1} parent=87 // pred_check
          %p701 = pneg %p91
        $region94: #{tpu_custom_call.1} parent=87 // pred_check_branch
          %703 = sbr.rel (%p701) target = $region96
        $region95: #{tpu_custom_call.1} parent=87 // pred_region
          %704 = dma.done %s697, 256
        $region96: #{tpu_custom_call.1} parent=87 // pred_fallthru
          _
        %s705 = sand.u32 %s44, 1
        %s706 = scalar_lea.sflag [#allocation6], %s705
        %s707 = sand.u32 %s104, 1
        %s708 = smul.addr %s707, 8
        %s709 = scalar_lea.vmem [#allocation7], %s708
        // Predicated region
        $region97: #{tpu_custom_call.1} parent=87 // pred_check
          %p710 = pneg %p117
        $region98: #{tpu_custom_call.1} parent=87 // pred_check_branch
          %712 = sbr.rel (%p710) target = $region100
        $region99: #{tpu_custom_call.1} parent=87 // pred_region
          %713 = dma.done %s706, 128
        $region100: #{tpu_custom_call.1} parent=87 // pred_fallthru
          _
        // Predicated region
        $region101: #{tpu_custom_call.1} parent=87 // pred_check
          %p714 = pneg %p138
        $region102: #{tpu_custom_call.1} parent=87 // pred_check_branch
          %716 = sbr.rel (%p714) target = $region104
        $region103: #{tpu_custom_call.1} parent=87 // pred_region
          %717 = dma.done [#allocation9], 16
        $region104: #{tpu_custom_call.1} parent=87 // pred_fallthru
          _
        // Predicated region
        $region105: #{tpu_custom_call.1} parent=87 // pred_check
          %p718 = pneg %p159
        $region106: #{tpu_custom_call.1} parent=87 // pred_check_branch
          %720 = sbr.rel (%p718) target = $region108
        $region107: #{tpu_custom_call.1} parent=87 // pred_region
          %721 = dma.done [#allocation9], 16
        $region108: #{tpu_custom_call.1} parent=87 // pred_fallthru
          _
        // Predicated region
        $region109: #{tpu_custom_call.1} parent=87 // pred_check
          %p722 = pneg %p180
        $region110: #{tpu_custom_call.1} parent=87 // pred_check_branch
          %724 = sbr.rel (%p722) target = $region112
        $region111: #{tpu_custom_call.1} parent=87 // pred_region
          %725 = dma.done [#allocation12], 256
        $region112: #{tpu_custom_call.1} parent=87 // pred_fallthru
          _
        // Predicated region
        $region113: #{tpu_custom_call.1} parent=87 // pred_check
          %p726 = pneg %p201
        $region114: #{tpu_custom_call.1} parent=87 // pred_check_branch
          %728 = sbr.rel (%p726) target = $region116
        $region115: #{tpu_custom_call.1} parent=87 // pred_region
          %729 = dma.done [#allocation12], 16
        $region116: #{tpu_custom_call.1} parent=87 // pred_fallthru
          _
        // Predicated region
        $region117: #{tpu_custom_call.1} parent=87 // pred_check
          %p730 = pneg %p222
        $region118: #{tpu_custom_call.1} parent=87 // pred_check_branch
          %732 = sbr.rel (%p730) target = $region120
        $region119: #{tpu_custom_call.1} parent=87 // pred_region
          %733 = dma.done [#allocation15], 256
        $region120: #{tpu_custom_call.1} parent=87 // pred_fallthru
          _
        // Predicated region
        $region121: #{tpu_custom_call.1} parent=87 // pred_check
          %p734 = pneg %p243
        $region122: #{tpu_custom_call.1} parent=87 // pred_check_branch
          %736 = sbr.rel (%p734) target = $region124
        $region123: #{tpu_custom_call.1} parent=87 // pred_region
          %737 = dma.done [#allocation15], 16
        $region124: #{tpu_custom_call.1} parent=87 // pred_fallthru
          _
        // Predicated region
        $region125: #{tpu_custom_call.1} parent=87 // pred_check
          %p738 = pneg %p264
        $region126: #{tpu_custom_call.1} parent=87 // pred_check_branch
          %740 = sbr.rel (%p738) target = $region128
        $region127: #{tpu_custom_call.1} parent=87 // pred_region
          %741 = dma.done [#allocation18], 256
        $region128: #{tpu_custom_call.1} parent=87 // pred_fallthru
          _
        // Predicated region
        $region129: #{tpu_custom_call.1} parent=87 // pred_check
          %p742 = pneg %p285
        $region130: #{tpu_custom_call.1} parent=87 // pred_check_branch
          %744 = sbr.rel (%p742) target = $region132
        $region131: #{tpu_custom_call.1} parent=87 // pred_region
          %745 = dma.done [#allocation18], 16
        $region132: #{tpu_custom_call.1} parent=87 // pred_fallthru
          _
        // Predicated region
        $region133: #{tpu_custom_call.1} parent=87 // pred_check
          %p746 = pneg %p306
        $region134: #{tpu_custom_call.1} parent=87 // pred_check_branch
          %748 = sbr.rel (%p746) target = $region136
        $region135: #{tpu_custom_call.1} parent=87 // pred_region
          %749 = dma.done [#allocation21], 16
        $region136: #{tpu_custom_call.1} parent=87 // pred_fallthru
          _
        // Predicated region
        $region137: #{tpu_custom_call.1} parent=87 // pred_check
          %p750 = pneg %p327
        $region138: #{tpu_custom_call.1} parent=87 // pred_check_branch
          %752 = sbr.rel (%p750) target = $region140
        $region139: #{tpu_custom_call.1} parent=87 // pred_region
          %753 = dma.done [#allocation21], 16
        $region140: #{tpu_custom_call.1} parent=87 // pred_fallthru
          _
        // Predicated region
        $region141: #{tpu_custom_call.1} parent=87 // pred_check
          %p754 = pneg %p348
        $region142: #{tpu_custom_call.1} parent=87 // pred_check_branch
          %756 = sbr.rel (%p754) target = $region144
        $region143: #{tpu_custom_call.1} parent=87 // pred_region
          %757 = dma.done [#allocation24], 256
        $region144: #{tpu_custom_call.1} parent=87 // pred_fallthru
          _
        // Predicated region
        $region145: #{tpu_custom_call.1} parent=87 // pred_check
          %p758 = pneg %p369
        $region146: #{tpu_custom_call.1} parent=87 // pred_check_branch
          %760 = sbr.rel (%p758) target = $region148
        $region147: #{tpu_custom_call.1} parent=87 // pred_region
          %761 = dma.done [#allocation24], 16
        $region148: #{tpu_custom_call.1} parent=87 // pred_fallthru
          _
        // Predicated region
        $region149: #{tpu_custom_call.1} parent=87 // pred_check
          %p762 = pneg %p390
        $region150: #{tpu_custom_call.1} parent=87 // pred_check_branch
          %764 = sbr.rel (%p762) target = $region152
        $region151: #{tpu_custom_call.1} parent=87 // pred_region
          %765 = dma.done [#allocation27], 1024
        $region152: #{tpu_custom_call.1} parent=87 // pred_fallthru
          _
        // Predicated region
        $region153: #{tpu_custom_call.1} parent=87 // pred_check
          %p766 = pneg %p411
        $region154: #{tpu_custom_call.1} parent=87 // pred_check_branch
          %768 = sbr.rel (%p766) target = $region156
        $region155: #{tpu_custom_call.1} parent=87 // pred_region
          %769 = dma.done [#allocation27], 16
        $region156: #{tpu_custom_call.1} parent=87 // pred_fallthru
          _
        %s770 = sand.u32 %s52, 1
        %s771 = scalar_lea.sflag [#allocation3], %s770
        %s772 = sand.u32 %s52, 1
        %s773 = smul.addr %s772, 2
        %s774 = scalar_lea.vmem [#allocation2], %s773
        %p775 = pneg %p65
        %p776 = pneg %p62
        %s777 = sand.u32 %s44, 1
        %s778 = scalar_lea.sflag [#allocation6], %s777
        %s779 = sand.u32 %s78, 1
        %s780 = smul.addr %s779, 16
        %s781 = scalar_lea.vmem [#allocation5], %s780
        %p782 = pneg %p91
        %p783 = pneg %p88
        %s784 = sand.u32 %s44, 1
        %s785 = scalar_lea.sflag [#allocation6], %s784
        %s786 = sand.u32 %s104, 1
        %s787 = smul.addr %s786, 8
        %s788 = scalar_lea.vmem [#allocation7], %s787
        %p789 = pneg %p117
        %p790 = pneg %p114
        %p791 = pneg %p138
        %p792 = pneg %p135
        %p793 = pneg %p159
        %p794 = pneg %p156
        %p795 = pneg %p180
        %p796 = pneg %p177
        %p797 = pneg %p201
        %p798 = pneg %p198
        %p799 = pneg %p222
        %p800 = pneg %p219
        %p801 = pneg %p243
        %p802 = pneg %p240
        %p803 = pneg %p264
        %p804 = pneg %p261
        %p805 = pneg %p285
        %p806 = pneg %p282
        %p807 = pneg %p306
        %p808 = pneg %p303
        %p809 = pneg %p327
        %p810 = pneg %p324
        %p811 = pneg %p348
        %p812 = pneg %p345
        %p813 = pneg %p369
        %p814 = pneg %p366
        %p815 = pneg %p390
        %p816 = pneg %p387
        %p817 = pneg %p411
        %p818 = pneg %p408
        %p819 = pneg %p437
        %p820 = pneg %p434
        %s821 = sand.u32 %s424, 1
        %s822 = scalar_lea.sflag [#allocation4], %s821
        %s823 = sand.u32 %s424, 1
        %s824 = smul.addr %s823, 2
        %s825 = scalar_lea.vmem [#allocation29], %s824
        %v827 = vld [vmem:[%s691] sm:$0x3]
        %v828 = vld [vmem:[%s700] sm:$0xff]
        %v829 = vld [vmem:[%s700 + $0x8] sm:$0xff]
        %v830 = vld [vmem:[%s709] sm:$0x3]
        %v831 = vld [vmem:[%s709 + $0x2] sm:$0x3]
        %v832 = vld [vmem:[%s709 + $0x4] sm:$0x3]
        %v833 = vld [vmem:[%s709 + $0x6] sm:$0x3]
        %v834 = vld [vmem:[#allocation8] sm:$0x1]
        %v835 = vld [vmem:[#allocation10] sm:$0x1]
        %vm836 = vcmask 254976
        %v837 = vsel %vm836, %v827, 0.0
        %838 = vadd.xlane.f32.xlu0 %v837
        %v839 = vpop.xlane.xlu0 %838
        %v840 = vrcp.pop 32.0
        %v841 = vmul.f32 %v839, %v840
        %v842 = vsub.f32 %v827, %v841
        %v843 = vmul.f32 %v842, %v842
        %v844 = vsel %vm836, %v843, 0.0
        %845 = vadd.xlane.f32.xlu0 %v844
        %v846 = vpop.xlane.xlu0 %845
        %v847 = vmul.f32 %v846, %v840
        %v848 = vadd.f32 %v847, 1e-05
        %v849 = vrsqrt.pop %v848
        %v850 = vmul.f32 %v842, %v849
        %v852 = vlaneseq
        %v853 = vshrl.u32 %v852, 7
        %v854 = vsub.s32 0, %v853
        %v855 = vrot.slane %v834, %v854
        %v857 = vmul.f32 %v850, %v855
        %v859 = vlaneseq
        %v860 = vshrl.u32 %v859, 7
        %v861 = vsub.s32 0, %v860
        %v862 = vrot.slane %v835, %v861
        %v864 = vadd.f32 %v857, %v862
        %vm865 = vcmask 261120
        %v866 = vsel %vm865, %v828, 0.0
        %867 = vadd.xlane.f32.xlu0 %v866
        %v868 = vpop.xlane.xlu0 %867
        %v869 = vsel %vm865, %v829, 0.0
        %870 = vadd.xlane.f32.xlu0 %v869
        %v871 = vpop.xlane.xlu0 %870
        %v872 = vmul.f32 %v868, %v840
        %v873 = vmul.f32 %v871, %v840
        %v874 = vsub.f32 %v828, %v872
        %v875 = vsub.f32 %v829, %v873
        %v876 = vmul.f32 %v874, %v874
        %v877 = vmul.f32 %v875, %v875
        %v878 = vsel %vm865, %v876, 0.0
        %879 = vadd.xlane.f32.xlu0 %v878
        %v880 = vpop.xlane.xlu0 %879
        %v881 = vsel %vm865, %v877, 0.0
        %882 = vadd.xlane.f32.xlu0 %v881
        %v883 = vpop.xlane.xlu0 %882
        %v884 = vmul.f32 %v880, %v840
        %v885 = vmul.f32 %v883, %v840
        %v886 = vadd.f32 %v884, 1e-05
        %v887 = vadd.f32 %v885, 1e-05
        %v888 = vrsqrt.pop %v886
        %v889 = vrsqrt.pop %v887
        %v890 = vmul.f32 %v874, %v888
        %v891 = vmul.f32 %v875, %v889
        %v892 = vmul.f32 %v890, %v855
        %v893 = vmul.f32 %v891, %v855
        %v894 = vadd.f32 %v892, %v862
        %v895 = vadd.f32 %v893, %v862
        %v896 = vld [vmem:[#allocation11] sm:$0xf]
        %v897 = vld [vmem:[#allocation11 + $0x4] sm:$0xf]
        %v898 = vld [vmem:[#allocation11 + $0x8] sm:$0xf]
        %v899 = vld [vmem:[#allocation11 + $0xc] sm:$0xf]
        %v900 = vpack.c.bf16 %v864, %v864
        %v901 = vld [vmem:[#allocation13] sm:$0x1]
        %v903 = vlaneseq
        %v904 = vshrl.u32 %v903, 7
        %v905 = vsub.s32 0, %v904
        %v906 = vrot.slane %v901, %v905
        %v912 = vunpack.c.l.b16 %v896
        %v913 = vunpack.c.l.b16 %v897
        %v914 = vunpack.c.l.b16 %v898
        %v915 = vunpack.c.l.b16 %v899
        %v916 = vpack.c.b16 %v913, %v912
        %v917 = vpack.c.b16 %v915, %v914
        %v921 = vsel %vm865, %v900, 0
        %923 = vmatprep.subr.bf16.mxu0 0
        %924 = vmatpush1.bf16.msra.mxu0 %v916
        %925 = vmatprep.subr.bf16.mxu0 0
        %926 = vmatpush1.bf16.msra.mxu0 %v917
        %927 = vmatprep.subr.bf16.mxu0 0
        %928 = vmatpush1.bf16.msra.mxu0 0
        %929 = vmatprep.subr.bf16.mxu0 0
        %930 = vmatpush1.bf16.msra.mxu0 0
        %931 = vmatprep.subr.bf16.mxu0 0
        %932 = vmatpush1.bf16.msra.mxu0 0
        %933 = vmatprep.subr.bf16.mxu0 0
        %934 = vmatpush1.bf16.msra.mxu0 0
        %935 = vmatprep.subr.bf16.mxu0 0
        %936 = vmatpush1.bf16.msra.mxu0 0
        %937 = vmatprep.subr.bf16.mxu0 0
        %938 = vmatpush1.bf16.msra.mxu0 0
        %939 = vmatprep.subr.bf16.mxu0 0
        %940 = vmatpush1.bf16.msra.mxu0 0
        %941 = vmatprep.subr.bf16.mxu0 0
        %942 = vmatpush1.bf16.msra.mxu0 0
        %943 = vmatprep.subr.bf16.mxu0 0
        %944 = vmatpush1.bf16.msra.mxu0 0
        %945 = vmatprep.subr.bf16.mxu0 0
        %946 = vmatpush1.bf16.msra.mxu0 0
        %947 = vmatprep.subr.bf16.mxu0 0
        %948 = vmatpush1.bf16.msra.mxu0 0
        %949 = vmatprep.subr.bf16.mxu0 0
        %950 = vmatpush1.bf16.msra.mxu0 0
        %951 = vmatprep.subr.bf16.mxu0 0
        %952 = vmatpush1.bf16.msra.mxu0 0
        %953 = vmatprep.subr.bf16.mxu0 0
        %954 = vmatpush1.bf16.msra.mxu0 0
        %955 = vmatprep.mubr.bf16.mxu0 0
        %956 = vmatmul.mubr.bf16.gmra.mrb[0].mxu0 %v921
        %v957 = vpop.f32.mrb[0].mxu0
        %v958 = vadd.f32 %v906, %v957
        %v959 = vpop.f32.mrb[0].mxu0
        %v960 = vpop.f32.mrb[0].mxu0
        %v961 = vpop.f32.mrb[0].mxu0
        %962 = vdwg.mxu0
        %v963 = vmul.f32 %v958, 0.35355338
        %v964 = vld [vmem:[#allocation14] sm:$0xf]
        %v965 = vld [vmem:[#allocation14 + $0x4] sm:$0xf]
        %v966 = vld [vmem:[#allocation14 + $0x8] sm:$0xf]
        %v967 = vld [vmem:[#allocation14 + $0xc] sm:$0xf]
        %v968 = vpack.c.bf16 %v895, %v894
        %v969 = vld [vmem:[#allocation16] sm:$0x1]
        %v971 = vlaneseq
        %v972 = vshrl.u32 %v971, 7
        %v973 = vsub.s32 0, %v972
        %v974 = vrot.slane %v969, %v973
        %v980 = vunpack.c.l.b16 %v964
        %v981 = vunpack.c.l.b16 %v965
        %v982 = vunpack.c.l.b16 %v966
        %v983 = vunpack.c.l.b16 %v967
        %v984 = vpack.c.b16 %v981, %v980
        %v985 = vpack.c.b16 %v983, %v982
        %v989 = vsel %vm865, %v968, 0
        %991 = vmatprep.subr.bf16.mxu0 0
        %992 = vmatpush1.bf16.msra.mxu0 %v984
        %993 = vmatprep.subr.bf16.mxu0 0
        %994 = vmatpush1.bf16.msra.mxu0 %v985
        %995 = vmatprep.subr.bf16.mxu0 0
        %996 = vmatpush1.bf16.msra.mxu0 0
        %997 = vmatprep.subr.bf16.mxu0 0
        %998 = vmatpush1.bf16.msra.mxu0 0
        %999 = vmatprep.subr.bf16.mxu0 0
        %1000 = vmatpush1.bf16.msra.mxu0 0
        %1001 = vmatprep.subr.bf16.mxu0 0
        %1002 = vmatpush1.bf16.msra.mxu0 0
        %1003 = vmatprep.subr.bf16.mxu0 0
        %1004 = vmatpush1.bf16.msra.mxu0 0
        %1005 = vmatprep.subr.bf16.mxu0 0
        %1006 = vmatpush1.bf16.msra.mxu0 0
        %1007 = vmatprep.subr.bf16.mxu0 0
        %1008 = vmatpush1.bf16.msra.mxu0 0
        %1009 = vmatprep.subr.bf16.mxu0 0
        %1010 = vmatpush1.bf16.msra.mxu0 0
        %1011 = vmatprep.subr.bf16.mxu0 0
        %1012 = vmatpush1.bf16.msra.mxu0 0
        %1013 = vmatprep.subr.bf16.mxu0 0
        %1014 = vmatpush1.bf16.msra.mxu0 0
        %1015 = vmatprep.subr.bf16.mxu0 0
        %1016 = vmatpush1.bf16.msra.mxu0 0
        %1017 = vmatprep.subr.bf16.mxu0 0
        %1018 = vmatpush1.bf16.msra.mxu0 0
        %1019 = vmatprep.subr.bf16.mxu0 0
        %1020 = vmatpush1.bf16.msra.mxu0 0
        %1021 = vmatprep.subr.bf16.mxu0 0
        %1022 = vmatpush1.bf16.msra.mxu0 0
        %1023 = vmatprep.mubr.bf16.mxu0 0
        %1024 = vmatmul.mubr.bf16.gmra.mrb[0].mxu0 %v989
        %v1025 = vpop.f32.mrb[0].mxu0
        %v1026 = vadd.f32 %v974, %v1025
        %v1027 = vpop.f32.mrb[0].mxu0
        %v1028 = vpop.f32.mrb[0].mxu0
        %v1029 = vadd.f32 %v974, %v1028
        %v1030 = vpop.f32.mrb[0].mxu0
        %1031 = vdwg.mxu0
        %1032 = vmatprep.subr.bf16.mxu0 0
        %1033 = vmatpush1.bf16.msra.mxu0 %v984
        %1034 = vmatprep.subr.bf16.mxu0 0
        %1035 = vmatpush1.bf16.msra.mxu0 %v985
        %1036 = vmatprep.subr.bf16.mxu0 0
        %1037 = vmatpush1.bf16.msra.mxu0 0
        %1038 = vmatprep.subr.bf16.mxu0 0
        %1039 = vmatpush1.bf16.msra.mxu0 0
        %1040 = vmatprep.subr.bf16.mxu0 0
        %1041 = vmatpush1.bf16.msra.mxu0 0
        %1042 = vmatprep.subr.bf16.mxu0 0
        %1043 = vmatpush1.bf16.msra.mxu0 0
        %1044 = vmatprep.subr.bf16.mxu0 0
        %1045 = vmatpush1.bf16.msra.mxu0 0
        %1046 = vmatprep.subr.bf16.mxu0 0
        %1047 = vmatpush1.bf16.msra.mxu0 0
        %1048 = vmatprep.subr.bf16.mxu0 0
        %1049 = vmatpush1.bf16.msra.mxu0 0
        %1050 = vmatprep.subr.bf16.mxu0 0
        %1051 = vmatpush1.bf16.msra.mxu0 0
        %1052 = vmatprep.subr.bf16.mxu0 0
        %1053 = vmatpush1.bf16.msra.mxu0 0
        %1054 = vmatprep.subr.bf16.mxu0 0
        %1055 = vmatpush1.bf16.msra.mxu0 0
        %1056 = vmatprep.subr.bf16.mxu0 0
        %1057 = vmatpush1.bf16.msra.mxu0 0
        %1058 = vmatprep.subr.bf16.mxu0 0
        %1059 = vmatpush1.bf16.msra.mxu0 0
        %1060 = vmatprep.subr.bf16.mxu0 0
        %1061 = vmatpush1.bf16.msra.mxu0 0
        %1062 = vmatprep.subr.bf16.mxu0 0
        %1063 = vmatpush1.bf16.msra.mxu0 0
        %1064 = vmatprep.mubr.bf16.mxu0 0
        %1065 = vmatmul.mubr.bf16.gmra.mrb[0].mxu0 %v921
        %v1066 = vpop.f32.mrb[0].mxu0
        %v1067 = vadd.f32 %v974, %v1066
        %v1068 = vpop.f32.mrb[0].mxu0
        %v1069 = vpop.f32.mrb[0].mxu0
        %v1070 = vpop.f32.mrb[0].mxu0
        %1071 = vdwg.mxu0
        %1073 = vrot.lane.b32.xlu0 %v963, 120
        %v1074 = vpop.permute.xlu0 %1073
        %1076 = vrot.lane.b32.xlu0 %v963, 112
        %v1077 = vpop.permute.xlu0 %1076
        %1079 = vrot.lane.b32.xlu0 %v963, 104
        %v1080 = vpop.permute.xlu0 %1079
        %v1082 = vcombine.low %v963, %v1077
        %v1084 = vunpack.c.l.s4 1983009808
        %v1085 = vunpack.c.0.s8 %v1084
        %v1086 = vlaneseq
        %v1087 = vshrl.u32 %v1086, 7
        %v1088 = vsub.s32 %v1085, %v1087
        %v1089 = vrot.slane %v1082, %v1088
        %v1090 = vcombine.low %v1074, %v1080
        %v1092 = vunpack.c.l.s4 1983009808
        %v1093 = vunpack.c.0.s8 %v1092
        %v1094 = vlaneseq
        %v1095 = vshrl.u32 %v1094, 7
        %v1096 = vsub.s32 %v1093, %v1095
        %v1097 = vrot.slane %v1090, %v1096
        %v1098 = vcombine.low %v1089, %v1097
        %v1100 = vunpack.c.l.s4 1934713408
        %v1101 = vunpack.c.0.s8 %v1100
        %v1102 = vlaneseq
        %v1103 = vshrl.u32 %v1102, 7
        %v1104 = vsub.s32 %v1101, %v1103
        %v1105 = vrot.slane %v1098, %v1104
        %v1106 = vcombine.high %v1105, 0.0
        %1109 = vrot.lane.b32.xlu0 %v1026, 120
        %v1110 = vpop.permute.xlu0 %1109
        %1111 = vrot.lane.b32.xlu0 %v1029, 120
        %v1112 = vpop.permute.xlu0 %1111
        %1115 = vrot.lane.b32.xlu0 %v1026, 112
        %v1116 = vpop.permute.xlu0 %1115
        %1117 = vrot.lane.b32.xlu0 %v1029, 112
        %v1118 = vpop.permute.xlu0 %1117
        %1121 = vrot.lane.b32.xlu0 %v1026, 104
        %v1122 = vpop.permute.xlu0 %1121
        %1123 = vrot.lane.b32.xlu0 %v1029, 104
        %v1124 = vpop.permute.xlu0 %1123
        %v1127 = vcombine.low %v1026, %v1116
        %v1128 = vcombine.high %v1026, %v1116
        %v1130 = vunpack.c.l.s4 1983009808
        %v1131 = vunpack.c.0.s8 %v1130
        %v1132 = vlaneseq
        %v1133 = vshrl.u32 %v1132, 7
        %v1134 = vsub.s32 %v1131, %v1133
        %v1135 = vrot.slane %v1127, %v1134
        %v1137 = vunpack.c.l.s4 1983009808
        %v1138 = vunpack.c.0.s8 %v1137
        %v1139 = vlaneseq
        %v1140 = vshrl.u32 %v1139, 7
        %v1141 = vsub.s32 %v1138, %v1140
        %v1142 = vrot.slane %v1128, %v1141
        %v1143 = vcombine.low %v1110, %v1122
        %v1144 = vcombine.high %v1110, %v1122
        %v1146 = vunpack.c.l.s4 1983009808
        %v1147 = vunpack.c.0.s8 %v1146
        %v1148 = vlaneseq
        %v1149 = vshrl.u32 %v1148, 7
        %v1150 = vsub.s32 %v1147, %v1149
        %v1151 = vrot.slane %v1143, %v1150
        %v1153 = vunpack.c.l.s4 1983009808
        %v1154 = vunpack.c.0.s8 %v1153
        %v1155 = vlaneseq
        %v1156 = vshrl.u32 %v1155, 7
        %v1157 = vsub.s32 %v1154, %v1156
        %v1158 = vrot.slane %v1144, %v1157
        %v1159 = vcombine.low %v1135, %v1151
        %v1160 = vcombine.high %v1135, %v1151
        %v1162 = vunpack.c.l.s4 1934713408
        %v1163 = vunpack.c.0.s8 %v1162
        %v1164 = vlaneseq
        %v1165 = vshrl.u32 %v1164, 7
        %v1166 = vsub.s32 %v1163, %v1165
        %v1167 = vrot.slane %v1159, %v1166
        %v1169 = vunpack.c.l.s4 1934713408
        %v1170 = vunpack.c.0.s8 %v1169
        %v1171 = vlaneseq
        %v1172 = vshrl.u32 %v1171, 7
        %v1173 = vsub.s32 %v1170, %v1172
        %v1174 = vrot.slane %v1160, %v1173
        %v1175 = vcombine.low %v1142, %v1158
        %v1176 = vcombine.high %v1142, %v1158
        %v1178 = vunpack.c.l.s4 1934713408
        %v1179 = vunpack.c.0.s8 %v1178
        %v1180 = vlaneseq
        %v1181 = vshrl.u32 %v1180, 7
        %v1182 = vsub.s32 %v1179, %v1181
        %v1183 = vrot.slane %v1175, %v1182
        %v1185 = vunpack.c.l.s4 1934713408
        %v1186 = vunpack.c.0.s8 %v1185
        %v1187 = vlaneseq
        %v1188 = vshrl.u32 %v1187, 7
        %v1189 = vsub.s32 %v1186, %v1188
        %v1190 = vrot.slane %v1176, %v1189
        %v1191 = vcombine.high %v1167, 0.0
        %v1192 = vcombine.high %v1174, 0.0
        %v1193 = vcombine.high %v1183, 0.0
        %v1194 = vcombine.high %v1190, 0.0
        %v1195 = vcombine.low %v1029, %v1118
        %v1196 = vcombine.high %v1029, %v1118
        %v1198 = vunpack.c.l.s4 1983009808
        %v1199 = vunpack.c.0.s8 %v1198
        %v1200 = vlaneseq
        %v1201 = vshrl.u32 %v1200, 7
        %v1202 = vsub.s32 %v1199, %v1201
        %v1203 = vrot.slane %v1195, %v1202
        %v1205 = vunpack.c.l.s4 1983009808
        %v1206 = vunpack.c.0.s8 %v1205
        %v1207 = vlaneseq
        %v1208 = vshrl.u32 %v1207, 7
        %v1209 = vsub.s32 %v1206, %v1208
        %v1210 = vrot.slane %v1196, %v1209
        %v1211 = vcombine.low %v1112, %v1124
        %v1212 = vcombine.high %v1112, %v1124
        %v1214 = vunpack.c.l.s4 1983009808
        %v1215 = vunpack.c.0.s8 %v1214
        %v1216 = vlaneseq
        %v1217 = vshrl.u32 %v1216, 7
        %v1218 = vsub.s32 %v1215, %v1217
        %v1219 = vrot.slane %v1211, %v1218
        %v1221 = vunpack.c.l.s4 1983009808
        %v1222 = vunpack.c.0.s8 %v1221
        %v1223 = vlaneseq
        %v1224 = vshrl.u32 %v1223, 7
        %v1225 = vsub.s32 %v1222, %v1224
        %v1226 = vrot.slane %v1212, %v1225
        %v1227 = vcombine.low %v1203, %v1219
        %v1228 = vcombine.high %v1203, %v1219
        %v1230 = vunpack.c.l.s4 1934713408
        %v1231 = vunpack.c.0.s8 %v1230
        %v1232 = vlaneseq
        %v1233 = vshrl.u32 %v1232, 7
        %v1234 = vsub.s32 %v1231, %v1233
        %v1235 = vrot.slane %v1227, %v1234
        %v1237 = vunpack.c.l.s4 1934713408
        %v1238 = vunpack.c.0.s8 %v1237
        %v1239 = vlaneseq
        %v1240 = vshrl.u32 %v1239, 7
        %v1241 = vsub.s32 %v1238, %v1240
        %v1242 = vrot.slane %v1228, %v1241
        %v1243 = vcombine.low %v1210, %v1226
        %v1244 = vcombine.high %v1210, %v1226
        %v1246 = vunpack.c.l.s4 1934713408
        %v1247 = vunpack.c.0.s8 %v1246
        %v1248 = vlaneseq
        %v1249 = vshrl.u32 %v1248, 7
        %v1250 = vsub.s32 %v1247, %v1249
        %v1251 = vrot.slane %v1243, %v1250
        %v1253 = vunpack.c.l.s4 1934713408
        %v1254 = vunpack.c.0.s8 %v1253
        %v1255 = vlaneseq
        %v1256 = vshrl.u32 %v1255, 7
        %v1257 = vsub.s32 %v1254, %v1256
        %v1258 = vrot.slane %v1244, %v1257
        %v1259 = vcombine.high %v1235, 0.0
        %v1260 = vcombine.high %v1242, 0.0
        %v1261 = vcombine.high %v1251, 0.0
        %v1262 = vcombine.high %v1258, 0.0
        %v1263 = vpack.c.bf16 %v1167, %v1167
        %v1264 = vpack.c.bf16 %v1191, %v1191
        %v1265 = vpack.c.bf16 %v1174, %v1174
        %v1266 = vpack.c.bf16 %v1192, %v1192
        %v1267 = vpack.c.bf16 %v1183, %v1183
        %v1268 = vpack.c.bf16 %v1193, %v1193
        %v1269 = vpack.c.bf16 %v1190, %v1190
        %v1270 = vpack.c.bf16 %v1194, %v1194
        %v1271 = vpack.c.bf16 %v1235, %v1235
        %v1272 = vpack.c.bf16 %v1259, %v1259
        %v1273 = vpack.c.bf16 %v1242, %v1242
        %v1274 = vpack.c.bf16 %v1260, %v1260
        %v1275 = vpack.c.bf16 %v1251, %v1251
        %v1276 = vpack.c.bf16 %v1261, %v1261
        %v1277 = vpack.c.bf16 %v1258, %v1258
        %v1278 = vpack.c.bf16 %v1262, %v1262
        %1279 = vrot.lane.b32.xlu0 %v1026, 96
        %v1280 = vpop.permute.xlu0 %1279
        %1281 = vrot.lane.b32.xlu0 %v1029, 96
        %v1282 = vpop.permute.xlu0 %1281
        %1283 = vrot.lane.b32.xlu0 %v1110, 96
        %v1284 = vpop.permute.xlu0 %1283
        %1285 = vrot.lane.b32.xlu0 %v1112, 96
        %v1286 = vpop.permute.xlu0 %1285
        %1287 = vrot.lane.b32.xlu0 %v1116, 96
        %v1288 = vpop.permute.xlu0 %1287
        %1289 = vrot.lane.b32.xlu0 %v1118, 96
        %v1290 = vpop.permute.xlu0 %1289
        %1291 = vrot.lane.b32.xlu0 %v1122, 96
        %v1292 = vpop.permute.xlu0 %1291
        %1293 = vrot.lane.b32.xlu0 %v1124, 96
        %v1294 = vpop.permute.xlu0 %1293
        %v1303 = vcombine.low %v1280, %v1288
        %v1304 = vcombine.high %v1280, %v1288
        %v1306 = vunpack.c.l.s4 1983009808
        %v1307 = vunpack.c.0.s8 %v1306
        %v1308 = vlaneseq
        %v1309 = vshrl.u32 %v1308, 7
        %v1310 = vsub.s32 %v1307, %v1309
        %v1311 = vrot.slane %v1303, %v1310
        %v1313 = vunpack.c.l.s4 1983009808
        %v1314 = vunpack.c.0.s8 %v1313
        %v1315 = vlaneseq
        %v1316 = vshrl.u32 %v1315, 7
        %v1317 = vsub.s32 %v1314, %v1316
        %v1318 = vrot.slane %v1304, %v1317
        %v1319 = vcombine.low %v1284, %v1292
        %v1320 = vcombine.high %v1284, %v1292
        %v1322 = vunpack.c.l.s4 1983009808
        %v1323 = vunpack.c.0.s8 %v1322
        %v1324 = vlaneseq
        %v1325 = vshrl.u32 %v1324, 7
        %v1326 = vsub.s32 %v1323, %v1325
        %v1327 = vrot.slane %v1319, %v1326
        %v1329 = vunpack.c.l.s4 1983009808
        %v1330 = vunpack.c.0.s8 %v1329
        %v1331 = vlaneseq
        %v1332 = vshrl.u32 %v1331, 7
        %v1333 = vsub.s32 %v1330, %v1332
        %v1334 = vrot.slane %v1320, %v1333
        %v1335 = vcombine.low %v1311, %v1327
        %v1336 = vcombine.high %v1311, %v1327
        %v1338 = vunpack.c.l.s4 1934713408
        %v1339 = vunpack.c.0.s8 %v1338
        %v1340 = vlaneseq
        %v1341 = vshrl.u32 %v1340, 7
        %v1342 = vsub.s32 %v1339, %v1341
        %v1343 = vrot.slane %v1335, %v1342
        %v1345 = vunpack.c.l.s4 1934713408
        %v1346 = vunpack.c.0.s8 %v1345
        %v1347 = vlaneseq
        %v1348 = vshrl.u32 %v1347, 7
        %v1349 = vsub.s32 %v1346, %v1348
        %v1350 = vrot.slane %v1336, %v1349
        %v1351 = vcombine.low %v1318, %v1334
        %v1352 = vcombine.high %v1318, %v1334
        %v1354 = vunpack.c.l.s4 1934713408
        %v1355 = vunpack.c.0.s8 %v1354
        %v1356 = vlaneseq
        %v1357 = vshrl.u32 %v1356, 7
        %v1358 = vsub.s32 %v1355, %v1357
        %v1359 = vrot.slane %v1351, %v1358
        %v1361 = vunpack.c.l.s4 1934713408
        %v1362 = vunpack.c.0.s8 %v1361
        %v1363 = vlaneseq
        %v1364 = vshrl.u32 %v1363, 7
        %v1365 = vsub.s32 %v1362, %v1364
        %v1366 = vrot.slane %v1352, %v1365
        %v1367 = vcombine.high %v1343, 0.0
        %v1368 = vcombine.high %v1350, 0.0
        %v1369 = vcombine.high %v1359, 0.0
        %v1370 = vcombine.high %v1366, 0.0
        %v1371 = vcombine.low %v1282, %v1290
        %v1372 = vcombine.high %v1282, %v1290
        %v1374 = vunpack.c.l.s4 1983009808
        %v1375 = vunpack.c.0.s8 %v1374
        %v1376 = vlaneseq
        %v1377 = vshrl.u32 %v1376, 7
        %v1378 = vsub.s32 %v1375, %v1377
        %v1379 = vrot.slane %v1371, %v1378
        %v1381 = vunpack.c.l.s4 1983009808
        %v1382 = vunpack.c.0.s8 %v1381
        %v1383 = vlaneseq
        %v1384 = vshrl.u32 %v1383, 7
        %v1385 = vsub.s32 %v1382, %v1384
        %v1386 = vrot.slane %v1372, %v1385
        %v1387 = vcombine.low %v1286, %v1294
        %v1388 = vcombine.high %v1286, %v1294
        %v1390 = vunpack.c.l.s4 1983009808
        %v1391 = vunpack.c.0.s8 %v1390
        %v1392 = vlaneseq
        %v1393 = vshrl.u32 %v1392, 7
        %v1394 = vsub.s32 %v1391, %v1393
        %v1395 = vrot.slane %v1387, %v1394
        %v1397 = vunpack.c.l.s4 1983009808
        %v1398 = vunpack.c.0.s8 %v1397
        %v1399 = vlaneseq
        %v1400 = vshrl.u32 %v1399, 7
        %v1401 = vsub.s32 %v1398, %v1400
        %v1402 = vrot.slane %v1388, %v1401
        %v1403 = vcombine.low %v1379, %v1395
        %v1404 = vcombine.high %v1379, %v1395
        %v1406 = vunpack.c.l.s4 1934713408
        %v1407 = vunpack.c.0.s8 %v1406
        %v1408 = vlaneseq
        %v1409 = vshrl.u32 %v1408, 7
        %v1410 = vsub.s32 %v1407, %v1409
        %v1411 = vrot.slane %v1403, %v1410
        %v1413 = vunpack.c.l.s4 1934713408
        %v1414 = vunpack.c.0.s8 %v1413
        %v1415 = vlaneseq
        %v1416 = vshrl.u32 %v1415, 7
        %v1417 = vsub.s32 %v1414, %v1416
        %v1418 = vrot.slane %v1404, %v1417
        %v1419 = vcombine.low %v1386, %v1402
        %v1420 = vcombine.high %v1386, %v1402
        %v1422 = vunpack.c.l.s4 1934713408
        %v1423 = vunpack.c.0.s8 %v1422
        %v1424 = vlaneseq
        %v1425 = vshrl.u32 %v1424, 7
        %v1426 = vsub.s32 %v1423, %v1425
        %v1427 = vrot.slane %v1419, %v1426
        %v1429 = vunpack.c.l.s4 1934713408
        %v1430 = vunpack.c.0.s8 %v1429
        %v1431 = vlaneseq
        %v1432 = vshrl.u32 %v1431, 7
        %v1433 = vsub.s32 %v1430, %v1432
        %v1434 = vrot.slane %v1420, %v1433
        %v1435 = vcombine.high %v1411, 0.0
        %v1436 = vcombine.high %v1418, 0.0
        %v1437 = vcombine.high %v1427, 0.0
        %v1438 = vcombine.high %v1434, 0.0
        %v1439 = vpack.c.bf16 %v1343, %v1343
        %v1440 = vpack.c.bf16 %v1367, %v1367
        %v1441 = vpack.c.bf16 %v1350, %v1350
        %v1442 = vpack.c.bf16 %v1368, %v1368
        %v1443 = vpack.c.bf16 %v1359, %v1359
        %v1444 = vpack.c.bf16 %v1369, %v1369
        %v1445 = vpack.c.bf16 %v1366, %v1366
        %v1446 = vpack.c.bf16 %v1370, %v1370
        %v1447 = vpack.c.bf16 %v1411, %v1411
        %v1448 = vpack.c.bf16 %v1435, %v1435
        %v1449 = vpack.c.bf16 %v1418, %v1418
        %v1450 = vpack.c.bf16 %v1436, %v1436
        %v1451 = vpack.c.bf16 %v1427, %v1427
        %v1452 = vpack.c.bf16 %v1437, %v1437
        %v1453 = vpack.c.bf16 %v1434, %v1434
        %v1454 = vpack.c.bf16 %v1438, %v1438
        %1456 = vrot.lane.b32.xlu0 %v1067, 120
        %v1457 = vpop.permute.xlu0 %1456
        %1459 = vrot.lane.b32.xlu0 %v1067, 112
        %v1460 = vpop.permute.xlu0 %1459
        %1462 = vrot.lane.b32.xlu0 %v1067, 104
        %v1463 = vpop.permute.xlu0 %1462
        %v1465 = vcombine.low %v1067, %v1460
        %v1467 = vunpack.c.l.s4 1983009808
        %v1468 = vunpack.c.0.s8 %v1467
        %v1469 = vlaneseq
        %v1470 = vshrl.u32 %v1469, 7
        %v1471 = vsub.s32 %v1468, %v1470
        %v1472 = vrot.slane %v1465, %v1471
        %v1473 = vcombine.low %v1457, %v1463
        %v1475 = vunpack.c.l.s4 1983009808
        %v1476 = vunpack.c.0.s8 %v1475
        %v1477 = vlaneseq
        %v1478 = vshrl.u32 %v1477, 7
        %v1479 = vsub.s32 %v1476, %v1478
        %v1480 = vrot.slane %v1473, %v1479
        %v1481 = vcombine.low %v1472, %v1480
        %v1483 = vunpack.c.l.s4 1934713408
        %v1484 = vunpack.c.0.s8 %v1483
        %v1485 = vlaneseq
        %v1486 = vshrl.u32 %v1485, 7
        %v1487 = vsub.s32 %v1484, %v1486
        %v1488 = vrot.slane %v1481, %v1487
        %v1489 = vcombine.high %v1488, 0.0
        %1490 = vrot.lane.b32.xlu0 %v1067, 96
        %v1491 = vpop.permute.xlu0 %1490
        %1492 = vrot.lane.b32.xlu0 %v1457, 96
        %v1493 = vpop.permute.xlu0 %1492
        %1494 = vrot.lane.b32.xlu0 %v1460, 96
        %v1495 = vpop.permute.xlu0 %1494
        %1496 = vrot.lane.b32.xlu0 %v1463, 96
        %v1497 = vpop.permute.xlu0 %1496
        %v1502 = vcombine.low %v1491, %v1495
        %v1504 = vunpack.c.l.s4 1983009808
        %v1505 = vunpack.c.0.s8 %v1504
        %v1506 = vlaneseq
        %v1507 = vshrl.u32 %v1506, 7
        %v1508 = vsub.s32 %v1505, %v1507
        %v1509 = vrot.slane %v1502, %v1508
        %v1510 = vcombine.low %v1493, %v1497
        %v1512 = vunpack.c.l.s4 1983009808
        %v1513 = vunpack.c.0.s8 %v1512
        %v1514 = vlaneseq
        %v1515 = vshrl.u32 %v1514, 7
        %v1516 = vsub.s32 %v1513, %v1515
        %v1517 = vrot.slane %v1510, %v1516
        %v1518 = vcombine.low %v1509, %v1517
        %v1520 = vunpack.c.l.s4 1934713408
        %v1521 = vunpack.c.0.s8 %v1520
        %v1522 = vlaneseq
        %v1523 = vshrl.u32 %v1522, 7
        %v1524 = vsub.s32 %v1521, %v1523
        %v1525 = vrot.slane %v1518, %v1524
        %v1526 = vcombine.high %v1525, 0.0
        %v1527 = vpack.c.bf16 %v1105, %v1105
        %v1529 = vunpack.c.l.s4 1934713408
        %v1530 = vunpack.c.0.s8 %v1529
        %v1531 = vlaneseq
        %v1532 = vshrl.u32 %v1531, 7
        %v1533 = vsub.s32 %v1530, %v1532
        %v1534 = vrot.slane %v1527, %v1533
        %v1535 = vcombine.high %v1534, 0
        %v1536 = vpack.c.bf16 %v1106, %v1106
        %v1538 = vunpack.c.l.s4 1934713408
        %v1539 = vunpack.c.0.s8 %v1538
        %v1540 = vlaneseq
        %v1541 = vshrl.u32 %v1540, 7
        %v1542 = vsub.s32 %v1539, %v1541
        %v1543 = vrot.slane %v1536, %v1542
        %v1544 = vcombine.high %v1543, 0
        %v1547 = vpack.i.b16 %v1543, %v1534
        %v1548 = vshrl.u32 %v1534, 16
        %v1549 = vshrl.u32 %v1543, 16
        %v1550 = vpack.i.b16 %v1549, %v1548
        %v1553 = vpack.i.b16 %v1544, %v1535
        %v1554 = vshrl.u32 %v1535, 16
        %v1555 = vshrl.u32 %v1544, 16
        %v1556 = vpack.i.b16 %v1555, %v1554
        %1557 = vxpose.xlu0.c.b16.start [1/8] %v1263, 128
        %1558 = vxpose.xlu0.c.b16.cont [2/8] 0, 128
        %1559 = vxpose.xlu0.c.b16.cont [3/8] 0, 128
        %1560 = vxpose.xlu0.c.b16.cont [4/8] 0, 128
        %1561 = vxpose.xlu0.c.b16.cont [5/8] 0, 128
        %1562 = vxpose.xlu0.c.b16.cont [6/8] 0, 128
        %1563 = vxpose.xlu0.c.b16.cont [7/8] 0, 128
        %1564 = vxpose.xlu0.c.b16.end [8/8] 0, 128
        %v1565 = vpop.trf.xlu0
        %v1566 = vpop.trf.xlu0
        %v1567 = vpop.trf.xlu0
        %v1568 = vpop.trf.xlu0
        %v1569 = vpop.trf.xlu0
        %v1570 = vpop.trf.xlu0
        %v1571 = vpop.trf.xlu0
        %v1572 = vpop.trf.xlu0
        %1573 = vxpose.xlu0.c.b16.start [1/8] %v1264, 128
        %1574 = vxpose.xlu0.c.b16.cont [2/8] 0, 128
        %1575 = vxpose.xlu0.c.b16.cont [3/8] 0, 128
        %1576 = vxpose.xlu0.c.b16.cont [4/8] 0, 128
        %1577 = vxpose.xlu0.c.b16.cont [5/8] 0, 128
        %1578 = vxpose.xlu0.c.b16.cont [6/8] 0, 128
        %1579 = vxpose.xlu0.c.b16.cont [7/8] 0, 128
        %1580 = vxpose.xlu0.c.b16.end [8/8] 0, 128
        %v1581 = vpop.trf.xlu0
        %v1582 = vpop.trf.xlu0
        %v1583 = vpop.trf.xlu0
        %v1584 = vpop.trf.xlu0
        %v1585 = vpop.trf.xlu0
        %v1586 = vpop.trf.xlu0
        %v1587 = vpop.trf.xlu0
        %v1588 = vpop.trf.xlu0
        %1589 = vxpose.xlu0.c.b16.start [1/8] %v1265, 128
        %1590 = vxpose.xlu0.c.b16.cont [2/8] 0, 128
        %1591 = vxpose.xlu0.c.b16.cont [3/8] 0, 128
        %1592 = vxpose.xlu0.c.b16.cont [4/8] 0, 128
        %1593 = vxpose.xlu0.c.b16.cont [5/8] 0, 128
        %1594 = vxpose.xlu0.c.b16.cont [6/8] 0, 128
        %1595 = vxpose.xlu0.c.b16.cont [7/8] 0, 128
        %1596 = vxpose.xlu0.c.b16.end [8/8] 0, 128
        %v1597 = vpop.trf.xlu0
        %v1598 = vpop.trf.xlu0
        %v1599 = vpop.trf.xlu0
        %v1600 = vpop.trf.xlu0
        %v1601 = vpop.trf.xlu0
        %v1602 = vpop.trf.xlu0
        %v1603 = vpop.trf.xlu0
        %v1604 = vpop.trf.xlu0
        %1605 = vxpose.xlu0.c.b16.start [1/8] %v1266, 128
        %1606 = vxpose.xlu0.c.b16.cont [2/8] 0, 128
        %1607 = vxpose.xlu0.c.b16.cont [3/8] 0, 128
        %1608 = vxpose.xlu0.c.b16.cont [4/8] 0, 128
        %1609 = vxpose.xlu0.c.b16.cont [5/8] 0, 128
        %1610 = vxpose.xlu0.c.b16.cont [6/8] 0, 128
        %1611 = vxpose.xlu0.c.b16.cont [7/8] 0, 128
        %1612 = vxpose.xlu0.c.b16.end [8/8] 0, 128
        %v1613 = vpop.trf.xlu0
        %v1614 = vpop.trf.xlu0
        %v1615 = vpop.trf.xlu0
        %v1616 = vpop.trf.xlu0
        %v1617 = vpop.trf.xlu0
        %v1618 = vpop.trf.xlu0
        %v1619 = vpop.trf.xlu0
        %v1620 = vpop.trf.xlu0
        %1621 = vxpose.xlu0.c.b16.start [1/8] %v1267, 128
        %1622 = vxpose.xlu0.c.b16.cont [2/8] 0, 128
        %1623 = vxpose.xlu0.c.b16.cont [3/8] 0, 128
        %1624 = vxpose.xlu0.c.b16.cont [4/8] 0, 128
        %1625 = vxpose.xlu0.c.b16.cont [5/8] 0, 128
        %1626 = vxpose.xlu0.c.b16.cont [6/8] 0, 128
        %1627 = vxpose.xlu0.c.b16.cont [7/8] 0, 128
        %1628 = vxpose.xlu0.c.b16.end [8/8] 0, 128
        %v1629 = vpop.trf.xlu0
        %v1630 = vpop.trf.xlu0
        %v1631 = vpop.trf.xlu0
        %v1632 = vpop.trf.xlu0
        %v1633 = vpop.trf.xlu0
        %v1634 = vpop.trf.xlu0
        %v1635 = vpop.trf.xlu0
        %v1636 = vpop.trf.xlu0
        %1637 = vxpose.xlu0.c.b16.start [1/8] %v1268, 128
        %1638 = vxpose.xlu0.c.b16.cont [2/8] 0, 128
        %1639 = vxpose.xlu0.c.b16.cont [3/8] 0, 128
        %1640 = vxpose.xlu0.c.b16.cont [4/8] 0, 128
        %1641 = vxpose.xlu0.c.b16.cont [5/8] 0, 128
        %1642 = vxpose.xlu0.c.b16.cont [6/8] 0, 128
        %1643 = vxpose.xlu0.c.b16.cont [7/8] 0, 128
        %1644 = vxpose.xlu0.c.b16.end [8/8] 0, 128
        %v1645 = vpop.trf.xlu0
        %v1646 = vpop.trf.xlu0
        %v1647 = vpop.trf.xlu0
        %v1648 = vpop.trf.xlu0
        %v1649 = vpop.trf.xlu0
        %v1650 = vpop.trf.xlu0
        %v1651 = vpop.trf.xlu0
        %v1652 = vpop.trf.xlu0
        %1653 = vxpose.xlu0.c.b16.start [1/8] %v1269, 128
        %1654 = vxpose.xlu0.c.b16.cont [2/8] 0, 128
        %1655 = vxpose.xlu0.c.b16.cont [3/8] 0, 128
        %1656 = vxpose.xlu0.c.b16.cont [4/8] 0, 128
        %1657 = vxpose.xlu0.c.b16.cont [5/8] 0, 128
        %1658 = vxpose.xlu0.c.b16.cont [6/8] 0, 128
        %1659 = vxpose.xlu0.c.b16.cont [7/8] 0, 128
        %1660 = vxpose.xlu0.c.b16.end [8/8] 0, 128
        %v1661 = vpop.trf.xlu0
        %v1662 = vpop.trf.xlu0
        %v1663 = vpop.trf.xlu0
        %v1664 = vpop.trf.xlu0
        %v1665 = vpop.trf.xlu0
        %v1666 = vpop.trf.xlu0
        %v1667 = vpop.trf.xlu0
        %v1668 = vpop.trf.xlu0
        %1669 = vxpose.xlu0.c.b16.start [1/8] %v1270, 128
        %1670 = vxpose.xlu0.c.b16.cont [2/8] 0, 128
        %1671 = vxpose.xlu0.c.b16.cont [3/8] 0, 128
        %1672 = vxpose.xlu0.c.b16.cont [4/8] 0, 128
        %1673 = vxpose.xlu0.c.b16.cont [5/8] 0, 128
        %1674 = vxpose.xlu0.c.b16.cont [6/8] 0, 128
        %1675 = vxpose.xlu0.c.b16.cont [7/8] 0, 128
        %1676 = vxpose.xlu0.c.b16.end [8/8] 0, 128
        %v1677 = vpop.trf.xlu0
        %v1678 = vpop.trf.xlu0
        %v1679 = vpop.trf.xlu0
        %v1680 = vpop.trf.xlu0
        %v1681 = vpop.trf.xlu0
        %v1682 = vpop.trf.xlu0
        %v1683 = vpop.trf.xlu0
        %v1684 = vpop.trf.xlu0
        %1685 = vxpose.xlu0.c.b16.start [1/8] %v1271, 128
        %1686 = vxpose.xlu0.c.b16.cont [2/8] 0, 128
        %1687 = vxpose.xlu0.c.b16.cont [3/8] 0, 128
        %1688 = vxpose.xlu0.c.b16.cont [4/8] 0, 128
        %1689 = vxpose.xlu0.c.b16.cont [5/8] 0, 128
        %1690 = vxpose.xlu0.c.b16.cont [6/8] 0, 128
        %1691 = vxpose.xlu0.c.b16.cont [7/8] 0, 128
        %1692 = vxpose.xlu0.c.b16.end [8/8] 0, 128
        %v1693 = vpop.trf.xlu0
        %v1694 = vpop.trf.xlu0
        %v1695 = vpop.trf.xlu0
        %v1696 = vpop.trf.xlu0
        %v1697 = vpop.trf.xlu0
        %v1698 = vpop.trf.xlu0
        %v1699 = vpop.trf.xlu0
        %v1700 = vpop.trf.xlu0
        %1701 = vxpose.xlu0.c.b16.start [1/8] %v1272, 128
        %1702 = vxpose.xlu0.c.b16.cont [2/8] 0, 128
        %1703 = vxpose.xlu0.c.b16.cont [3/8] 0, 128
        %1704 = vxpose.xlu0.c.b16.cont [4/8] 0, 128
        %1705 = vxpose.xlu0.c.b16.cont [5/8] 0, 128
        %1706 = vxpose.xlu0.c.b16.cont [6/8] 0, 128
        %1707 = vxpose.xlu0.c.b16.cont [7/8] 0, 128
        %1708 = vxpose.xlu0.c.b16.end [8/8] 0, 128
        %v1709 = vpop.trf.xlu0
        %v1710 = vpop.trf.xlu0
        %v1711 = vpop.trf.xlu0
        %v1712 = vpop.trf.xlu0
        %v1713 = vpop.trf.xlu0
        %v1714 = vpop.trf.xlu0
        %v1715 = vpop.trf.xlu0
        %v1716 = vpop.trf.xlu0
        %1717 = vxpose.xlu0.c.b16.start [1/8] %v1273, 128
        %1718 = vxpose.xlu0.c.b16.cont [2/8] 0, 128
        %1719 = vxpose.xlu0.c.b16.cont [3/8] 0, 128
        %1720 = vxpose.xlu0.c.b16.cont [4/8] 0, 128
        %1721 = vxpose.xlu0.c.b16.cont [5/8] 0, 128
        %1722 = vxpose.xlu0.c.b16.cont [6/8] 0, 128
        %1723 = vxpose.xlu0.c.b16.cont [7/8] 0, 128
        %1724 = vxpose.xlu0.c.b16.end [8/8] 0, 128
        %v1725 = vpop.trf.xlu0
        %v1726 = vpop.trf.xlu0
        %v1727 = vpop.trf.xlu0
        %v1728 = vpop.trf.xlu0
        %v1729 = vpop.trf.xlu0
        %v1730 = vpop.trf.xlu0
        %v1731 = vpop.trf.xlu0
        %v1732 = vpop.trf.xlu0
        %1733 = vxpose.xlu0.c.b16.start [1/8] %v1274, 128
        %1734 = vxpose.xlu0.c.b16.cont [2/8] 0, 128
        %1735 = vxpose.xlu0.c.b16.cont [3/8] 0, 128
        %1736 = vxpose.xlu0.c.b16.cont [4/8] 0, 128
        %1737 = vxpose.xlu0.c.b16.cont [5/8] 0, 128
        %1738 = vxpose.xlu0.c.b16.cont [6/8] 0, 128
        %1739 = vxpose.xlu0.c.b16.cont [7/8] 0, 128
        %1740 = vxpose.xlu0.c.b16.end [8/8] 0, 128
        %v1741 = vpop.trf.xlu0
        %v1742 = vpop.trf.xlu0
        %v1743 = vpop.trf.xlu0
        %v1744 = vpop.trf.xlu0
        %v1745 = vpop.trf.xlu0
        %v1746 = vpop.trf.xlu0
        %v1747 = vpop.trf.xlu0
        %v1748 = vpop.trf.xlu0
        %1749 = vxpose.xlu0.c.b16.start [1/8] %v1275, 128
        %1750 = vxpose.xlu0.c.b16.cont [2/8] 0, 128
        %1751 = vxpose.xlu0.c.b16.cont [3/8] 0, 128
        %1752 = vxpose.xlu0.c.b16.cont [4/8] 0, 128
        %1753 = vxpose.xlu0.c.b16.cont [5/8] 0, 128
        %1754 = vxpose.xlu0.c.b16.cont [6/8] 0, 128
        %1755 = vxpose.xlu0.c.b16.cont [7/8] 0, 128
        %1756 = vxpose.xlu0.c.b16.end [8/8] 0, 128
        %v1757 = vpop.trf.xlu0
        %v1758 = vpop.trf.xlu0
        %v1759 = vpop.trf.xlu0
        %v1760 = vpop.trf.xlu0
        %v1761 = vpop.trf.xlu0
        %v1762 = vpop.trf.xlu0
        %v1763 = vpop.trf.xlu0
        %v1764 = vpop.trf.xlu0
        %1765 = vxpose.xlu0.c.b16.start [1/8] %v1276, 128
        %1766 = vxpose.xlu0.c.b16.cont [2/8] 0, 128
        %1767 = vxpose.xlu0.c.b16.cont [3/8] 0, 128
        %1768 = vxpose.xlu0.c.b16.cont [4/8] 0, 128
        %1769 = vxpose.xlu0.c.b16.cont [5/8] 0, 128
        %1770 = vxpose.xlu0.c.b16.cont [6/8] 0, 128
        %1771 = vxpose.xlu0.c.b16.cont [7/8] 0, 128
        %1772 = vxpose.xlu0.c.b16.end [8/8] 0, 128
        %v1773 = vpop.trf.xlu0
        %v1774 = vpop.trf.xlu0
        %v1775 = vpop.trf.xlu0
        %v1776 = vpop.trf.xlu0
        %v1777 = vpop.trf.xlu0
        %v1778 = vpop.trf.xlu0
        %v1779 = vpop.trf.xlu0
        %v1780 = vpop.trf.xlu0
        %1781 = vxpose.xlu0.c.b16.start [1/8] %v1277, 128
        %1782 = vxpose.xlu0.c.b16.cont [2/8] 0, 128
        %1783 = vxpose.xlu0.c.b16.cont [3/8] 0, 128
        %1784 = vxpose.xlu0.c.b16.cont [4/8] 0, 128
        %1785 = vxpose.xlu0.c.b16.cont [5/8] 0, 128
        %1786 = vxpose.xlu0.c.b16.cont [6/8] 0, 128
        %1787 = vxpose.xlu0.c.b16.cont [7/8] 0, 128
        %1788 = vxpose.xlu0.c.b16.end [8/8] 0, 128
        %v1789 = vpop.trf.xlu0
        %v1790 = vpop.trf.xlu0
        %v1791 = vpop.trf.xlu0
        %v1792 = vpop.trf.xlu0
        %v1793 = vpop.trf.xlu0
        %v1794 = vpop.trf.xlu0
        %v1795 = vpop.trf.xlu0
        %v1796 = vpop.trf.xlu0
        %1797 = vxpose.xlu0.c.b16.start [1/8] %v1278, 128
        %1798 = vxpose.xlu0.c.b16.cont [2/8] 0, 128
        %1799 = vxpose.xlu0.c.b16.cont [3/8] 0, 128
        %1800 = vxpose.xlu0.c.b16.cont [4/8] 0, 128
        %1801 = vxpose.xlu0.c.b16.cont [5/8] 0, 128
        %1802 = vxpose.xlu0.c.b16.cont [6/8] 0, 128
        %1803 = vxpose.xlu0.c.b16.cont [7/8] 0, 128
        %1804 = vxpose.xlu0.c.b16.end [8/8] 0, 128
        %v1805 = vpop.trf.xlu0
        %v1806 = vpop.trf.xlu0
        %v1807 = vpop.trf.xlu0
        %v1808 = vpop.trf.xlu0
        %v1809 = vpop.trf.xlu0
        %v1810 = vpop.trf.xlu0
        %v1811 = vpop.trf.xlu0
        %v1812 = vpop.trf.xlu0
        %v1813 = vcombine.low %v1565, %v1629
        %v1815 = vunpack.c.l.s4 1983009808
        %v1816 = vunpack.c.0.s8 %v1815
        %v1817 = vlaneseq
        %v1818 = vshrl.u32 %v1817, 7
        %v1819 = vsub.s32 %v1816, %v1818
        %v1820 = vrot.slane %v1813, %v1819
        %v1821 = vcombine.low %v1597, %v1661
        %v1823 = vunpack.c.l.s4 1983009808
        %v1824 = vunpack.c.0.s8 %v1823
        %v1825 = vlaneseq
        %v1826 = vshrl.u32 %v1825, 7
        %v1827 = vsub.s32 %v1824, %v1826
        %v1828 = vrot.slane %v1821, %v1827
        %v1829 = vcombine.low %v1693, %v1757
        %v1831 = vunpack.c.l.s4 1983009808
        %v1832 = vunpack.c.0.s8 %v1831
        %v1833 = vlaneseq
        %v1834 = vshrl.u32 %v1833, 7
        %v1835 = vsub.s32 %v1832, %v1834
        %v1836 = vrot.slane %v1829, %v1835
        %v1837 = vcombine.low %v1725, %v1789
        %v1839 = vunpack.c.l.s4 1983009808
        %v1840 = vunpack.c.0.s8 %v1839
        %v1841 = vlaneseq
        %v1842 = vshrl.u32 %v1841, 7
        %v1843 = vsub.s32 %v1840, %v1842
        %v1844 = vrot.slane %v1837, %v1843
        %v1845 = vcombine.low %v1820, %v1828
        %v1846 = vcombine.high %v1820, %v1828
        %v1848 = vunpack.c.l.s4 1934713408
        %v1849 = vunpack.c.0.s8 %v1848
        %v1850 = vlaneseq
        %v1851 = vshrl.u32 %v1850, 7
        %v1852 = vsub.s32 %v1849, %v1851
        %v1853 = vrot.slane %v1845, %v1852
        %v1855 = vunpack.c.l.s4 1934713408
        %v1856 = vunpack.c.0.s8 %v1855
        %v1857 = vlaneseq
        %v1858 = vshrl.u32 %v1857, 7
        %v1859 = vsub.s32 %v1856, %v1858
        %v1860 = vrot.slane %v1846, %v1859
        %v1861 = vcombine.low %v1836, %v1844
        %v1862 = vcombine.high %v1836, %v1844
        %v1864 = vunpack.c.l.s4 1934713408
        %v1865 = vunpack.c.0.s8 %v1864
        %v1866 = vlaneseq
        %v1867 = vshrl.u32 %v1866, 7
        %v1868 = vsub.s32 %v1865, %v1867
        %v1869 = vrot.slane %v1861, %v1868
        %v1871 = vunpack.c.l.s4 1934713408
        %v1872 = vunpack.c.0.s8 %v1871
        %v1873 = vlaneseq
        %v1874 = vshrl.u32 %v1873, 7
        %v1875 = vsub.s32 %v1872, %v1874
        %v1876 = vrot.slane %v1862, %v1875
        %v1877 = vcombine.low %v1853, %v1869
        %v1878 = vcombine.high %v1853, %v1869
        %v1879 = vcombine.low %v1860, %v1876
        %v1880 = vcombine.high %v1860, %v1876
        %v1881 = vcombine.low %v1581, %v1645
        %v1883 = vunpack.c.l.s4 1983009808
        %v1884 = vunpack.c.0.s8 %v1883
        %v1885 = vlaneseq
        %v1886 = vshrl.u32 %v1885, 7
        %v1887 = vsub.s32 %v1884, %v1886
        %v1888 = vrot.slane %v1881, %v1887
        %v1889 = vcombine.low %v1613, %v1677
        %v1891 = vunpack.c.l.s4 1983009808
        %v1892 = vunpack.c.0.s8 %v1891
        %v1893 = vlaneseq
        %v1894 = vshrl.u32 %v1893, 7
        %v1895 = vsub.s32 %v1892, %v1894
        %v1896 = vrot.slane %v1889, %v1895
        %v1897 = vcombine.low %v1709, %v1773
        %v1899 = vunpack.c.l.s4 1983009808
        %v1900 = vunpack.c.0.s8 %v1899
        %v1901 = vlaneseq
        %v1902 = vshrl.u32 %v1901, 7
        %v1903 = vsub.s32 %v1900, %v1902
        %v1904 = vrot.slane %v1897, %v1903
        %v1905 = vcombine.low %v1741, %v1805
        %v1907 = vunpack.c.l.s4 1983009808
        %v1908 = vunpack.c.0.s8 %v1907
        %v1909 = vlaneseq
        %v1910 = vshrl.u32 %v1909, 7
        %v1911 = vsub.s32 %v1908, %v1910
        %v1912 = vrot.slane %v1905, %v1911
        %v1913 = vcombine.low %v1888, %v1896
        %v1914 = vcombine.high %v1888, %v1896
        %v1916 = vunpack.c.l.s4 1934713408
        %v1917 = vunpack.c.0.s8 %v1916
        %v1918 = vlaneseq
        %v1919 = vshrl.u32 %v1918, 7
        %v1920 = vsub.s32 %v1917, %v1919
        %v1921 = vrot.slane %v1913, %v1920
        %v1923 = vunpack.c.l.s4 1934713408
        %v1924 = vunpack.c.0.s8 %v1923
        %v1925 = vlaneseq
        %v1926 = vshrl.u32 %v1925, 7
        %v1927 = vsub.s32 %v1924, %v1926
        %v1928 = vrot.slane %v1914, %v1927
        %v1929 = vcombine.low %v1904, %v1912
        %v1930 = vcombine.high %v1904, %v1912
        %v1932 = vunpack.c.l.s4 1934713408
        %v1933 = vunpack.c.0.s8 %v1932
        %v1934 = vlaneseq
        %v1935 = vshrl.u32 %v1934, 7
        %v1936 = vsub.s32 %v1933, %v1935
        %v1937 = vrot.slane %v1929, %v1936
        %v1939 = vunpack.c.l.s4 1934713408
        %v1940 = vunpack.c.0.s8 %v1939
        %v1941 = vlaneseq
        %v1942 = vshrl.u32 %v1941, 7
        %v1943 = vsub.s32 %v1940, %v1942
        %v1944 = vrot.slane %v1930, %v1943
        %v1945 = vcombine.low %v1921, %v1937
        %v1946 = vcombine.high %v1921, %v1937
        %v1947 = vcombine.low %v1928, %v1944
        %v1948 = vcombine.high %v1928, %v1944
        %v1951 = vpack.i.b16 %v1945, %v1877
        %v1953 = vshrl.u32 %v1877, 16
        %v1954 = vshrl.u32 %v1945, 16
        %v1955 = vpack.i.b16 %v1954, %v1953
        %v1959 = vpack.i.b16 %v1946, %v1878
        %v1961 = vshrl.u32 %v1878, 16
        %v1962 = vshrl.u32 %v1946, 16
        %v1963 = vpack.i.b16 %v1962, %v1961
        %v1967 = vpack.i.b16 %v1947, %v1879
        %v1969 = vshrl.u32 %v1879, 16
        %v1970 = vshrl.u32 %v1947, 16
        %v1971 = vpack.i.b16 %v1970, %v1969
        %v1975 = vpack.i.b16 %v1948, %v1880
        %v1977 = vshrl.u32 %v1880, 16
        %v1978 = vshrl.u32 %v1948, 16
        %v1979 = vpack.i.b16 %v1978, %v1977
        %1981 = vxpose.xlu0.c.b16.start [1/8] %v1951, 128
        %1982 = vxpose.xlu0.c.b16.cont [2/8] 0, 128
        %1983 = vxpose.xlu0.c.b16.cont [3/8] 0, 128
        %1984 = vxpose.xlu0.c.b16.cont [4/8] 0, 128
        %1985 = vxpose.xlu0.c.b16.cont [5/8] 0, 128
        %1986 = vxpose.xlu0.c.b16.cont [6/8] 0, 128
        %1987 = vxpose.xlu0.c.b16.cont [7/8] 0, 128
        %1988 = vxpose.xlu0.c.b16.end [8/8] 0, 128
        %v1989 = vpop.trf.xlu0
        %v1990 = vpop.trf.xlu0
        %v1991 = vpop.trf.xlu0
        %v1992 = vpop.trf.xlu0
        %v1993 = vpop.trf.xlu0
        %v1994 = vpop.trf.xlu0
        %v1995 = vpop.trf.xlu0
        %v1996 = vpop.trf.xlu0
        %1997 = vxpose.xlu0.c.b16.start [1/8] %v1955, 128
        %1998 = vxpose.xlu0.c.b16.cont [2/8] 0, 128
        %1999 = vxpose.xlu0.c.b16.cont [3/8] 0, 128
        %2000 = vxpose.xlu0.c.b16.cont [4/8] 0, 128
        %2001 = vxpose.xlu0.c.b16.cont [5/8] 0, 128
        %2002 = vxpose.xlu0.c.b16.cont [6/8] 0, 128
        %2003 = vxpose.xlu0.c.b16.cont [7/8] 0, 128
        %2004 = vxpose.xlu0.c.b16.end [8/8] 0, 128
        %v2005 = vpop.trf.xlu0
        %v2006 = vpop.trf.xlu0
        %v2007 = vpop.trf.xlu0
        %v2008 = vpop.trf.xlu0
        %v2009 = vpop.trf.xlu0
        %v2010 = vpop.trf.xlu0
        %v2011 = vpop.trf.xlu0
        %v2012 = vpop.trf.xlu0
        %2013 = vxpose.xlu0.c.b16.start [1/8] %v1959, 128
        %2014 = vxpose.xlu0.c.b16.cont [2/8] 0, 128
        %2015 = vxpose.xlu0.c.b16.cont [3/8] 0, 128
        %2016 = vxpose.xlu0.c.b16.cont [4/8] 0, 128
        %2017 = vxpose.xlu0.c.b16.cont [5/8] 0, 128
        %2018 = vxpose.xlu0.c.b16.cont [6/8] 0, 128
        %2019 = vxpose.xlu0.c.b16.cont [7/8] 0, 128
        %2020 = vxpose.xlu0.c.b16.end [8/8] 0, 128
        %v2021 = vpop.trf.xlu0
        %v2022 = vpop.trf.xlu0
        %v2023 = vpop.trf.xlu0
        %v2024 = vpop.trf.xlu0
        %v2025 = vpop.trf.xlu0
        %v2026 = vpop.trf.xlu0
        %v2027 = vpop.trf.xlu0
        %v2028 = vpop.trf.xlu0
        %2029 = vxpose.xlu0.c.b16.start [1/8] %v1963, 128
        %2030 = vxpose.xlu0.c.b16.cont [2/8] 0, 128
        %2031 = vxpose.xlu0.c.b16.cont [3/8] 0, 128
        %2032 = vxpose.xlu0.c.b16.cont [4/8] 0, 128
        %2033 = vxpose.xlu0.c.b16.cont [5/8] 0, 128
        %2034 = vxpose.xlu0.c.b16.cont [6/8] 0, 128
        %2035 = vxpose.xlu0.c.b16.cont [7/8] 0, 128
        %2036 = vxpose.xlu0.c.b16.end [8/8] 0, 128
        %v2037 = vpop.trf.xlu0
        %v2038 = vpop.trf.xlu0
        %v2039 = vpop.trf.xlu0
        %v2040 = vpop.trf.xlu0
        %v2041 = vpop.trf.xlu0
        %v2042 = vpop.trf.xlu0
        %v2043 = vpop.trf.xlu0
        %v2044 = vpop.trf.xlu0
        %2045 = vxpose.xlu0.c.b16.start [1/8] %v1967, 128
        %2046 = vxpose.xlu0.c.b16.cont [2/8] 0, 128
        %2047 = vxpose.xlu0.c.b16.cont [3/8] 0, 128
        %2048 = vxpose.xlu0.c.b16.cont [4/8] 0, 128
        %2049 = vxpose.xlu0.c.b16.cont [5/8] 0, 128
        %2050 = vxpose.xlu0.c.b16.cont [6/8] 0, 128
        %2051 = vxpose.xlu0.c.b16.cont [7/8] 0, 128
        %2052 = vxpose.xlu0.c.b16.end [8/8] 0, 128
        %v2053 = vpop.trf.xlu0
        %v2054 = vpop.trf.xlu0
        %v2055 = vpop.trf.xlu0
        %v2056 = vpop.trf.xlu0
        %v2057 = vpop.trf.xlu0
        %v2058 = vpop.trf.xlu0
        %v2059 = vpop.trf.xlu0
        %v2060 = vpop.trf.xlu0
        %2061 = vxpose.xlu0.c.b16.start [1/8] %v1971, 128
        %2062 = vxpose.xlu0.c.b16.cont [2/8] 0, 128
        %2063 = vxpose.xlu0.c.b16.cont [3/8] 0, 128
        %2064 = vxpose.xlu0.c.b16.cont [4/8] 0, 128
        %2065 = vxpose.xlu0.c.b16.cont [5/8] 0, 128
        %2066 = vxpose.xlu0.c.b16.cont [6/8] 0, 128
        %2067 = vxpose.xlu0.c.b16.cont [7/8] 0, 128
        %2068 = vxpose.xlu0.c.b16.end [8/8] 0, 128
        %v2069 = vpop.trf.xlu0
        %v2070 = vpop.trf.xlu0
        %v2071 = vpop.trf.xlu0
        %v2072 = vpop.trf.xlu0
        %v2073 = vpop.trf.xlu0
        %v2074 = vpop.trf.xlu0
        %v2075 = vpop.trf.xlu0
        %v2076 = vpop.trf.xlu0
        %2077 = vxpose.xlu0.c.b16.start [1/8] %v1975, 128
        %2078 = vxpose.xlu0.c.b16.cont [2/8] 0, 128
        %2079 = vxpose.xlu0.c.b16.cont [3/8] 0, 128
        %2080 = vxpose.xlu0.c.b16.cont [4/8] 0, 128
        %2081 = vxpose.xlu0.c.b16.cont [5/8] 0, 128
        %2082 = vxpose.xlu0.c.b16.cont [6/8] 0, 128
        %2083 = vxpose.xlu0.c.b16.cont [7/8] 0, 128
        %2084 = vxpose.xlu0.c.b16.end [8/8] 0, 128
        %v2085 = vpop.trf.xlu0
        %v2086 = vpop.trf.xlu0
        %v2087 = vpop.trf.xlu0
        %v2088 = vpop.trf.xlu0
        %v2089 = vpop.trf.xlu0
        %v2090 = vpop.trf.xlu0
        %v2091 = vpop.trf.xlu0
        %v2092 = vpop.trf.xlu0
        %2093 = vxpose.xlu0.c.b16.start [1/8] %v1979, 128
        %2094 = vxpose.xlu0.c.b16.cont [2/8] 0, 128
        %2095 = vxpose.xlu0.c.b16.cont [3/8] 0, 128
        %2096 = vxpose.xlu0.c.b16.cont [4/8] 0, 128
        %2097 = vxpose.xlu0.c.b16.cont [5/8] 0, 128
        %2098 = vxpose.xlu0.c.b16.cont [6/8] 0, 128
        %2099 = vxpose.xlu0.c.b16.cont [7/8] 0, 128
        %2100 = vxpose.xlu0.c.b16.end [8/8] 0, 128
        %v2101 = vpop.trf.xlu0
        %v2102 = vpop.trf.xlu0
        %v2103 = vpop.trf.xlu0
        %v2104 = vpop.trf.xlu0
        %v2105 = vpop.trf.xlu0
        %v2106 = vpop.trf.xlu0
        %v2107 = vpop.trf.xlu0
        %v2108 = vpop.trf.xlu0
        %v2109 = vcombine.low %v1989, %v2053
        %v2111 = vunpack.c.l.s4 1983009808
        %v2112 = vunpack.c.0.s8 %v2111
        %v2113 = vlaneseq
        %v2114 = vshrl.u32 %v2113, 7
        %v2115 = vsub.s32 %v2112, %v2114
        %v2116 = vrot.slane %v2109, %v2115
        %v2117 = vcombine.low %v2021, %v2085
        %v2119 = vunpack.c.l.s4 1983009808
        %v2120 = vunpack.c.0.s8 %v2119
        %v2121 = vlaneseq
        %v2122 = vshrl.u32 %v2121, 7
        %v2123 = vsub.s32 %v2120, %v2122
        %v2124 = vrot.slane %v2117, %v2123
        %v2125 = vcombine.low %v2116, %v2124
        %v2127 = vunpack.c.l.s4 1934713408
        %v2128 = vunpack.c.0.s8 %v2127
        %v2129 = vlaneseq
        %v2130 = vshrl.u32 %v2129, 7
        %v2131 = vsub.s32 %v2128, %v2130
        %v2132 = vrot.slane %v2125, %v2131
        %v2133 = vcombine.high %v2132, 0
        %v2134 = vcombine.low %v2005, %v2069
        %v2136 = vunpack.c.l.s4 1983009808
        %v2137 = vunpack.c.0.s8 %v2136
        %v2138 = vlaneseq
        %v2139 = vshrl.u32 %v2138, 7
        %v2140 = vsub.s32 %v2137, %v2139
        %v2141 = vrot.slane %v2134, %v2140
        %v2142 = vcombine.low %v2037, %v2101
        %v2144 = vunpack.c.l.s4 1983009808
        %v2145 = vunpack.c.0.s8 %v2144
        %v2146 = vlaneseq
        %v2147 = vshrl.u32 %v2146, 7
        %v2148 = vsub.s32 %v2145, %v2147
        %v2149 = vrot.slane %v2142, %v2148
        %v2150 = vcombine.low %v2141, %v2149
        %v2152 = vunpack.c.l.s4 1934713408
        %v2153 = vunpack.c.0.s8 %v2152
        %v2154 = vlaneseq
        %v2155 = vshrl.u32 %v2154, 7
        %v2156 = vsub.s32 %v2153, %v2155
        %v2157 = vrot.slane %v2150, %v2156
        %v2158 = vcombine.high %v2157, 0
        %v2161 = vpack.i.b16 %v2157, %v2132
        %v2162 = vshrl.u32 %v2132, 16
        %v2163 = vshrl.u32 %v2157, 16
        %v2164 = vpack.i.b16 %v2163, %v2162
        %v2167 = vpack.i.b16 %v2158, %v2133
        %v2168 = vshrl.u32 %v2133, 16
        %v2169 = vshrl.u32 %v2158, 16
        %v2170 = vpack.i.b16 %v2169, %v2168
        %vm2171 = vcmask 64512
        %v2173 = vsel %vm2171, %v1547, 0
        %vm2175 = vcmask 1043456
        %v2177 = vsel %vm2175, %v2161, 0
        %2179 = vmatprep.subr.bf16.mxu0 0
        %2180 = vmatpush1.bf16.msra.mxu0 %v2177
        %2181 = vmatprep.subr.bf16.mxu0 0
        %2182 = vmatpush1.bf16.msra.mxu0 0
        %2183 = vmatprep.subr.bf16.mxu0 0
        %2184 = vmatpush1.bf16.msra.mxu0 0
        %2185 = vmatprep.subr.bf16.mxu0 0
        %2186 = vmatpush1.bf16.msra.mxu0 0
        %2187 = vmatprep.subr.bf16.mxu0 0
        %2188 = vmatpush1.bf16.msra.mxu0 0
        %2189 = vmatprep.subr.bf16.mxu0 0
        %2190 = vmatpush1.bf16.msra.mxu0 0
        %2191 = vmatprep.subr.bf16.mxu0 0
        %2192 = vmatpush1.bf16.msra.mxu0 0
        %2193 = vmatprep.subr.bf16.mxu0 0
        %2194 = vmatpush1.bf16.msra.mxu0 0
        %2195 = vmatprep.subr.bf16.mxu0 0
        %2196 = vmatpush1.bf16.msra.mxu0 0
        %2197 = vmatprep.subr.bf16.mxu0 0
        %2198 = vmatpush1.bf16.msra.mxu0 0
        %2199 = vmatprep.subr.bf16.mxu0 0
        %2200 = vmatpush1.bf16.msra.mxu0 0
        %2201 = vmatprep.subr.bf16.mxu0 0
        %2202 = vmatpush1.bf16.msra.mxu0 0
        %2203 = vmatprep.subr.bf16.mxu0 0
        %2204 = vmatpush1.bf16.msra.mxu0 0
        %2205 = vmatprep.subr.bf16.mxu0 0
        %2206 = vmatpush1.bf16.msra.mxu0 0
        %2207 = vmatprep.subr.bf16.mxu0 0
        %2208 = vmatpush1.bf16.msra.mxu0 0
        %2209 = vmatprep.subr.bf16.mxu0 0
        %2210 = vmatpush1.bf16.msra.mxu0 0
        %2211 = vmatprep.mubr.bf16.mxu0 0
        %2212 = vmatmul.mubr.bf16.gmra.mrb[0].mxu0 %v2173
        %v2213 = vpop.f32.mrb[0].mxu0
        %v2214 = vadd.f32 %v830, %v2213
        %v2215 = vpop.f32.mrb[0].mxu0
        %v2216 = vpop.f32.mrb[0].mxu0
        %v2217 = vpop.f32.mrb[0].mxu0
        %2218 = vdwg.mxu0
        %v2220 = vsel %vm2171, %v1550, 0
        %v2223 = vsel %vm2175, %v2164, 0
        %2225 = vmatprep.subr.bf16.mxu0 0
        %2226 = vmatpush1.bf16.msra.mxu0 %v2223
        %2227 = vmatprep.subr.bf16.mxu0 0
        %2228 = vmatpush1.bf16.msra.mxu0 0
        %2229 = vmatprep.subr.bf16.mxu0 0
        %2230 = vmatpush1.bf16.msra.mxu0 0
        %2231 = vmatprep.subr.bf16.mxu0 0
        %2232 = vmatpush1.bf16.msra.mxu0 0
        %2233 = vmatprep.subr.bf16.mxu0 0
        %2234 = vmatpush1.bf16.msra.mxu0 0
        %2235 = vmatprep.subr.bf16.mxu0 0
        %2236 = vmatpush1.bf16.msra.mxu0 0
        %2237 = vmatprep.subr.bf16.mxu0 0
        %2238 = vmatpush1.bf16.msra.mxu0 0
        %2239 = vmatprep.subr.bf16.mxu0 0
        %2240 = vmatpush1.bf16.msra.mxu0 0
        %2241 = vmatprep.subr.bf16.mxu0 0
        %2242 = vmatpush1.bf16.msra.mxu0 0
        %2243 = vmatprep.subr.bf16.mxu0 0
        %2244 = vmatpush1.bf16.msra.mxu0 0
        %2245 = vmatprep.subr.bf16.mxu0 0
        %2246 = vmatpush1.bf16.msra.mxu0 0
        %2247 = vmatprep.subr.bf16.mxu0 0
        %2248 = vmatpush1.bf16.msra.mxu0 0
        %2249 = vmatprep.subr.bf16.mxu0 0
        %2250 = vmatpush1.bf16.msra.mxu0 0
        %2251 = vmatprep.subr.bf16.mxu0 0
        %2252 = vmatpush1.bf16.msra.mxu0 0
        %2253 = vmatprep.subr.bf16.mxu0 0
        %2254 = vmatpush1.bf16.msra.mxu0 0
        %2255 = vmatprep.subr.bf16.mxu0 0
        %2256 = vmatpush1.bf16.msra.mxu0 0
        %2257 = vmatprep.mubr.bf16.mxu0 0
        %2258 = vmatmul.mubr.bf16.gmra.mrb[0].mxu0 %v2220
        %v2259 = vpop.f32.mrb[0].mxu0
        %v2260 = vadd.f32 %v831, %v2259
        %v2261 = vpop.f32.mrb[0].mxu0
        %v2262 = vpop.f32.mrb[0].mxu0
        %v2263 = vpop.f32.mrb[0].mxu0
        %2264 = vdwg.mxu0
        %v2266 = vsel %vm2171, %v1553, 0
        %v2269 = vsel %vm2175, %v2167, 0
        %2271 = vmatprep.subr.bf16.mxu0 0
        %2272 = vmatpush1.bf16.msra.mxu0 %v2269
        %2273 = vmatprep.subr.bf16.mxu0 0
        %2274 = vmatpush1.bf16.msra.mxu0 0
        %2275 = vmatprep.subr.bf16.mxu0 0
        %2276 = vmatpush1.bf16.msra.mxu0 0
        %2277 = vmatprep.subr.bf16.mxu0 0
        %2278 = vmatpush1.bf16.msra.mxu0 0
        %2279 = vmatprep.subr.bf16.mxu0 0
        %2280 = vmatpush1.bf16.msra.mxu0 0
        %2281 = vmatprep.subr.bf16.mxu0 0
        %2282 = vmatpush1.bf16.msra.mxu0 0
        %2283 = vmatprep.subr.bf16.mxu0 0
        %2284 = vmatpush1.bf16.msra.mxu0 0
        %2285 = vmatprep.subr.bf16.mxu0 0
        %2286 = vmatpush1.bf16.msra.mxu0 0
        %2287 = vmatprep.subr.bf16.mxu0 0
        %2288 = vmatpush1.bf16.msra.mxu0 0
        %2289 = vmatprep.subr.bf16.mxu0 0
        %2290 = vmatpush1.bf16.msra.mxu0 0
        %2291 = vmatprep.subr.bf16.mxu0 0
        %2292 = vmatpush1.bf16.msra.mxu0 0
        %2293 = vmatprep.subr.bf16.mxu0 0
        %2294 = vmatpush1.bf16.msra.mxu0 0
        %2295 = vmatprep.subr.bf16.mxu0 0
        %2296 = vmatpush1.bf16.msra.mxu0 0
        %2297 = vmatprep.subr.bf16.mxu0 0
        %2298 = vmatpush1.bf16.msra.mxu0 0
        %2299 = vmatprep.subr.bf16.mxu0 0
        %2300 = vmatpush1.bf16.msra.mxu0 0
        %2301 = vmatprep.subr.bf16.mxu0 0
        %2302 = vmatpush1.bf16.msra.mxu0 0
        %2303 = vmatprep.mubr.bf16.mxu0 0
        %2304 = vmatmul.mubr.bf16.gmra.mrb[0].mxu0 %v2266
        %v2305 = vpop.f32.mrb[0].mxu0
        %v2306 = vadd.f32 %v832, %v2305
        %v2307 = vpop.f32.mrb[0].mxu0
        %v2308 = vpop.f32.mrb[0].mxu0
        %v2309 = vpop.f32.mrb[0].mxu0
        %2310 = vdwg.mxu0
        %v2312 = vsel %vm2171, %v1556, 0
        %v2315 = vsel %vm2175, %v2170, 0
        %2317 = vmatprep.subr.bf16.mxu0 0
        %2318 = vmatpush1.bf16.msra.mxu0 %v2315
        %2319 = vmatprep.subr.bf16.mxu0 0
        %2320 = vmatpush1.bf16.msra.mxu0 0
        %2321 = vmatprep.subr.bf16.mxu0 0
        %2322 = vmatpush1.bf16.msra.mxu0 0
        %2323 = vmatprep.subr.bf16.mxu0 0
        %2324 = vmatpush1.bf16.msra.mxu0 0
        %2325 = vmatprep.subr.bf16.mxu0 0
        %2326 = vmatpush1.bf16.msra.mxu0 0
        %2327 = vmatprep.subr.bf16.mxu0 0
        %2328 = vmatpush1.bf16.msra.mxu0 0
        %2329 = vmatprep.subr.bf16.mxu0 0
        %2330 = vmatpush1.bf16.msra.mxu0 0
        %2331 = vmatprep.subr.bf16.mxu0 0
        %2332 = vmatpush1.bf16.msra.mxu0 0
        %2333 = vmatprep.subr.bf16.mxu0 0
        %2334 = vmatpush1.bf16.msra.mxu0 0
        %2335 = vmatprep.subr.bf16.mxu0 0
        %2336 = vmatpush1.bf16.msra.mxu0 0
        %2337 = vmatprep.subr.bf16.mxu0 0
        %2338 = vmatpush1.bf16.msra.mxu0 0
        %2339 = vmatprep.subr.bf16.mxu0 0
        %2340 = vmatpush1.bf16.msra.mxu0 0
        %2341 = vmatprep.subr.bf16.mxu0 0
        %2342 = vmatpush1.bf16.msra.mxu0 0
        %2343 = vmatprep.subr.bf16.mxu0 0
        %2344 = vmatpush1.bf16.msra.mxu0 0
        %2345 = vmatprep.subr.bf16.mxu0 0
        %2346 = vmatpush1.bf16.msra.mxu0 0
        %2347 = vmatprep.subr.bf16.mxu0 0
        %2348 = vmatpush1.bf16.msra.mxu0 0
        %2349 = vmatprep.mubr.bf16.mxu0 0
        %2350 = vmatmul.mubr.bf16.gmra.mrb[0].mxu0 %v2312
        %v2351 = vpop.f32.mrb[0].mxu0
        %v2352 = vadd.f32 %v833, %v2351
        %v2353 = vpop.f32.mrb[0].mxu0
        %v2354 = vpop.f32.mrb[0].mxu0
        %v2355 = vpop.f32.mrb[0].mxu0
        %2356 = vdwg.mxu0
        %v2357 = vmul.f32 %v1105, %v1488
        %v2358 = vmul.f32 %v1106, %v1489
        %vm2359 = vcmask 60416
        %v2360 = vsel %vm2359, %v2357, 0.0
        %2361 = vadd.xlane.f32.xlu0 %v2360
        %v2362 = vpop.xlane.xlu0 %2361
        %v2363 = vsel %vm2359, %v2358, 0.0
        %2364 = vadd.xlane.f32.xlu0 %v2363
        %v2365 = vpop.xlane.xlu0 %2364
        %v2368 = vlaneseq
        %v2369 = vand.u32 %v2368, 127
        %v2370 = vlaneseq
        %v2371 = vshrl.u32 %v2370, 7
        %v2372 = vsub.s32 %v2369, %v2371
        %v2373 = vrot.slane %v2362, %v2372
        %v2374 = vlaneseq
        %v2375 = vshrl.u32 %v2374, 7
        %v2376 = vsub.s32 %v2369, %v2375
        %v2377 = vrot.slane %v2365, %v2376
        %vm2378 = vcmask 1041409
        %v2379 = vsel %vm2378, %v2377, %v2373
        %2381 = vxpose.xlu0.b32.start [1/16] %v2379, 128
        %2382 = vxpose.xlu0.b32.cont [2/16] 0.0, 128
        %2383 = vxpose.xlu0.b32.cont [3/16] 0.0, 128
        %2384 = vxpose.xlu0.b32.cont [4/16] 0.0, 128
        %2385 = vxpose.xlu0.b32.cont [5/16] 0.0, 128
        %2386 = vxpose.xlu0.b32.cont [6/16] 0.0, 128
        %2387 = vxpose.xlu0.b32.cont [7/16] 0.0, 128
        %2388 = vxpose.xlu0.b32.cont [8/16] 0.0, 128
        %2389 = vxpose.xlu0.b32.cont [9/16] 0.0, 128
        %2390 = vxpose.xlu0.b32.cont [10/16] 0.0, 128
        %2391 = vxpose.xlu0.b32.cont [11/16] 0.0, 128
        %2392 = vxpose.xlu0.b32.cont [12/16] 0.0, 128
        %2393 = vxpose.xlu0.b32.cont [13/16] 0.0, 128
        %2394 = vxpose.xlu0.b32.cont [14/16] 0.0, 128
        %2395 = vxpose.xlu0.b32.cont [15/16] 0.0, 128
        %2396 = vxpose.xlu0.b32.end [16/16] 0.0, 128
        %v2397 = vpop.trf.xlu0
        %v2398 = vpop.trf.xlu0
        %v2399 = vpop.trf.xlu0
        %v2400 = vpop.trf.xlu0
        %v2401 = vpop.trf.xlu0
        %v2402 = vpop.trf.xlu0
        %v2403 = vpop.trf.xlu0
        %v2404 = vpop.trf.xlu0
        %v2405 = vpop.trf.xlu0
        %v2406 = vpop.trf.xlu0
        %v2407 = vpop.trf.xlu0
        %v2408 = vpop.trf.xlu0
        %v2409 = vpop.trf.xlu0
        %v2410 = vpop.trf.xlu0
        %v2411 = vpop.trf.xlu0
        %v2412 = vpop.trf.xlu0
        %v2413 = vlaneseq
        %v2414 = vshrl.u32 %v2413, 7
        %v2415 = vsub.s32 0, %v2414
        %v2416 = vrot.slane %v2397, %v2415
        %2418 = vbcast.lane.b32.xlu0 %v2416, 256
        %v2419 = vpop.permute.xlu0 %2418
        %v2420 = vlaneseq
        %v2421 = vshrl.u32 %v2420, 7
        %v2422 = vsub.s32 1, %v2421
        %v2423 = vrot.slane %v2397, %v2422
        %2425 = vbcast.lane.b32.xlu0 %v2423, 256
        %v2426 = vpop.permute.xlu0 %2425
        %v2427 = vlaneseq
        %v2428 = vshrl.u32 %v2427, 7
        %v2429 = vsub.s32 2, %v2428
        %v2430 = vrot.slane %v2397, %v2429
        %2432 = vbcast.lane.b32.xlu0 %v2430, 256
        %v2433 = vpop.permute.xlu0 %2432
        %v2434 = vlaneseq
        %v2435 = vshrl.u32 %v2434, 7
        %v2436 = vsub.s32 3, %v2435
        %v2437 = vrot.slane %v2397, %v2436
        %2439 = vbcast.lane.b32.xlu0 %v2437, 256
        %v2440 = vpop.permute.xlu0 %2439
        %vm2441 = vcmask 123904
        %v2442 = vsel %vm2441, %v2214, -inf
        %2443 = vmax.xlane.f32.xlu0 %v2442
        %v2444 = vpop.xlane.xlu0 %2443
        %v2445 = vsel %vm2441, %v2260, -inf
        %2446 = vmax.xlane.f32.xlu0 %v2445
        %v2447 = vpop.xlane.xlu0 %2446
        %v2448 = vsel %vm2441, %v2306, -inf
        %2449 = vmax.xlane.f32.xlu0 %v2448
        %v2450 = vpop.xlane.xlu0 %2449
        %v2451 = vsel %vm2441, %v2352, -inf
        %2452 = vmax.xlane.f32.xlu0 %v2451
        %v2453 = vpop.xlane.xlu0 %2452
        %v2454 = vmax.f32 %v2444, %v2419
        %v2455 = vmax.f32 %v2447, %v2426
        %v2456 = vmax.f32 %v2450, %v2433
        %v2457 = vmax.f32 %v2453, %v2440
        %v2458 = vsub.f32 %v2214, %v2454
        %v2459 = vsub.f32 %v2260, %v2455
        %v2460 = vsub.f32 %v2306, %v2456
        %v2461 = vsub.f32 %v2352, %v2457
        %v2462 = vmul.f32 %v2458, 1.442695
        %v2463 = vpow.pop %v2462
        %v2464 = vmul.f32 %v2459, 1.442695
        %v2465 = vpow.pop %v2464
        %v2466 = vmul.f32 %v2460, 1.442695
        %v2467 = vpow.pop %v2466
        %v2468 = vmul.f32 %v2461, 1.442695
        %v2469 = vpow.pop %v2468
        %v2470 = vsub.f32 %v2419, %v2454
        %v2471 = vsub.f32 %v2426, %v2455
        %v2472 = vsub.f32 %v2433, %v2456
        %v2473 = vsub.f32 %v2440, %v2457
        %v2474 = vmul.f32 %v2470, 1.442695
        %v2475 = vpow.pop %v2474
        %v2476 = vmul.f32 %v2471, 1.442695
        %v2477 = vpow.pop %v2476
        %v2478 = vmul.f32 %v2472, 1.442695
        %v2479 = vpow.pop %v2478
        %v2480 = vmul.f32 %v2473, 1.442695
        %v2481 = vpow.pop %v2480
        %v2482 = vsel %vm2441, %v2463, 0.0
        %2483 = vadd.xlane.f32.xlu0 %v2482
        %v2484 = vpop.xlane.xlu0 %2483
        %v2485 = vsel %vm2441, %v2465, 0.0
        %2486 = vadd.xlane.f32.xlu0 %v2485
        %v2487 = vpop.xlane.xlu0 %2486
        %v2488 = vsel %vm2441, %v2467, 0.0
        %2489 = vadd.xlane.f32.xlu0 %v2488
        %v2490 = vpop.xlane.xlu0 %2489
        %v2491 = vsel %vm2441, %v2469, 0.0
        %2492 = vadd.xlane.f32.xlu0 %v2491
        %v2493 = vpop.xlane.xlu0 %2492
        %v2494 = vadd.f32 %v2484, %v2475
        %v2495 = vadd.f32 %v2487, %v2477
        %v2496 = vadd.f32 %v2490, %v2479
        %v2497 = vadd.f32 %v2493, %v2481
        %v2498 = vrcp.pop %v2494
        %v2499 = vrcp.pop %v2495
        %v2500 = vrcp.pop %v2496
        %v2501 = vrcp.pop %v2497
        %v2502 = vmul.f32 %v2463, %v2498
        %v2503 = vmul.f32 %v2465, %v2499
        %v2504 = vmul.f32 %v2467, %v2500
        %v2505 = vmul.f32 %v2469, %v2501
        %v2506 = vpack.c.bf16 %v2502, %v2502
        %v2507 = vpack.c.bf16 %v2503, %v2503
        %v2508 = vpack.c.bf16 %v2504, %v2504
        %v2509 = vpack.c.bf16 %v2505, %v2505
        %v2510 = vmul.f32 %v2475, %v2498
        %v2511 = vmul.f32 %v2477, %v2499
        %v2512 = vmul.f32 %v2479, %v2500
        %v2513 = vmul.f32 %v2481, %v2501
        %2514 = vxpose.xlu0.c.b16.start [1/8] %v1439, 128
        %2515 = vxpose.xlu0.c.b16.cont [2/8] 0, 128
        %2516 = vxpose.xlu0.c.b16.cont [3/8] 0, 128
        %2517 = vxpose.xlu0.c.b16.cont [4/8] 0, 128
        %2518 = vxpose.xlu0.c.b16.cont [5/8] 0, 128
        %2519 = vxpose.xlu0.c.b16.cont [6/8] 0, 128
        %2520 = vxpose.xlu0.c.b16.cont [7/8] 0, 128
        %2521 = vxpose.xlu0.c.b16.end [8/8] 0, 128
        %v2522 = vpop.trf.xlu0
        %v2523 = vpop.trf.xlu0
        %v2524 = vpop.trf.xlu0
        %v2525 = vpop.trf.xlu0
        %v2526 = vpop.trf.xlu0
        %v2527 = vpop.trf.xlu0
        %v2528 = vpop.trf.xlu0
        %v2529 = vpop.trf.xlu0
        %2530 = vxpose.xlu0.c.b16.start [1/8] %v1440, 128
        %2531 = vxpose.xlu0.c.b16.cont [2/8] 0, 128
        %2532 = vxpose.xlu0.c.b16.cont [3/8] 0, 128
        %2533 = vxpose.xlu0.c.b16.cont [4/8] 0, 128
        %2534 = vxpose.xlu0.c.b16.cont [5/8] 0, 128
        %2535 = vxpose.xlu0.c.b16.cont [6/8] 0, 128
        %2536 = vxpose.xlu0.c.b16.cont [7/8] 0, 128
        %2537 = vxpose.xlu0.c.b16.end [8/8] 0, 128
        %v2538 = vpop.trf.xlu0
        %v2539 = vpop.trf.xlu0
        %v2540 = vpop.trf.xlu0
        %v2541 = vpop.trf.xlu0
        %v2542 = vpop.trf.xlu0
        %v2543 = vpop.trf.xlu0
        %v2544 = vpop.trf.xlu0
        %v2545 = vpop.trf.xlu0
        %2546 = vxpose.xlu0.c.b16.start [1/8] %v1441, 128
        %2547 = vxpose.xlu0.c.b16.cont [2/8] 0, 128
        %2548 = vxpose.xlu0.c.b16.cont [3/8] 0, 128
        %2549 = vxpose.xlu0.c.b16.cont [4/8] 0, 128
        %2550 = vxpose.xlu0.c.b16.cont [5/8] 0, 128
        %2551 = vxpose.xlu0.c.b16.cont [6/8] 0, 128
        %2552 = vxpose.xlu0.c.b16.cont [7/8] 0, 128
        %2553 = vxpose.xlu0.c.b16.end [8/8] 0, 128
        %v2554 = vpop.trf.xlu0
        %v2555 = vpop.trf.xlu0
        %v2556 = vpop.trf.xlu0
        %v2557 = vpop.trf.xlu0
        %v2558 = vpop.trf.xlu0
        %v2559 = vpop.trf.xlu0
        %v2560 = vpop.trf.xlu0
        %v2561 = vpop.trf.xlu0
        %2562 = vxpose.xlu0.c.b16.start [1/8] %v1442, 128
        %2563 = vxpose.xlu0.c.b16.cont [2/8] 0, 128
        %2564 = vxpose.xlu0.c.b16.cont [3/8] 0, 128
        %2565 = vxpose.xlu0.c.b16.cont [4/8] 0, 128
        %2566 = vxpose.xlu0.c.b16.cont [5/8] 0, 128
        %2567 = vxpose.xlu0.c.b16.cont [6/8] 0, 128
        %2568 = vxpose.xlu0.c.b16.cont [7/8] 0, 128
        %2569 = vxpose.xlu0.c.b16.end [8/8] 0, 128
        %v2570 = vpop.trf.xlu0
        %v2571 = vpop.trf.xlu0
        %v2572 = vpop.trf.xlu0
        %v2573 = vpop.trf.xlu0
        %v2574 = vpop.trf.xlu0
        %v2575 = vpop.trf.xlu0
        %v2576 = vpop.trf.xlu0
        %v2577 = vpop.trf.xlu0
        %2578 = vxpose.xlu0.c.b16.start [1/8] %v1443, 128
        %2579 = vxpose.xlu0.c.b16.cont [2/8] 0, 128
        %2580 = vxpose.xlu0.c.b16.cont [3/8] 0, 128
        %2581 = vxpose.xlu0.c.b16.cont [4/8] 0, 128
        %2582 = vxpose.xlu0.c.b16.cont [5/8] 0, 128
        %2583 = vxpose.xlu0.c.b16.cont [6/8] 0, 128
        %2584 = vxpose.xlu0.c.b16.cont [7/8] 0, 128
        %2585 = vxpose.xlu0.c.b16.end [8/8] 0, 128
        %v2586 = vpop.trf.xlu0
        %v2587 = vpop.trf.xlu0
        %v2588 = vpop.trf.xlu0
        %v2589 = vpop.trf.xlu0
        %v2590 = vpop.trf.xlu0
        %v2591 = vpop.trf.xlu0
        %v2592 = vpop.trf.xlu0
        %v2593 = vpop.trf.xlu0
        %2594 = vxpose.xlu0.c.b16.start [1/8] %v1444, 128
        %2595 = vxpose.xlu0.c.b16.cont [2/8] 0, 128
        %2596 = vxpose.xlu0.c.b16.cont [3/8] 0, 128
        %2597 = vxpose.xlu0.c.b16.cont [4/8] 0, 128
        %2598 = vxpose.xlu0.c.b16.cont [5/8] 0, 128
        %2599 = vxpose.xlu0.c.b16.cont [6/8] 0, 128
        %2600 = vxpose.xlu0.c.b16.cont [7/8] 0, 128
        %2601 = vxpose.xlu0.c.b16.end [8/8] 0, 128
        %v2602 = vpop.trf.xlu0
        %v2603 = vpop.trf.xlu0
        %v2604 = vpop.trf.xlu0
        %v2605 = vpop.trf.xlu0
        %v2606 = vpop.trf.xlu0
        %v2607 = vpop.trf.xlu0
        %v2608 = vpop.trf.xlu0
        %v2609 = vpop.trf.xlu0
        %2610 = vxpose.xlu0.c.b16.start [1/8] %v1445, 128
        %2611 = vxpose.xlu0.c.b16.cont [2/8] 0, 128
        %2612 = vxpose.xlu0.c.b16.cont [3/8] 0, 128
        %2613 = vxpose.xlu0.c.b16.cont [4/8] 0, 128
        %2614 = vxpose.xlu0.c.b16.cont [5/8] 0, 128
        %2615 = vxpose.xlu0.c.b16.cont [6/8] 0, 128
        %2616 = vxpose.xlu0.c.b16.cont [7/8] 0, 128
        %2617 = vxpose.xlu0.c.b16.end [8/8] 0, 128
        %v2618 = vpop.trf.xlu0
        %v2619 = vpop.trf.xlu0
        %v2620 = vpop.trf.xlu0
        %v2621 = vpop.trf.xlu0
        %v2622 = vpop.trf.xlu0
        %v2623 = vpop.trf.xlu0
        %v2624 = vpop.trf.xlu0
        %v2625 = vpop.trf.xlu0
        %2626 = vxpose.xlu0.c.b16.start [1/8] %v1446, 128
        %2627 = vxpose.xlu0.c.b16.cont [2/8] 0, 128
        %2628 = vxpose.xlu0.c.b16.cont [3/8] 0, 128
        %2629 = vxpose.xlu0.c.b16.cont [4/8] 0, 128
        %2630 = vxpose.xlu0.c.b16.cont [5/8] 0, 128
        %2631 = vxpose.xlu0.c.b16.cont [6/8] 0, 128
        %2632 = vxpose.xlu0.c.b16.cont [7/8] 0, 128
        %2633 = vxpose.xlu0.c.b16.end [8/8] 0, 128
        %v2634 = vpop.trf.xlu0
        %v2635 = vpop.trf.xlu0
        %v2636 = vpop.trf.xlu0
        %v2637 = vpop.trf.xlu0
        %v2638 = vpop.trf.xlu0
        %v2639 = vpop.trf.xlu0
        %v2640 = vpop.trf.xlu0
        %v2641 = vpop.trf.xlu0
        %2642 = vxpose.xlu0.c.b16.start [1/8] %v1447, 128
        %2643 = vxpose.xlu0.c.b16.cont [2/8] 0, 128
        %2644 = vxpose.xlu0.c.b16.cont [3/8] 0, 128
        %2645 = vxpose.xlu0.c.b16.cont [4/8] 0, 128
        %2646 = vxpose.xlu0.c.b16.cont [5/8] 0, 128
        %2647 = vxpose.xlu0.c.b16.cont [6/8] 0, 128
        %2648 = vxpose.xlu0.c.b16.cont [7/8] 0, 128
        %2649 = vxpose.xlu0.c.b16.end [8/8] 0, 128
        %v2650 = vpop.trf.xlu0
        %v2651 = vpop.trf.xlu0
        %v2652 = vpop.trf.xlu0
        %v2653 = vpop.trf.xlu0
        %v2654 = vpop.trf.xlu0
        %v2655 = vpop.trf.xlu0
        %v2656 = vpop.trf.xlu0
        %v2657 = vpop.trf.xlu0
        %2658 = vxpose.xlu0.c.b16.start [1/8] %v1448, 128
        %2659 = vxpose.xlu0.c.b16.cont [2/8] 0, 128
        %2660 = vxpose.xlu0.c.b16.cont [3/8] 0, 128
        %2661 = vxpose.xlu0.c.b16.cont [4/8] 0, 128
        %2662 = vxpose.xlu0.c.b16.cont [5/8] 0, 128
        %2663 = vxpose.xlu0.c.b16.cont [6/8] 0, 128
        %2664 = vxpose.xlu0.c.b16.cont [7/8] 0, 128
        %2665 = vxpose.xlu0.c.b16.end [8/8] 0, 128
        %v2666 = vpop.trf.xlu0
        %v2667 = vpop.trf.xlu0
        %v2668 = vpop.trf.xlu0
        %v2669 = vpop.trf.xlu0
        %v2670 = vpop.trf.xlu0
        %v2671 = vpop.trf.xlu0
        %v2672 = vpop.trf.xlu0
        %v2673 = vpop.trf.xlu0
        %2674 = vxpose.xlu0.c.b16.start [1/8] %v1449, 128
        %2675 = vxpose.xlu0.c.b16.cont [2/8] 0, 128
        %2676 = vxpose.xlu0.c.b16.cont [3/8] 0, 128
        %2677 = vxpose.xlu0.c.b16.cont [4/8] 0, 128
        %2678 = vxpose.xlu0.c.b16.cont [5/8] 0, 128
        %2679 = vxpose.xlu0.c.b16.cont [6/8] 0, 128
        %2680 = vxpose.xlu0.c.b16.cont [7/8] 0, 128
        %2681 = vxpose.xlu0.c.b16.end [8/8] 0, 128
        %v2682 = vpop.trf.xlu0
        %v2683 = vpop.trf.xlu0
        %v2684 = vpop.trf.xlu0
        %v2685 = vpop.trf.xlu0
        %v2686 = vpop.trf.xlu0
        %v2687 = vpop.trf.xlu0
        %v2688 = vpop.trf.xlu0
        %v2689 = vpop.trf.xlu0
        %2690 = vxpose.xlu0.c.b16.start [1/8] %v1450, 128
        %2691 = vxpose.xlu0.c.b16.cont [2/8] 0, 128
        %2692 = vxpose.xlu0.c.b16.cont [3/8] 0, 128
        %2693 = vxpose.xlu0.c.b16.cont [4/8] 0, 128
        %2694 = vxpose.xlu0.c.b16.cont [5/8] 0, 128
        %2695 = vxpose.xlu0.c.b16.cont [6/8] 0, 128
        %2696 = vxpose.xlu0.c.b16.cont [7/8] 0, 128
        %2697 = vxpose.xlu0.c.b16.end [8/8] 0, 128
        %v2698 = vpop.trf.xlu0
        %v2699 = vpop.trf.xlu0
        %v2700 = vpop.trf.xlu0
        %v2701 = vpop.trf.xlu0
        %v2702 = vpop.trf.xlu0
        %v2703 = vpop.trf.xlu0
        %v2704 = vpop.trf.xlu0
        %v2705 = vpop.trf.xlu0
        %2706 = vxpose.xlu0.c.b16.start [1/8] %v1451, 128
        %2707 = vxpose.xlu0.c.b16.cont [2/8] 0, 128
        %2708 = vxpose.xlu0.c.b16.cont [3/8] 0, 128
        %2709 = vxpose.xlu0.c.b16.cont [4/8] 0, 128
        %2710 = vxpose.xlu0.c.b16.cont [5/8] 0, 128
        %2711 = vxpose.xlu0.c.b16.cont [6/8] 0, 128
        %2712 = vxpose.xlu0.c.b16.cont [7/8] 0, 128
        %2713 = vxpose.xlu0.c.b16.end [8/8] 0, 128
        %v2714 = vpop.trf.xlu0
        %v2715 = vpop.trf.xlu0
        %v2716 = vpop.trf.xlu0
        %v2717 = vpop.trf.xlu0
        %v2718 = vpop.trf.xlu0
        %v2719 = vpop.trf.xlu0
        %v2720 = vpop.trf.xlu0
        %v2721 = vpop.trf.xlu0
        %2722 = vxpose.xlu0.c.b16.start [1/8] %v1452, 128
        %2723 = vxpose.xlu0.c.b16.cont [2/8] 0, 128
        %2724 = vxpose.xlu0.c.b16.cont [3/8] 0, 128
        %2725 = vxpose.xlu0.c.b16.cont [4/8] 0, 128
        %2726 = vxpose.xlu0.c.b16.cont [5/8] 0, 128
        %2727 = vxpose.xlu0.c.b16.cont [6/8] 0, 128
        %2728 = vxpose.xlu0.c.b16.cont [7/8] 0, 128
        %2729 = vxpose.xlu0.c.b16.end [8/8] 0, 128
        %v2730 = vpop.trf.xlu0
        %v2731 = vpop.trf.xlu0
        %v2732 = vpop.trf.xlu0
        %v2733 = vpop.trf.xlu0
        %v2734 = vpop.trf.xlu0
        %v2735 = vpop.trf.xlu0
        %v2736 = vpop.trf.xlu0
        %v2737 = vpop.trf.xlu0
        %2738 = vxpose.xlu0.c.b16.start [1/8] %v1453, 128
        %2739 = vxpose.xlu0.c.b16.cont [2/8] 0, 128
        %2740 = vxpose.xlu0.c.b16.cont [3/8] 0, 128
        %2741 = vxpose.xlu0.c.b16.cont [4/8] 0, 128
        %2742 = vxpose.xlu0.c.b16.cont [5/8] 0, 128
        %2743 = vxpose.xlu0.c.b16.cont [6/8] 0, 128
        %2744 = vxpose.xlu0.c.b16.cont [7/8] 0, 128
        %2745 = vxpose.xlu0.c.b16.end [8/8] 0, 128
        %v2746 = vpop.trf.xlu0
        %v2747 = vpop.trf.xlu0
        %v2748 = vpop.trf.xlu0
        %v2749 = vpop.trf.xlu0
        %v2750 = vpop.trf.xlu0
        %v2751 = vpop.trf.xlu0
        %v2752 = vpop.trf.xlu0
        %v2753 = vpop.trf.xlu0
        %2754 = vxpose.xlu0.c.b16.start [1/8] %v1454, 128
        %2755 = vxpose.xlu0.c.b16.cont [2/8] 0, 128
        %2756 = vxpose.xlu0.c.b16.cont [3/8] 0, 128
        %2757 = vxpose.xlu0.c.b16.cont [4/8] 0, 128
        %2758 = vxpose.xlu0.c.b16.cont [5/8] 0, 128
        %2759 = vxpose.xlu0.c.b16.cont [6/8] 0, 128
        %2760 = vxpose.xlu0.c.b16.cont [7/8] 0, 128
        %2761 = vxpose.xlu0.c.b16.end [8/8] 0, 128
        %v2762 = vpop.trf.xlu0
        %v2763 = vpop.trf.xlu0
        %v2764 = vpop.trf.xlu0
        %v2765 = vpop.trf.xlu0
        %v2766 = vpop.trf.xlu0
        %v2767 = vpop.trf.xlu0
        %v2768 = vpop.trf.xlu0
        %v2769 = vpop.trf.xlu0
        %v2770 = vcombine.low %v2522, %v2586
        %v2772 = vunpack.c.l.s4 1983009808
        %v2773 = vunpack.c.0.s8 %v2772
        %v2774 = vlaneseq
        %v2775 = vshrl.u32 %v2774, 7
        %v2776 = vsub.s32 %v2773, %v2775
        %v2777 = vrot.slane %v2770, %v2776
        %v2778 = vcombine.low %v2554, %v2618
        %v2780 = vunpack.c.l.s4 1983009808
        %v2781 = vunpack.c.0.s8 %v2780
        %v2782 = vlaneseq
        %v2783 = vshrl.u32 %v2782, 7
        %v2784 = vsub.s32 %v2781, %v2783
        %v2785 = vrot.slane %v2778, %v2784
        %v2786 = vcombine.low %v2650, %v2714
        %v2788 = vunpack.c.l.s4 1983009808
        %v2789 = vunpack.c.0.s8 %v2788
        %v2790 = vlaneseq
        %v2791 = vshrl.u32 %v2790, 7
        %v2792 = vsub.s32 %v2789, %v2791
        %v2793 = vrot.slane %v2786, %v2792
        %v2794 = vcombine.low %v2682, %v2746
        %v2796 = vunpack.c.l.s4 1983009808
        %v2797 = vunpack.c.0.s8 %v2796
        %v2798 = vlaneseq
        %v2799 = vshrl.u32 %v2798, 7
        %v2800 = vsub.s32 %v2797, %v2799
        %v2801 = vrot.slane %v2794, %v2800
        %v2802 = vcombine.low %v2777, %v2785
        %v2803 = vcombine.high %v2777, %v2785
        %v2805 = vunpack.c.l.s4 1934713408
        %v2806 = vunpack.c.0.s8 %v2805
        %v2807 = vlaneseq
        %v2808 = vshrl.u32 %v2807, 7
        %v2809 = vsub.s32 %v2806, %v2808
        %v2810 = vrot.slane %v2802, %v2809
        %v2812 = vunpack.c.l.s4 1934713408
        %v2813 = vunpack.c.0.s8 %v2812
        %v2814 = vlaneseq
        %v2815 = vshrl.u32 %v2814, 7
        %v2816 = vsub.s32 %v2813, %v2815
        %v2817 = vrot.slane %v2803, %v2816
        %v2818 = vcombine.low %v2793, %v2801
        %v2819 = vcombine.high %v2793, %v2801
        %v2821 = vunpack.c.l.s4 1934713408
        %v2822 = vunpack.c.0.s8 %v2821
        %v2823 = vlaneseq
        %v2824 = vshrl.u32 %v2823, 7
        %v2825 = vsub.s32 %v2822, %v2824
        %v2826 = vrot.slane %v2818, %v2825
        %v2828 = vunpack.c.l.s4 1934713408
        %v2829 = vunpack.c.0.s8 %v2828
        %v2830 = vlaneseq
        %v2831 = vshrl.u32 %v2830, 7
        %v2832 = vsub.s32 %v2829, %v2831
        %v2833 = vrot.slane %v2819, %v2832
        %v2834 = vcombine.low %v2810, %v2826
        %v2835 = vcombine.high %v2810, %v2826
        %v2836 = vcombine.low %v2817, %v2833
        %v2837 = vcombine.high %v2817, %v2833
        %v2838 = vcombine.low %v2538, %v2602
        %v2840 = vunpack.c.l.s4 1983009808
        %v2841 = vunpack.c.0.s8 %v2840
        %v2842 = vlaneseq
        %v2843 = vshrl.u32 %v2842, 7
        %v2844 = vsub.s32 %v2841, %v2843
        %v2845 = vrot.slane %v2838, %v2844
        %v2846 = vcombine.low %v2570, %v2634
        %v2848 = vunpack.c.l.s4 1983009808
        %v2849 = vunpack.c.0.s8 %v2848
        %v2850 = vlaneseq
        %v2851 = vshrl.u32 %v2850, 7
        %v2852 = vsub.s32 %v2849, %v2851
        %v2853 = vrot.slane %v2846, %v2852
        %v2854 = vcombine.low %v2666, %v2730
        %v2856 = vunpack.c.l.s4 1983009808
        %v2857 = vunpack.c.0.s8 %v2856
        %v2858 = vlaneseq
        %v2859 = vshrl.u32 %v2858, 7
        %v2860 = vsub.s32 %v2857, %v2859
        %v2861 = vrot.slane %v2854, %v2860
        %v2862 = vcombine.low %v2698, %v2762
        %v2864 = vunpack.c.l.s4 1983009808
        %v2865 = vunpack.c.0.s8 %v2864
        %v2866 = vlaneseq
        %v2867 = vshrl.u32 %v2866, 7
        %v2868 = vsub.s32 %v2865, %v2867
        %v2869 = vrot.slane %v2862, %v2868
        %v2870 = vcombine.low %v2845, %v2853
        %v2871 = vcombine.high %v2845, %v2853
        %v2873 = vunpack.c.l.s4 1934713408
        %v2874 = vunpack.c.0.s8 %v2873
        %v2875 = vlaneseq
        %v2876 = vshrl.u32 %v2875, 7
        %v2877 = vsub.s32 %v2874, %v2876
        %v2878 = vrot.slane %v2870, %v2877
        %v2880 = vunpack.c.l.s4 1934713408
        %v2881 = vunpack.c.0.s8 %v2880
        %v2882 = vlaneseq
        %v2883 = vshrl.u32 %v2882, 7
        %v2884 = vsub.s32 %v2881, %v2883
        %v2885 = vrot.slane %v2871, %v2884
        %v2886 = vcombine.low %v2861, %v2869
        %v2887 = vcombine.high %v2861, %v2869
        %v2889 = vunpack.c.l.s4 1934713408
        %v2890 = vunpack.c.0.s8 %v2889
        %v2891 = vlaneseq
        %v2892 = vshrl.u32 %v2891, 7
        %v2893 = vsub.s32 %v2890, %v2892
        %v2894 = vrot.slane %v2886, %v2893
        %v2896 = vunpack.c.l.s4 1934713408
        %v2897 = vunpack.c.0.s8 %v2896
        %v2898 = vlaneseq
        %v2899 = vshrl.u32 %v2898, 7
        %v2900 = vsub.s32 %v2897, %v2899
        %v2901 = vrot.slane %v2887, %v2900
        %v2902 = vcombine.low %v2878, %v2894
        %v2903 = vcombine.high %v2878, %v2894
        %v2904 = vcombine.low %v2885, %v2901
        %v2905 = vcombine.high %v2885, %v2901
        %v2908 = vpack.i.b16 %v2902, %v2834
        %v2910 = vshrl.u32 %v2834, 16
        %v2911 = vshrl.u32 %v2902, 16
        %v2912 = vpack.i.b16 %v2911, %v2910
        %v2916 = vpack.i.b16 %v2903, %v2835
        %v2918 = vshrl.u32 %v2835, 16
        %v2919 = vshrl.u32 %v2903, 16
        %v2920 = vpack.i.b16 %v2919, %v2918
        %v2924 = vpack.i.b16 %v2904, %v2836
        %v2926 = vshrl.u32 %v2836, 16
        %v2927 = vshrl.u32 %v2904, 16
        %v2928 = vpack.i.b16 %v2927, %v2926
        %v2932 = vpack.i.b16 %v2905, %v2837
        %v2934 = vshrl.u32 %v2837, 16
        %v2935 = vshrl.u32 %v2905, 16
        %v2936 = vpack.i.b16 %v2935, %v2934
        %2938 = vxpose.xlu0.c.b16.start [1/8] %v2908, 128
        %2939 = vxpose.xlu0.c.b16.cont [2/8] 0, 128
        %2940 = vxpose.xlu0.c.b16.cont [3/8] 0, 128
        %2941 = vxpose.xlu0.c.b16.cont [4/8] 0, 128
        %2942 = vxpose.xlu0.c.b16.cont [5/8] 0, 128
        %2943 = vxpose.xlu0.c.b16.cont [6/8] 0, 128
        %2944 = vxpose.xlu0.c.b16.cont [7/8] 0, 128
        %2945 = vxpose.xlu0.c.b16.end [8/8] 0, 128
        %v2946 = vpop.trf.xlu0
        %v2947 = vpop.trf.xlu0
        %v2948 = vpop.trf.xlu0
        %v2949 = vpop.trf.xlu0
        %v2950 = vpop.trf.xlu0
        %v2951 = vpop.trf.xlu0
        %v2952 = vpop.trf.xlu0
        %v2953 = vpop.trf.xlu0
        %2954 = vxpose.xlu0.c.b16.start [1/8] %v2912, 128
        %2955 = vxpose.xlu0.c.b16.cont [2/8] 0, 128
        %2956 = vxpose.xlu0.c.b16.cont [3/8] 0, 128
        %2957 = vxpose.xlu0.c.b16.cont [4/8] 0, 128
        %2958 = vxpose.xlu0.c.b16.cont [5/8] 0, 128
        %2959 = vxpose.xlu0.c.b16.cont [6/8] 0, 128
        %2960 = vxpose.xlu0.c.b16.cont [7/8] 0, 128
        %2961 = vxpose.xlu0.c.b16.end [8/8] 0, 128
        %v2962 = vpop.trf.xlu0
        %v2963 = vpop.trf.xlu0
        %v2964 = vpop.trf.xlu0
        %v2965 = vpop.trf.xlu0
        %v2966 = vpop.trf.xlu0
        %v2967 = vpop.trf.xlu0
        %v2968 = vpop.trf.xlu0
        %v2969 = vpop.trf.xlu0
        %2970 = vxpose.xlu0.c.b16.start [1/8] %v2916, 128
        %2971 = vxpose.xlu0.c.b16.cont [2/8] 0, 128
        %2972 = vxpose.xlu0.c.b16.cont [3/8] 0, 128
        %2973 = vxpose.xlu0.c.b16.cont [4/8] 0, 128
        %2974 = vxpose.xlu0.c.b16.cont [5/8] 0, 128
        %2975 = vxpose.xlu0.c.b16.cont [6/8] 0, 128
        %2976 = vxpose.xlu0.c.b16.cont [7/8] 0, 128
        %2977 = vxpose.xlu0.c.b16.end [8/8] 0, 128
        %v2978 = vpop.trf.xlu0
        %v2979 = vpop.trf.xlu0
        %v2980 = vpop.trf.xlu0
        %v2981 = vpop.trf.xlu0
        %v2982 = vpop.trf.xlu0
        %v2983 = vpop.trf.xlu0
        %v2984 = vpop.trf.xlu0
        %v2985 = vpop.trf.xlu0
        %2986 = vxpose.xlu0.c.b16.start [1/8] %v2920, 128
        %2987 = vxpose.xlu0.c.b16.cont [2/8] 0, 128
        %2988 = vxpose.xlu0.c.b16.cont [3/8] 0, 128
        %2989 = vxpose.xlu0.c.b16.cont [4/8] 0, 128
        %2990 = vxpose.xlu0.c.b16.cont [5/8] 0, 128
        %2991 = vxpose.xlu0.c.b16.cont [6/8] 0, 128
        %2992 = vxpose.xlu0.c.b16.cont [7/8] 0, 128
        %2993 = vxpose.xlu0.c.b16.end [8/8] 0, 128
        %v2994 = vpop.trf.xlu0
        %v2995 = vpop.trf.xlu0
        %v2996 = vpop.trf.xlu0
        %v2997 = vpop.trf.xlu0
        %v2998 = vpop.trf.xlu0
        %v2999 = vpop.trf.xlu0
        %v3000 = vpop.trf.xlu0
        %v3001 = vpop.trf.xlu0
        %3002 = vxpose.xlu0.c.b16.start [1/8] %v2924, 128
        %3003 = vxpose.xlu0.c.b16.cont [2/8] 0, 128
        %3004 = vxpose.xlu0.c.b16.cont [3/8] 0, 128
        %3005 = vxpose.xlu0.c.b16.cont [4/8] 0, 128
        %3006 = vxpose.xlu0.c.b16.cont [5/8] 0, 128
        %3007 = vxpose.xlu0.c.b16.cont [6/8] 0, 128
        %3008 = vxpose.xlu0.c.b16.cont [7/8] 0, 128
        %3009 = vxpose.xlu0.c.b16.end [8/8] 0, 128
        %v3010 = vpop.trf.xlu0
        %v3011 = vpop.trf.xlu0
        %v3012 = vpop.trf.xlu0
        %v3013 = vpop.trf.xlu0
        %v3014 = vpop.trf.xlu0
        %v3015 = vpop.trf.xlu0
        %v3016 = vpop.trf.xlu0
        %v3017 = vpop.trf.xlu0
        %3018 = vxpose.xlu0.c.b16.start [1/8] %v2928, 128
        %3019 = vxpose.xlu0.c.b16.cont [2/8] 0, 128
        %3020 = vxpose.xlu0.c.b16.cont [3/8] 0, 128
        %3021 = vxpose.xlu0.c.b16.cont [4/8] 0, 128
        %3022 = vxpose.xlu0.c.b16.cont [5/8] 0, 128
        %3023 = vxpose.xlu0.c.b16.cont [6/8] 0, 128
        %3024 = vxpose.xlu0.c.b16.cont [7/8] 0, 128
        %3025 = vxpose.xlu0.c.b16.end [8/8] 0, 128
        %v3026 = vpop.trf.xlu0
        %v3027 = vpop.trf.xlu0
        %v3028 = vpop.trf.xlu0
        %v3029 = vpop.trf.xlu0
        %v3030 = vpop.trf.xlu0
        %v3031 = vpop.trf.xlu0
        %v3032 = vpop.trf.xlu0
        %v3033 = vpop.trf.xlu0
        %3034 = vxpose.xlu0.c.b16.start [1/8] %v2932, 128
        %3035 = vxpose.xlu0.c.b16.cont [2/8] 0, 128
        %3036 = vxpose.xlu0.c.b16.cont [3/8] 0, 128
        %3037 = vxpose.xlu0.c.b16.cont [4/8] 0, 128
        %3038 = vxpose.xlu0.c.b16.cont [5/8] 0, 128
        %3039 = vxpose.xlu0.c.b16.cont [6/8] 0, 128
        %3040 = vxpose.xlu0.c.b16.cont [7/8] 0, 128
        %3041 = vxpose.xlu0.c.b16.end [8/8] 0, 128
        %v3042 = vpop.trf.xlu0
        %v3043 = vpop.trf.xlu0
        %v3044 = vpop.trf.xlu0
        %v3045 = vpop.trf.xlu0
        %v3046 = vpop.trf.xlu0
        %v3047 = vpop.trf.xlu0
        %v3048 = vpop.trf.xlu0
        %v3049 = vpop.trf.xlu0
        %3050 = vxpose.xlu0.c.b16.start [1/8] %v2936, 128
        %3051 = vxpose.xlu0.c.b16.cont [2/8] 0, 128
        %3052 = vxpose.xlu0.c.b16.cont [3/8] 0, 128
        %3053 = vxpose.xlu0.c.b16.cont [4/8] 0, 128
        %3054 = vxpose.xlu0.c.b16.cont [5/8] 0, 128
        %3055 = vxpose.xlu0.c.b16.cont [6/8] 0, 128
        %3056 = vxpose.xlu0.c.b16.cont [7/8] 0, 128
        %3057 = vxpose.xlu0.c.b16.end [8/8] 0, 128
        %v3058 = vpop.trf.xlu0
        %v3059 = vpop.trf.xlu0
        %v3060 = vpop.trf.xlu0
        %v3061 = vpop.trf.xlu0
        %v3062 = vpop.trf.xlu0
        %v3063 = vpop.trf.xlu0
        %v3064 = vpop.trf.xlu0
        %v3065 = vpop.trf.xlu0
        %v3066 = vcombine.low %v2946, %v3010
        %v3068 = vunpack.c.l.s4 1983009808
        %v3069 = vunpack.c.0.s8 %v3068
        %v3070 = vlaneseq
        %v3071 = vshrl.u32 %v3070, 7
        %v3072 = vsub.s32 %v3069, %v3071
        %v3073 = vrot.slane %v3066, %v3072
        %v3074 = vcombine.low %v2978, %v3042
        %v3076 = vunpack.c.l.s4 1983009808
        %v3077 = vunpack.c.0.s8 %v3076
        %v3078 = vlaneseq
        %v3079 = vshrl.u32 %v3078, 7
        %v3080 = vsub.s32 %v3077, %v3079
        %v3081 = vrot.slane %v3074, %v3080
        %v3082 = vcombine.low %v3073, %v3081
        %v3084 = vunpack.c.l.s4 1934713408
        %v3085 = vunpack.c.0.s8 %v3084
        %v3086 = vlaneseq
        %v3087 = vshrl.u32 %v3086, 7
        %v3088 = vsub.s32 %v3085, %v3087
        %v3089 = vrot.slane %v3082, %v3088
        %v3090 = vcombine.high %v3089, 0
        %v3091 = vcombine.low %v2962, %v3026
        %v3093 = vunpack.c.l.s4 1983009808
        %v3094 = vunpack.c.0.s8 %v3093
        %v3095 = vlaneseq
        %v3096 = vshrl.u32 %v3095, 7
        %v3097 = vsub.s32 %v3094, %v3096
        %v3098 = vrot.slane %v3091, %v3097
        %v3099 = vcombine.low %v2994, %v3058
        %v3101 = vunpack.c.l.s4 1983009808
        %v3102 = vunpack.c.0.s8 %v3101
        %v3103 = vlaneseq
        %v3104 = vshrl.u32 %v3103, 7
        %v3105 = vsub.s32 %v3102, %v3104
        %v3106 = vrot.slane %v3099, %v3105
        %v3107 = vcombine.low %v3098, %v3106
        %v3109 = vunpack.c.l.s4 1934713408
        %v3110 = vunpack.c.0.s8 %v3109
        %v3111 = vlaneseq
        %v3112 = vshrl.u32 %v3111, 7
        %v3113 = vsub.s32 %v3110, %v3112
        %v3114 = vrot.slane %v3107, %v3113
        %v3115 = vcombine.high %v3114, 0
        %v3118 = vpack.i.b16 %v3114, %v3089
        %v3119 = vshrl.u32 %v3089, 16
        %v3120 = vshrl.u32 %v3114, 16
        %v3121 = vpack.i.b16 %v3120, %v3119
        %v3124 = vpack.i.b16 %v3115, %v3090
        %v3125 = vshrl.u32 %v3090, 16
        %v3126 = vshrl.u32 %v3115, 16
        %v3127 = vpack.i.b16 %v3126, %v3125
        %vm3128 = vcmask 130048
        %v3130 = vsel %vm3128, %v3118, 0
        %v3133 = vsel %vm3128, %v2506, 0
        %3135 = vmatprep.subr.bf16.mxu0 0
        %3136 = vmatpush1.bf16.xpose.msra.mxu0 %v3133
        %3137 = vmatprep.subr.bf16.mxu0 0
        %3138 = vmatpush1.bf16.xpose.msra.mxu0 0
        %3139 = vmatprep.subr.bf16.mxu0 0
        %3140 = vmatpush1.bf16.xpose.msra.mxu0 0
        %3141 = vmatprep.subr.bf16.mxu0 0
        %3142 = vmatpush1.bf16.xpose.msra.mxu0 0
        %3143 = vmatprep.subr.bf16.mxu0 0
        %3144 = vmatpush1.bf16.xpose.msra.mxu0 0
        %3145 = vmatprep.subr.bf16.mxu0 0
        %3146 = vmatpush1.bf16.xpose.msra.mxu0 0
        %3147 = vmatprep.subr.bf16.mxu0 0
        %3148 = vmatpush1.bf16.xpose.msra.mxu0 0
        %3149 = vmatprep.subr.bf16.mxu0 0
        %3150 = vmatpush1.bf16.xpose.msra.mxu0 0
        %3151 = vmatprep.subr.bf16.mxu0 0
        %3152 = vmatpush1.bf16.xpose.msra.mxu0 0
        %3153 = vmatprep.subr.bf16.mxu0 0
        %3154 = vmatpush1.bf16.xpose.msra.mxu0 0
        %3155 = vmatprep.subr.bf16.mxu0 0
        %3156 = vmatpush1.bf16.xpose.msra.mxu0 0
        %3157 = vmatprep.subr.bf16.mxu0 0
        %3158 = vmatpush1.bf16.xpose.msra.mxu0 0
        %3159 = vmatprep.subr.bf16.mxu0 0
        %3160 = vmatpush1.bf16.xpose.msra.mxu0 0
        %3161 = vmatprep.subr.bf16.mxu0 0
        %3162 = vmatpush1.bf16.xpose.msra.mxu0 0
        %3163 = vmatprep.subr.bf16.mxu0 0
        %3164 = vmatpush1.bf16.xpose.msra.mxu0 0
        %3165 = vmatprep.subr.bf16.mxu0 0
        %3166 = vmatpush1.bf16.xpose.msra.mxu0 0
        %3167 = vmatprep.mubr.bf16.mxu0 0
        %3168 = vmatmul.mubr.bf16.gmra.mrb[0].mxu0 %v3130
        %v3169 = vpop.f32.mrb[0].mxu0
        %v3170 = vadd.f32 0.0, %v3169
        %v3171 = vpop.f32.mrb[0].mxu0
        %v3172 = vpop.f32.mrb[0].mxu0
        %v3173 = vpop.f32.mrb[0].mxu0
        %3174 = vdwg.mxu0
        %v3176 = vsel %vm3128, %v3121, 0
        %v3179 = vsel %vm3128, %v2507, 0
        %3181 = vmatprep.subr.bf16.mxu0 0
        %3182 = vmatpush1.bf16.xpose.msra.mxu0 %v3179
        %3183 = vmatprep.subr.bf16.mxu0 0
        %3184 = vmatpush1.bf16.xpose.msra.mxu0 0
        %3185 = vmatprep.subr.bf16.mxu0 0
        %3186 = vmatpush1.bf16.xpose.msra.mxu0 0
        %3187 = vmatprep.subr.bf16.mxu0 0
        %3188 = vmatpush1.bf16.xpose.msra.mxu0 0
        %3189 = vmatprep.subr.bf16.mxu0 0
        %3190 = vmatpush1.bf16.xpose.msra.mxu0 0
        %3191 = vmatprep.subr.bf16.mxu0 0
        %3192 = vmatpush1.bf16.xpose.msra.mxu0 0
        %3193 = vmatprep.subr.bf16.mxu0 0
        %3194 = vmatpush1.bf16.xpose.msra.mxu0 0
        %3195 = vmatprep.subr.bf16.mxu0 0
        %3196 = vmatpush1.bf16.xpose.msra.mxu0 0
        %3197 = vmatprep.subr.bf16.mxu0 0
        %3198 = vmatpush1.bf16.xpose.msra.mxu0 0
        %3199 = vmatprep.subr.bf16.mxu0 0
        %3200 = vmatpush1.bf16.xpose.msra.mxu0 0
        %3201 = vmatprep.subr.bf16.mxu0 0
        %3202 = vmatpush1.bf16.xpose.msra.mxu0 0
        %3203 = vmatprep.subr.bf16.mxu0 0
        %3204 = vmatpush1.bf16.xpose.msra.mxu0 0
        %3205 = vmatprep.subr.bf16.mxu0 0
        %3206 = vmatpush1.bf16.xpose.msra.mxu0 0
        %3207 = vmatprep.subr.bf16.mxu0 0
        %3208 = vmatpush1.bf16.xpose.msra.mxu0 0
        %3209 = vmatprep.subr.bf16.mxu0 0
        %3210 = vmatpush1.bf16.xpose.msra.mxu0 0
        %3211 = vmatprep.subr.bf16.mxu0 0
        %3212 = vmatpush1.bf16.xpose.msra.mxu0 0
        %3213 = vmatprep.mubr.bf16.mxu0 0
        %3214 = vmatmul.mubr.bf16.gmra.mrb[0].mxu0 %v3176
        %v3215 = vpop.f32.mrb[0].mxu0
        %v3216 = vadd.f32 0.0, %v3215
        %v3217 = vpop.f32.mrb[0].mxu0
        %v3218 = vpop.f32.mrb[0].mxu0
        %v3219 = vpop.f32.mrb[0].mxu0
        %3220 = vdwg.mxu0
        %v3222 = vsel %vm3128, %v3124, 0
        %v3225 = vsel %vm3128, %v2508, 0
        %3227 = vmatprep.subr.bf16.mxu0 0
        %3228 = vmatpush1.bf16.xpose.msra.mxu0 %v3225
        %3229 = vmatprep.subr.bf16.mxu0 0
        %3230 = vmatpush1.bf16.xpose.msra.mxu0 0
        %3231 = vmatprep.subr.bf16.mxu0 0
        %3232 = vmatpush1.bf16.xpose.msra.mxu0 0
        %3233 = vmatprep.subr.bf16.mxu0 0
        %3234 = vmatpush1.bf16.xpose.msra.mxu0 0
        %3235 = vmatprep.subr.bf16.mxu0 0
        %3236 = vmatpush1.bf16.xpose.msra.mxu0 0
        %3237 = vmatprep.subr.bf16.mxu0 0
        %3238 = vmatpush1.bf16.xpose.msra.mxu0 0
        %3239 = vmatprep.subr.bf16.mxu0 0
        %3240 = vmatpush1.bf16.xpose.msra.mxu0 0
        %3241 = vmatprep.subr.bf16.mxu0 0
        %3242 = vmatpush1.bf16.xpose.msra.mxu0 0
        %3243 = vmatprep.subr.bf16.mxu0 0
        %3244 = vmatpush1.bf16.xpose.msra.mxu0 0
        %3245 = vmatprep.subr.bf16.mxu0 0
        %3246 = vmatpush1.bf16.xpose.msra.mxu0 0
        %3247 = vmatprep.subr.bf16.mxu0 0
        %3248 = vmatpush1.bf16.xpose.msra.mxu0 0
        %3249 = vmatprep.subr.bf16.mxu0 0
        %3250 = vmatpush1.bf16.xpose.msra.mxu0 0
        %3251 = vmatprep.subr.bf16.mxu0 0
        %3252 = vmatpush1.bf16.xpose.msra.mxu0 0
        %3253 = vmatprep.subr.bf16.mxu0 0
        %3254 = vmatpush1.bf16.xpose.msra.mxu0 0
        %3255 = vmatprep.subr.bf16.mxu0 0
        %3256 = vmatpush1.bf16.xpose.msra.mxu0 0
        %3257 = vmatprep.subr.bf16.mxu0 0
        %3258 = vmatpush1.bf16.xpose.msra.mxu0 0
        %3259 = vmatprep.mubr.bf16.mxu0 0
        %3260 = vmatmul.mubr.bf16.gmra.mrb[0].mxu0 %v3222
        %v3261 = vpop.f32.mrb[0].mxu0
        %v3262 = vadd.f32 0.0, %v3261
        %v3263 = vpop.f32.mrb[0].mxu0
        %v3264 = vpop.f32.mrb[0].mxu0
        %v3265 = vpop.f32.mrb[0].mxu0
        %3266 = vdwg.mxu0
        %v3268 = vsel %vm3128, %v3127, 0
        %v3271 = vsel %vm3128, %v2509, 0
        %3273 = vmatprep.subr.bf16.mxu0 0
        %3274 = vmatpush1.bf16.xpose.msra.mxu0 %v3271
        %3275 = vmatprep.subr.bf16.mxu0 0
        %3276 = vmatpush1.bf16.xpose.msra.mxu0 0
        %3277 = vmatprep.subr.bf16.mxu0 0
        %3278 = vmatpush1.bf16.xpose.msra.mxu0 0
        %3279 = vmatprep.subr.bf16.mxu0 0
        %3280 = vmatpush1.bf16.xpose.msra.mxu0 0
        %3281 = vmatprep.subr.bf16.mxu0 0
        %3282 = vmatpush1.bf16.xpose.msra.mxu0 0
        %3283 = vmatprep.subr.bf16.mxu0 0
        %3284 = vmatpush1.bf16.xpose.msra.mxu0 0
        %3285 = vmatprep.subr.bf16.mxu0 0
        %3286 = vmatpush1.bf16.xpose.msra.mxu0 0
        %3287 = vmatprep.subr.bf16.mxu0 0
        %3288 = vmatpush1.bf16.xpose.msra.mxu0 0
        %3289 = vmatprep.subr.bf16.mxu0 0
        %3290 = vmatpush1.bf16.xpose.msra.mxu0 0
        %3291 = vmatprep.subr.bf16.mxu0 0
        %3292 = vmatpush1.bf16.xpose.msra.mxu0 0
        %3293 = vmatprep.subr.bf16.mxu0 0
        %3294 = vmatpush1.bf16.xpose.msra.mxu0 0
        %3295 = vmatprep.subr.bf16.mxu0 0
        %3296 = vmatpush1.bf16.xpose.msra.mxu0 0
        %3297 = vmatprep.subr.bf16.mxu0 0
        %3298 = vmatpush1.bf16.xpose.msra.mxu0 0
        %3299 = vmatprep.subr.bf16.mxu0 0
        %3300 = vmatpush1.bf16.xpose.msra.mxu0 0
        %3301 = vmatprep.subr.bf16.mxu0 0
        %3302 = vmatpush1.bf16.xpose.msra.mxu0 0
        %3303 = vmatprep.subr.bf16.mxu0 0
        %3304 = vmatpush1.bf16.xpose.msra.mxu0 0
        %3305 = vmatprep.mubr.bf16.mxu0 0
        %3306 = vmatmul.mubr.bf16.gmra.mrb[0].mxu0 %v3268
        %v3307 = vpop.f32.mrb[0].mxu0
        %v3308 = vadd.f32 0.0, %v3307
        %v3309 = vpop.f32.mrb[0].mxu0
        %v3310 = vpop.f32.mrb[0].mxu0
        %v3311 = vpop.f32.mrb[0].mxu0
        %3312 = vdwg.mxu0
        %3313 = vxpose.xlu0.b32.start [1/16] %v3170, 128
        %3314 = vxpose.xlu0.b32.cont [2/16] 0.0, 128
        %3315 = vxpose.xlu0.b32.cont [3/16] 0.0, 128
        %3316 = vxpose.xlu0.b32.cont [4/16] 0.0, 128
        %3317 = vxpose.xlu0.b32.cont [5/16] 0.0, 128
        %3318 = vxpose.xlu0.b32.cont [6/16] 0.0, 128
        %3319 = vxpose.xlu0.b32.cont [7/16] 0.0, 128
        %3320 = vxpose.xlu0.b32.cont [8/16] 0.0, 128
        %3321 = vxpose.xlu0.b32.cont [9/16] 0.0, 128
        %3322 = vxpose.xlu0.b32.cont [10/16] 0.0, 128
        %3323 = vxpose.xlu0.b32.cont [11/16] 0.0, 128
        %3324 = vxpose.xlu0.b32.cont [12/16] 0.0, 128
        %3325 = vxpose.xlu0.b32.cont [13/16] 0.0, 128
        %3326 = vxpose.xlu0.b32.cont [14/16] 0.0, 128
        %3327 = vxpose.xlu0.b32.cont [15/16] 0.0, 128
        %3328 = vxpose.xlu0.b32.end [16/16] 0.0, 128
        %v3329 = vpop.trf.xlu0
        %v3330 = vpop.trf.xlu0
        %v3331 = vpop.trf.xlu0
        %v3332 = vpop.trf.xlu0
        %v3333 = vpop.trf.xlu0
        %v3334 = vpop.trf.xlu0
        %v3335 = vpop.trf.xlu0
        %v3336 = vpop.trf.xlu0
        %v3337 = vpop.trf.xlu0
        %v3338 = vpop.trf.xlu0
        %v3339 = vpop.trf.xlu0
        %v3340 = vpop.trf.xlu0
        %v3341 = vpop.trf.xlu0
        %v3342 = vpop.trf.xlu0
        %v3343 = vpop.trf.xlu0
        %v3344 = vpop.trf.xlu0
        %3345 = vxpose.xlu0.b32.start [1/16] %v3216, 128
        %3346 = vxpose.xlu0.b32.cont [2/16] 0.0, 128
        %3347 = vxpose.xlu0.b32.cont [3/16] 0.0, 128
        %3348 = vxpose.xlu0.b32.cont [4/16] 0.0, 128
        %3349 = vxpose.xlu0.b32.cont [5/16] 0.0, 128
        %3350 = vxpose.xlu0.b32.cont [6/16] 0.0, 128
        %3351 = vxpose.xlu0.b32.cont [7/16] 0.0, 128
        %3352 = vxpose.xlu0.b32.cont [8/16] 0.0, 128
        %3353 = vxpose.xlu0.b32.cont [9/16] 0.0, 128
        %3354 = vxpose.xlu0.b32.cont [10/16] 0.0, 128
        %3355 = vxpose.xlu0.b32.cont [11/16] 0.0, 128
        %3356 = vxpose.xlu0.b32.cont [12/16] 0.0, 128
        %3357 = vxpose.xlu0.b32.cont [13/16] 0.0, 128
        %3358 = vxpose.xlu0.b32.cont [14/16] 0.0, 128
        %3359 = vxpose.xlu0.b32.cont [15/16] 0.0, 128
        %3360 = vxpose.xlu0.b32.end [16/16] 0.0, 128
        %v3361 = vpop.trf.xlu0
        %v3362 = vpop.trf.xlu0
        %v3363 = vpop.trf.xlu0
        %v3364 = vpop.trf.xlu0
        %v3365 = vpop.trf.xlu0
        %v3366 = vpop.trf.xlu0
        %v3367 = vpop.trf.xlu0
        %v3368 = vpop.trf.xlu0
        %v3369 = vpop.trf.xlu0
        %v3370 = vpop.trf.xlu0
        %v3371 = vpop.trf.xlu0
        %v3372 = vpop.trf.xlu0
        %v3373 = vpop.trf.xlu0
        %v3374 = vpop.trf.xlu0
        %v3375 = vpop.trf.xlu0
        %v3376 = vpop.trf.xlu0
        %3377 = vxpose.xlu0.b32.start [1/16] %v3262, 128
        %3378 = vxpose.xlu0.b32.cont [2/16] 0.0, 128
        %3379 = vxpose.xlu0.b32.cont [3/16] 0.0, 128
        %3380 = vxpose.xlu0.b32.cont [4/16] 0.0, 128
        %3381 = vxpose.xlu0.b32.cont [5/16] 0.0, 128
        %3382 = vxpose.xlu0.b32.cont [6/16] 0.0, 128
        %3383 = vxpose.xlu0.b32.cont [7/16] 0.0, 128
        %3384 = vxpose.xlu0.b32.cont [8/16] 0.0, 128
        %3385 = vxpose.xlu0.b32.cont [9/16] 0.0, 128
        %3386 = vxpose.xlu0.b32.cont [10/16] 0.0, 128
        %3387 = vxpose.xlu0.b32.cont [11/16] 0.0, 128
        %3388 = vxpose.xlu0.b32.cont [12/16] 0.0, 128
        %3389 = vxpose.xlu0.b32.cont [13/16] 0.0, 128
        %3390 = vxpose.xlu0.b32.cont [14/16] 0.0, 128
        %3391 = vxpose.xlu0.b32.cont [15/16] 0.0, 128
        %3392 = vxpose.xlu0.b32.end [16/16] 0.0, 128
        %v3393 = vpop.trf.xlu0
        %v3394 = vpop.trf.xlu0
        %v3395 = vpop.trf.xlu0
        %v3396 = vpop.trf.xlu0
        %v3397 = vpop.trf.xlu0
        %v3398 = vpop.trf.xlu0
        %v3399 = vpop.trf.xlu0
        %v3400 = vpop.trf.xlu0
        %v3401 = vpop.trf.xlu0
        %v3402 = vpop.trf.xlu0
        %v3403 = vpop.trf.xlu0
        %v3404 = vpop.trf.xlu0
        %v3405 = vpop.trf.xlu0
        %v3406 = vpop.trf.xlu0
        %v3407 = vpop.trf.xlu0
        %v3408 = vpop.trf.xlu0
        %3409 = vxpose.xlu0.b32.start [1/16] %v3308, 128
        %3410 = vxpose.xlu0.b32.cont [2/16] 0.0, 128
        %3411 = vxpose.xlu0.b32.cont [3/16] 0.0, 128
        %3412 = vxpose.xlu0.b32.cont [4/16] 0.0, 128
        %3413 = vxpose.xlu0.b32.cont [5/16] 0.0, 128
        %3414 = vxpose.xlu0.b32.cont [6/16] 0.0, 128
        %3415 = vxpose.xlu0.b32.cont [7/16] 0.0, 128
        %3416 = vxpose.xlu0.b32.cont [8/16] 0.0, 128
        %3417 = vxpose.xlu0.b32.cont [9/16] 0.0, 128
        %3418 = vxpose.xlu0.b32.cont [10/16] 0.0, 128
        %3419 = vxpose.xlu0.b32.cont [11/16] 0.0, 128
        %3420 = vxpose.xlu0.b32.cont [12/16] 0.0, 128
        %3421 = vxpose.xlu0.b32.cont [13/16] 0.0, 128
        %3422 = vxpose.xlu0.b32.cont [14/16] 0.0, 128
        %3423 = vxpose.xlu0.b32.cont [15/16] 0.0, 128
        %3424 = vxpose.xlu0.b32.end [16/16] 0.0, 128
        %v3425 = vpop.trf.xlu0
        %v3426 = vpop.trf.xlu0
        %v3427 = vpop.trf.xlu0
        %v3428 = vpop.trf.xlu0
        %v3429 = vpop.trf.xlu0
        %v3430 = vpop.trf.xlu0
        %v3431 = vpop.trf.xlu0
        %v3432 = vpop.trf.xlu0
        %v3433 = vpop.trf.xlu0
        %v3434 = vpop.trf.xlu0
        %v3435 = vpop.trf.xlu0
        %v3436 = vpop.trf.xlu0
        %v3437 = vpop.trf.xlu0
        %v3438 = vpop.trf.xlu0
        %v3439 = vpop.trf.xlu0
        %v3440 = vpop.trf.xlu0
        %v3441 = vcombine.low %v3329, %v3393
        %v3443 = vunpack.c.l.s4 1983009808
        %v3444 = vunpack.c.0.s8 %v3443
        %v3445 = vlaneseq
        %v3446 = vshrl.u32 %v3445, 7
        %v3447 = vsub.s32 %v3444, %v3446
        %v3448 = vrot.slane %v3441, %v3447
        %v3449 = vcombine.low %v3361, %v3425
        %v3451 = vunpack.c.l.s4 1983009808
        %v3452 = vunpack.c.0.s8 %v3451
        %v3453 = vlaneseq
        %v3454 = vshrl.u32 %v3453, 7
        %v3455 = vsub.s32 %v3452, %v3454
        %v3456 = vrot.slane %v3449, %v3455
        %v3457 = vcombine.low %v3448, %v3456
        %v3459 = vunpack.c.l.s4 1934713408
        %v3460 = vunpack.c.0.s8 %v3459
        %v3461 = vlaneseq
        %v3462 = vshrl.u32 %v3461, 7
        %v3463 = vsub.s32 %v3460, %v3462
        %v3464 = vrot.slane %v3457, %v3463
        %v3465 = vcombine.high %v3464, 0.0
        %v3470 = vlaneseq
        %v3471 = vshrl.u32 %v3470, 7
        %v3472 = vsub.s32 %v2369, %v3471
        %v3473 = vrot.slane %v2510, %v3472
        %v3474 = vlaneseq
        %v3475 = vshrl.u32 %v3474, 7
        %v3476 = vsub.s32 %v2369, %v3475
        %v3477 = vrot.slane %v2511, %v3476
        %v3478 = vlaneseq
        %v3479 = vshrl.u32 %v3478, 7
        %v3480 = vsub.s32 %v2369, %v3479
        %v3481 = vrot.slane %v2512, %v3480
        %v3482 = vlaneseq
        %v3483 = vshrl.u32 %v3482, 7
        %v3484 = vsub.s32 %v2369, %v3483
        %v3485 = vrot.slane %v2513, %v3484
        %v3486 = vsel %vm2378, %v3477, %v3473
        %vm3487 = vcmask 1042434
        %v3488 = vsel %vm3487, %v3481, %v3486
        %vm3489 = vcmask 1043459
        %v3490 = vsel %vm3489, %v3485, %v3488
        %3492 = vxpose.xlu0.b32.start [1/16] %v3490, 128
        %3493 = vxpose.xlu0.b32.cont [2/16] 0.0, 128
        %3494 = vxpose.xlu0.b32.cont [3/16] 0.0, 128
        %3495 = vxpose.xlu0.b32.cont [4/16] 0.0, 128
        %3496 = vxpose.xlu0.b32.cont [5/16] 0.0, 128
        %3497 = vxpose.xlu0.b32.cont [6/16] 0.0, 128
        %3498 = vxpose.xlu0.b32.cont [7/16] 0.0, 128
        %3499 = vxpose.xlu0.b32.cont [8/16] 0.0, 128
        %3500 = vxpose.xlu0.b32.cont [9/16] 0.0, 128
        %3501 = vxpose.xlu0.b32.cont [10/16] 0.0, 128
        %3502 = vxpose.xlu0.b32.cont [11/16] 0.0, 128
        %3503 = vxpose.xlu0.b32.cont [12/16] 0.0, 128
        %3504 = vxpose.xlu0.b32.cont [13/16] 0.0, 128
        %3505 = vxpose.xlu0.b32.cont [14/16] 0.0, 128
        %3506 = vxpose.xlu0.b32.cont [15/16] 0.0, 128
        %3507 = vxpose.xlu0.b32.end [16/16] 0.0, 128
        %v3508 = vpop.trf.xlu0
        %v3509 = vpop.trf.xlu0
        %v3510 = vpop.trf.xlu0
        %v3511 = vpop.trf.xlu0
        %v3512 = vpop.trf.xlu0
        %v3513 = vpop.trf.xlu0
        %v3514 = vpop.trf.xlu0
        %v3515 = vpop.trf.xlu0
        %v3516 = vpop.trf.xlu0
        %v3517 = vpop.trf.xlu0
        %v3518 = vpop.trf.xlu0
        %v3519 = vpop.trf.xlu0
        %v3520 = vpop.trf.xlu0
        %v3521 = vpop.trf.xlu0
        %v3522 = vpop.trf.xlu0
        %v3523 = vpop.trf.xlu0
        %v3524 = vlaneseq
        %v3525 = vshrl.u32 %v3524, 7
        %v3526 = vsub.s32 0, %v3525
        %v3527 = vrot.slane %v3508, %v3526
        %3529 = vbcast.lane.b32.xlu0 %v3527, 256
        %v3530 = vpop.permute.xlu0 %3529
        %v3531 = vlaneseq
        %v3532 = vshrl.u32 %v3531, 7
        %v3533 = vsub.s32 1, %v3532
        %v3534 = vrot.slane %v3508, %v3533
        %3536 = vbcast.lane.b32.xlu0 %v3534, 256
        %v3537 = vpop.permute.xlu0 %3536
        %v3538 = vmul.f32 %v3530, %v1525
        %v3539 = vmul.f32 %v3537, %v1526
        %v3540 = vadd.f32 %v3464, %v3538
        %v3542 = vunpack.c.l.s4 1983009808
        %v3543 = vunpack.c.0.s8 %v3542
        %v3544 = vlaneseq
        %v3545 = vshrl.u32 %v3544, 7
        %v3546 = vsub.s32 %v3543, %v3545
        %v3547 = vrot.slane %v3540, %v3546
        %v3548 = vadd.f32 %v3465, %v3539
        %v3550 = vunpack.c.l.s4 1983009808
        %v3551 = vunpack.c.0.s8 %v3550
        %v3552 = vlaneseq
        %v3553 = vshrl.u32 %v3552, 7
        %v3554 = vsub.s32 %v3551, %v3553
        %v3555 = vrot.slane %v3548, %v3554
        %v3556 = vcombine.low %v3547, %v3555
        %v3557 = vcombine.high %v3547, %v3555
        %v3559 = vunpack.c.l.s4 1934713408
        %v3560 = vunpack.c.0.s8 %v3559
        %v3561 = vlaneseq
        %v3562 = vshrl.u32 %v3561, 7
        %v3563 = vsub.s32 %v3560, %v3562
        %v3564 = vrot.slane %v3556, %v3563
        %v3566 = vunpack.c.l.s4 1934713408
        %v3567 = vunpack.c.0.s8 %v3566
        %v3568 = vlaneseq
        %v3569 = vshrl.u32 %v3568, 7
        %v3570 = vsub.s32 %v3567, %v3569
        %v3571 = vrot.slane %v3557, %v3570
        %v3572 = vcombine.high %v3564, 0.0
        %v3573 = vcombine.high %v3571, 0.0
        %3575 = vrot.lane.b32.xlu0 %v3572, 8
        %v3576 = vpop.permute.xlu0 %3575
        %3579 = vrot.lane.b32.xlu0 %v3571, 16
        %v3580 = vpop.permute.xlu0 %3579
        %3583 = vrot.lane.b32.xlu0 %v3573, 24
        %v3584 = vpop.permute.xlu0 %3583
        %v3586 = vsel %vm2171, %v3564, %v3576
        %v3587 = vsel %vm3128, %v3586, %v3580
        %vm3588 = vcmask 195584
        %v3589 = vsel %vm3588, %v3587, %v3584
        %v3590 = vld [vmem:[#allocation17] sm:$0xf]
        %v3591 = vld [vmem:[#allocation17 + $0x4] sm:$0xf]
        %v3592 = vld [vmem:[#allocation17 + $0x8] sm:$0xf]
        %v3593 = vld [vmem:[#allocation17 + $0xc] sm:$0xf]
        %v3594 = vpack.c.bf16 %v3589, %v3589
        %v3595 = vld [vmem:[#allocation19] sm:$0x1]
        %v3597 = vlaneseq
        %v3598 = vshrl.u32 %v3597, 7
        %v3599 = vsub.s32 0, %v3598
        %v3600 = vrot.slane %v3595, %v3599
        %v3606 = vunpack.c.l.b16 %v3590
        %v3607 = vunpack.c.l.b16 %v3591
        %v3608 = vunpack.c.l.b16 %v3592
        %v3609 = vunpack.c.l.b16 %v3593
        %v3610 = vpack.c.b16 %v3607, %v3606
        %v3611 = vpack.c.b16 %v3609, %v3608
        %v3615 = vsel %vm865, %v3594, 0
        %3617 = vmatprep.subr.bf16.mxu0 0
        %3618 = vmatpush1.bf16.msra.mxu0 %v3610
        %3619 = vmatprep.subr.bf16.mxu0 0
        %3620 = vmatpush1.bf16.msra.mxu0 %v3611
        %3621 = vmatprep.subr.bf16.mxu0 0
        %3622 = vmatpush1.bf16.msra.mxu0 0
        %3623 = vmatprep.subr.bf16.mxu0 0
        %3624 = vmatpush1.bf16.msra.mxu0 0
        %3625 = vmatprep.subr.bf16.mxu0 0
        %3626 = vmatpush1.bf16.msra.mxu0 0
        %3627 = vmatprep.subr.bf16.mxu0 0
        %3628 = vmatpush1.bf16.msra.mxu0 0
        %3629 = vmatprep.subr.bf16.mxu0 0
        %3630 = vmatpush1.bf16.msra.mxu0 0
        %3631 = vmatprep.subr.bf16.mxu0 0
        %3632 = vmatpush1.bf16.msra.mxu0 0
        %3633 = vmatprep.subr.bf16.mxu0 0
        %3634 = vmatpush1.bf16.msra.mxu0 0
        %3635 = vmatprep.subr.bf16.mxu0 0
        %3636 = vmatpush1.bf16.msra.mxu0 0
        %3637 = vmatprep.subr.bf16.mxu0 0
        %3638 = vmatpush1.bf16.msra.mxu0 0
        %3639 = vmatprep.subr.bf16.mxu0 0
        %3640 = vmatpush1.bf16.msra.mxu0 0
        %3641 = vmatprep.subr.bf16.mxu0 0
        %3642 = vmatpush1.bf16.msra.mxu0 0
        %3643 = vmatprep.subr.bf16.mxu0 0
        %3644 = vmatpush1.bf16.msra.mxu0 0
        %3645 = vmatprep.subr.bf16.mxu0 0
        %3646 = vmatpush1.bf16.msra.mxu0 0
        %3647 = vmatprep.subr.bf16.mxu0 0
        %3648 = vmatpush1.bf16.msra.mxu0 0
        %3649 = vmatprep.mubr.bf16.mxu0 0
        %3650 = vmatmul.mubr.bf16.gmra.mrb[0].mxu0 %v3615
        %v3651 = vpop.f32.mrb[0].mxu0
        %v3652 = vadd.f32 %v3600, %v3651
        %v3653 = vpop.f32.mrb[0].mxu0
        %v3654 = vpop.f32.mrb[0].mxu0
        %v3655 = vpop.f32.mrb[0].mxu0
        %3656 = vdwg.mxu0
        %v3657 = vadd.f32 %v827, %v3652
        %v3658 = vld [vmem:[#allocation20] sm:$0x1]
        %v3659 = vld [vmem:[#allocation22] sm:$0x1]
        %v3660 = vld [vmem:[#allocation23] sm:$0xf]
        %v3661 = vld [vmem:[#allocation23 + $0x4] sm:$0xf]
        %v3662 = vld [vmem:[#allocation23 + $0x8] sm:$0xf]
        %v3663 = vld [vmem:[#allocation23 + $0xc] sm:$0xf]
        %v3664 = vld [vmem:[#allocation25] sm:$0x1]
        %v3665 = vld [vmem:[#allocation26] sm:$0xf]
        %v3666 = vld [vmem:[#allocation26 + $0x4] sm:$0xf]
        %v3667 = vld [vmem:[#allocation26 + $0x8] sm:$0xf]
        %v3668 = vld [vmem:[#allocation26 + $0xc] sm:$0xf]
        %v3669 = vld [vmem:[#allocation26 + $0x10] sm:$0xf]
        %v3670 = vld [vmem:[#allocation26 + $0x14] sm:$0xf]
        %v3671 = vld [vmem:[#allocation26 + $0x18] sm:$0xf]
        %v3672 = vld [vmem:[#allocation26 + $0x1c] sm:$0xf]
        %v3673 = vld [vmem:[#allocation26 + $0x20] sm:$0xf]
        %v3674 = vld [vmem:[#allocation26 + $0x24] sm:$0xf]
        %v3675 = vld [vmem:[#allocation26 + $0x28] sm:$0xf]
        %v3676 = vld [vmem:[#allocation26 + $0x2c] sm:$0xf]
        %v3677 = vld [vmem:[#allocation26 + $0x30] sm:$0xf]
        %v3678 = vld [vmem:[#allocation26 + $0x34] sm:$0xf]
        %v3679 = vld [vmem:[#allocation26 + $0x38] sm:$0xf]
        %v3680 = vld [vmem:[#allocation26 + $0x3c] sm:$0xf]
        %v3681 = vld [vmem:[#allocation28] sm:$0x1]
        %v3682 = vsel %vm836, %v3657, 0.0
        %3683 = vadd.xlane.f32.xlu0 %v3682
        %v3684 = vpop.xlane.xlu0 %3683
        %v3685 = vmul.f32 %v3684, %v840
        %v3686 = vsub.f32 %v3657, %v3685
        %v3687 = vmul.f32 %v3686, %v3686
        %v3688 = vsel %vm836, %v3687, 0.0
        %3689 = vadd.xlane.f32.xlu0 %v3688
        %v3690 = vpop.xlane.xlu0 %3689
        %v3691 = vmul.f32 %v3690, %v840
        %v3692 = vadd.f32 %v3691, 1e-05
        %v3693 = vrsqrt.pop %v3692
        %v3694 = vmul.f32 %v3686, %v3693
        %v3696 = vlaneseq
        %v3697 = vshrl.u32 %v3696, 7
        %v3698 = vsub.s32 0, %v3697
        %v3699 = vrot.slane %v3658, %v3698
        %v3701 = vmul.f32 %v3694, %v3699
        %v3703 = vlaneseq
        %v3704 = vshrl.u32 %v3703, 7
        %v3705 = vsub.s32 0, %v3704
        %v3706 = vrot.slane %v3659, %v3705
        %v3708 = vadd.f32 %v3701, %v3706
        %v3709 = vpack.c.bf16 %v3708, %v3708
        %v3711 = vlaneseq
        %v3712 = vshrl.u32 %v3711, 7
        %v3713 = vsub.s32 0, %v3712
        %v3714 = vrot.slane %v3664, %v3713
        %v3720 = vunpack.c.l.b16 %v3660
        %v3721 = vunpack.c.l.b16 %v3661
        %v3722 = vunpack.c.l.b16 %v3662
        %v3723 = vunpack.c.l.b16 %v3663
        %v3724 = vpack.c.b16 %v3721, %v3720
        %v3725 = vpack.c.b16 %v3723, %v3722
        %v3729 = vsel %vm865, %v3709, 0
        %3731 = vmatprep.subr.bf16.mxu0 0
        %3732 = vmatpush1.bf16.msra.mxu0 %v3724
        %3733 = vmatprep.subr.bf16.mxu0 0
        %3734 = vmatpush1.bf16.msra.mxu0 %v3725
        %3735 = vmatprep.subr.bf16.mxu0 0
        %3736 = vmatpush1.bf16.msra.mxu0 0
        %3737 = vmatprep.subr.bf16.mxu0 0
        %3738 = vmatpush1.bf16.msra.mxu0 0
        %3739 = vmatprep.subr.bf16.mxu0 0
        %3740 = vmatpush1.bf16.msra.mxu0 0
        %3741 = vmatprep.subr.bf16.mxu0 0
        %3742 = vmatpush1.bf16.msra.mxu0 0
        %3743 = vmatprep.subr.bf16.mxu0 0
        %3744 = vmatpush1.bf16.msra.mxu0 0
        %3745 = vmatprep.subr.bf16.mxu0 0
        %3746 = vmatpush1.bf16.msra.mxu0 0
        %3747 = vmatprep.subr.bf16.mxu0 0
        %3748 = vmatpush1.bf16.msra.mxu0 0
        %3749 = vmatprep.subr.bf16.mxu0 0
        %3750 = vmatpush1.bf16.msra.mxu0 0
        %3751 = vmatprep.subr.bf16.mxu0 0
        %3752 = vmatpush1.bf16.msra.mxu0 0
        %3753 = vmatprep.subr.bf16.mxu0 0
        %3754 = vmatpush1.bf16.msra.mxu0 0
        %3755 = vmatprep.subr.bf16.mxu0 0
        %3756 = vmatpush1.bf16.msra.mxu0 0
        %3757 = vmatprep.subr.bf16.mxu0 0
        %3758 = vmatpush1.bf16.msra.mxu0 0
        %3759 = vmatprep.subr.bf16.mxu0 0
        %3760 = vmatpush1.bf16.msra.mxu0 0
        %3761 = vmatprep.subr.bf16.mxu0 0
        %3762 = vmatpush1.bf16.msra.mxu0 0
        %3763 = vmatprep.mubr.bf16.mxu0 0
        %3764 = vmatmul.mubr.bf16.gmra.mrb[0].mxu0 %v3729
        %v3765 = vpop.f32.mrb[0].mxu0
        %v3766 = vadd.f32 %v3714, %v3765
        %v3767 = vpop.f32.mrb[0].mxu0
        %v3768 = vpop.f32.mrb[0].mxu0
        %v3769 = vpop.f32.mrb[0].mxu0
        %3770 = vdwg.mxu0
        %v3771 = vmul.f32 %v3766, 1.702
        %v3772 = vxor.u32 %v3771, 2147483648
        %v3773 = vmul.f32 %v3772, 1.442695
        %v3774 = vpow.pop %v3773
        %v3775 = vadd.f32 %v3774, 1.0
        %v3776 = vrcp.pop %v3775
        %v3777 = vmul.f32 1.0, %v3776
        %v3778 = vmul.f32 %v3766, %v3777
        %v3779 = vpack.c.bf16 %v3778, %v3778
        %v3796 = vunpack.c.l.b16 %v3665
        %v3797 = vunpack.c.l.b16 %v3666
        %v3798 = vunpack.c.l.b16 %v3667
        %v3799 = vunpack.c.l.b16 %v3668
        %v3800 = vunpack.c.l.b16 %v3669
        %v3801 = vunpack.c.l.b16 %v3670
        %v3802 = vunpack.c.l.b16 %v3671
        %v3803 = vunpack.c.l.b16 %v3672
        %v3804 = vunpack.c.l.b16 %v3673
        %v3805 = vunpack.c.l.b16 %v3674
        %v3806 = vunpack.c.l.b16 %v3675
        %v3807 = vunpack.c.l.b16 %v3676
        %v3808 = vunpack.c.l.b16 %v3677
        %v3809 = vunpack.c.l.b16 %v3678
        %v3810 = vunpack.c.l.b16 %v3679
        %v3811 = vunpack.c.l.b16 %v3680
        %v3812 = vpack.c.b16 %v3797, %v3796
        %v3813 = vpack.c.b16 %v3799, %v3798
        %v3814 = vpack.c.b16 %v3801, %v3800
        %v3815 = vpack.c.b16 %v3803, %v3802
        %v3816 = vpack.c.b16 %v3805, %v3804
        %v3817 = vpack.c.b16 %v3807, %v3806
        %v3818 = vpack.c.b16 %v3809, %v3808
        %v3819 = vpack.c.b16 %v3811, %v3810
        %3828 = vmatprep.subr.bf16.mxu0 0
        %3829 = vmatpush1.bf16.msra.mxu0 %v3812
        %3830 = vmatprep.subr.bf16.mxu0 0
        %3831 = vmatpush1.bf16.msra.mxu0 %v3813
        %3832 = vmatprep.subr.bf16.mxu0 0
        %3833 = vmatpush1.bf16.msra.mxu0 %v3814
        %3834 = vmatprep.subr.bf16.mxu0 0
        %3835 = vmatpush1.bf16.msra.mxu0 %v3815
        %3836 = vmatprep.subr.bf16.mxu0 0
        %3837 = vmatpush1.bf16.msra.mxu0 %v3816
        %3838 = vmatprep.subr.bf16.mxu0 0
        %3839 = vmatpush1.bf16.msra.mxu0 %v3817
        %3840 = vmatprep.subr.bf16.mxu0 0
        %3841 = vmatpush1.bf16.msra.mxu0 %v3818
        %3842 = vmatprep.subr.bf16.mxu0 0
        %3843 = vmatpush1.bf16.msra.mxu0 %v3819
        %3844 = vmatprep.subr.bf16.mxu0 0
        %3845 = vmatpush1.bf16.msra.mxu0 0
        %3846 = vmatprep.subr.bf16.mxu0 0
        %3847 = vmatpush1.bf16.msra.mxu0 0
        %3848 = vmatprep.subr.bf16.mxu0 0
        %3849 = vmatpush1.bf16.msra.mxu0 0
        %3850 = vmatprep.subr.bf16.mxu0 0
        %3851 = vmatpush1.bf16.msra.mxu0 0
        %3852 = vmatprep.subr.bf16.mxu0 0
        %3853 = vmatpush1.bf16.msra.mxu0 0
        %3854 = vmatprep.subr.bf16.mxu0 0
        %3855 = vmatpush1.bf16.msra.mxu0 0
        %3856 = vmatprep.subr.bf16.mxu0 0
        %3857 = vmatpush1.bf16.msra.mxu0 0
        %3858 = vmatprep.subr.bf16.mxu0 0
        %3859 = vmatpush1.bf16.msra.mxu0 0
        %3860 = vmatprep.mubr.bf16.mxu0 0
        %3861 = vmatmul.mubr.bf16.gmra.mrb[0].mxu0 %v3779
        %v3862 = vpop.f32.mrb[0].mxu0
        %v3863 = vadd.f32 0.0, %v3862
        %v3864 = vpop.f32.mrb[0].mxu0
        %v3865 = vpop.f32.mrb[0].mxu0
        %v3866 = vpop.f32.mrb[0].mxu0
        %3867 = vdwg.mxu0
        %v3868 = vadd.f32 %v3657, %v3863
        %v3870 = vlaneseq
        %v3871 = vshrl.u32 %v3870, 7
        %v3872 = vsub.s32 0, %v3871
        %v3873 = vrot.slane %v3681, %v3872
        %v3875 = vadd.f32 %v3868, %v3873
        %3876 = vst.msk [vmem:[%s825] sm:$0x3] %vm836, %v3875
        %s3877 = sand.u32 %s424, 1
        %s3878 = scalar_lea.sflag [#allocation4], %s3877
        %s3879 = sand.u32 %s424, 1
        %s3880 = smul.addr %s3879, 2
        %s3881 = scalar_lea.vmem [#allocation29], %s3880
        // Predicated region
        $region157: #{tpu_custom_call.1} parent=87 // pred_check
          %p3882 = pneg %p434
        $region158: #{tpu_custom_call.1} parent=87 // pred_check_branch
          %3884 = sbr.rel (%p3882) target = $region160
        $region159: #{tpu_custom_call.1} parent=87 // pred_region
          %s3886 = ssub.s32 32, 32
          %3887 = vsyncadd %s3878, %s3886
          %s3888 = smul.addr %s44, 32
          %s3889 = scalar_lea.hbm %s17, %s3888
          %s3891 = sshll.u32 %s3881, 4
          %s3892 = int_to_ptr.vmem [resolvable:$true] %s3891
          %3894 = dma.vmem_to_hbm [thread:$0]  %s3892, 32, %s3889, %s3878
        $region160: #{tpu_custom_call.1} parent=87 // pred_fallthru
          _
      $region88: #{tpu_custom_call.1} parent=5 // pred_fallthru
        _
      %p3895 = scmp.le.s32.totalorder 2, %s39
      // Predicated region
      $region161: #{tpu_custom_call.1} parent=5 // pred_check
        %p3896 = pneg %p3895
      $region162: #{tpu_custom_call.1} parent=5 // pred_check_branch
        %3898 = sbr.rel (%p3896) target = $region164
      $region163: #{tpu_custom_call.1} parent=5 // pred_region
        %s3899 = ssub.s32 %s39, 2
        // Predicated region
        $region165: #{tpu_custom_call.1} parent=163 // pred_check
          %p3900 = pneg %p440
        $region166: #{tpu_custom_call.1} parent=163 // pred_check_branch
          %3902 = sbr.rel (%p3900) target = $region168
        $region167: #{tpu_custom_call.1} parent=163 // pred_region
          %s3903 = sand.u32 %s425, 1
          %s3904 = scalar_lea.sflag [#allocation4], %s3903
          %s3905 = sand.u32 %s425, 1
          %s3906 = smul.addr %s3905, 2
          %s3907 = scalar_lea.vmem [#allocation29], %s3906
          %3908 = dma.done %s3904, 32
        $region168: #{tpu_custom_call.1} parent=163 // pred_fallthru
          _
      $region164: #{tpu_custom_call.1} parent=5 // pred_fallthru
        _
    $region6: #{tpu_custom_call.1} parent=1 // loop_footer
      %s43 = sadd.s32 1, %s39
    $region7: #{tpu_custom_call.1} parent=1 // loop_footer_branch
      %38 = sbr.rel target = $region3
    $region8: #{tpu_custom_call.1} parent=1 // loop_exit
      _
    %3909 = vsyncpa [#allocation3], 1
    %s3910 = scalar_lea.sflag [#allocation3], 1
    %3911 = vsyncpa %s3910, 1
    %3912 = vsyncpa [#allocation6], 1
    %s3913 = scalar_lea.sflag [#allocation6], 1
    %3914 = vsyncpa %s3913, 1
    %3915 = vsyncpa [#allocation9], 1
    %3916 = vsyncpa [#allocation12], 1
    %3917 = vsyncpa [#allocation15], 1
    %3918 = vsyncpa [#allocation18], 1
    %3919 = vsyncpa [#allocation21], 1
    %3920 = vsyncpa [#allocation24], 1
    %3921 = vsyncpa [#allocation27], 1
    %3922 = vsyncpa [#allocation4], 1
    %s3923 = scalar_lea.sflag [#allocation4], 1
    %3924 = vsyncpa %s3923, 1

</llo_original>
